<compile_context>
chip_gen: v5e
topology: v5e:2x2
jax: 0.10.0
libtpu: 0.0.40
codegen_flags: <defaults>
</compile_context>

<pallas_src>
from functools import partial

import jax
import jax.numpy as jnp
import numpy as np
from jax.experimental import pallas as pl
from jax.experimental.pallas import tpu as pltpu

_INPLACE_ACTS = ("ReLU", "Leaky_ReLU", "ELU")   # constructed with inplace=True
_LPAD = 8                                       # left zero-halo, kept sublane-tile aligned


# ----------------------------------------------------------------------------
# activations (traced inside the kernel)
# ----------------------------------------------------------------------------
def _activate(x, fn):
    if fn == "ReLU":
        return jnp.maximum(x, 0.0)
    if fn == "Leaky_ReLU":
        return jnp.where(x >= 0, x, 0.1 * x)        # negative_slope=0.1 (module)
    if fn == "ELU":
        return jnp.where(x >= 0, x, jnp.expm1(x))   # alpha=1.0 (module)
    if fn == "GELU":
        return 0.5 * x * (1.0 + jax.lax.erf(x / jnp.sqrt(2.0).astype(x.dtype)))
    raise NotImplementedError(fn)


# ----------------------------------------------------------------------------
# fused kernel: act -> conv3x3 -> act -> conv3x3 ; + 1x1 shortcut ; 2x2 avg-pool
# one batch image per grid step, everything resident in VMEM.
# ----------------------------------------------------------------------------
def _disc_block_kernel(x_ref, w1_ref, b1_ref, w2_ref, b2_ref, w0_ref, b0_ref,
                       o_ref, pad1_ref, pad2_ref, hpool_ref, pool_ref,
                       *, H, W, Cin, Cout, act, shortcut_pre_act):
    # x_ref    : (1, H, W, Cin)
    # w1_ref   : (9, Cin, Cout)   tap index = kh*3 + kw
    # w2_ref   : (9, Cout, Cout)
    # w0_ref   : (Cin, Cout)      1x1 shortcut
    # b*_ref   : (1, C)
    # o_ref    : (1, H2*W2, Cout)
    # pad*_ref : (H+2, W+2*_LPAD, C)  zero-halo conv scratch
    # hpool_ref: (H2, 2*W, Cout)      row-pair view for H-direction pooling
    # pool_ref : (H2*W, Cout)         flat buffer for W-direction (stride-2) pooling
    f32 = jnp.float32
    H2, W2 = H // 2, W // 2
    HW = H * W

    x = x_ref[0].astype(f32)                     # (H, W, Cin)
    a0 = _activate(x, act)                       # activation comes BEFORE conv2d1

    def conv3x3(a, pad_ref, w_ref, b_ref, cin):
        # zero halo; interior stored at sublane offset _LPAD (tile-aligned store).
        pad_ref[...] = jnp.zeros_like(pad_ref)
        pad_ref[1:H + 1, _LPAD:_LPAD + W, :] = a
        acc = jnp.zeros((HW, Cout), f32)
        for kh in range(3):                      # 9 taps, one big matmul each
            for kw in range(3):
                # tap[h, w, :] == a[h + kh - 1, w + kw - 1, :]  (zero outside)
                tap = pad_ref[kh:kh + H, _LPAD - 1 + kw:_LPAD - 1 + kw + W, :]
                acc = acc + jnp.dot(tap.reshape(HW, cin), w_ref[kh * 3 + kw],
                                    preferred_element_type=f32)
        return acc + b_ref[...].astype(f32)      # (HW, Cout)

    # main path (h1 / h2 never leave VMEM)
    h1 = conv3x3(a0, pad1_ref, w1_ref, b1_ref, Cin)
    a1 = _activate(h1, act).reshape(H, W, Cout)
    h2 = conv3x3(a1, pad2_ref, w2_ref, b2_ref, Cout)      # no activation after conv2d2

    # shortcut: conv2d0 as a single (HW, Cin) @ (Cin, Cout) matmul.  With inplace
    # activations (ReLU/Leaky_ReLU/ELU) and bn=False, PyTorch's x0 aliases the
    # activated tensor; GELU is not inplace -> shortcut sees the raw input.
    sc_in = a0 if shortcut_pre_act else x
    sc = jnp.dot(sc_in.reshape(HW, Cin), w0_ref[...],
                 preferred_element_type=f32) + b0_ref[...].astype(f32)

    # 2x2 average pooling of (main + shortcut):  pool(h2) + pool(sc) == pool(h2 + sc)
    total = h2 + sc                                         # (HW, Cout)
    hpool_ref[...] = total.reshape(H2, 2 * W, Cout)         # row pairs along dim 1
    hsum = hpool_ref[:, 0:W, :] + hpool_ref[:, W:2 * W, :]  # (H2, W, Cout)
    pool_ref[...] = hsum.reshape(H2 * W, Cout)
    out = 0.25 * (pool_ref[pl.ds(0, H2 * W2, 2), :]         # even / odd W columns
                  + pool_ref[pl.ds(1, H2 * W2, 2), :])      # (H2*W2, Cout)
    o_ref[0] = out.astype(o_ref.dtype)


# ----------------------------------------------------------------------------
# wrapper (NCHW in / NCHW out, like the PyTorch module)
# ----------------------------------------------------------------------------
def disc_block(x_nchw, params, activation_fn="ReLU"):
    (w0, b0, w1, b1, w2, b2) = params            # OIHW weights (already SN'd)
    N, Cin, H, W = x_nchw.shape
    Cout = w1.shape[0]
    assert H % 2 == 0 and W % 2 == 0, "2x2 average pooling needs even H, W"
    H2, W2 = H // 2, W // 2

    x = jnp.transpose(x_nchw, (0, 2, 3, 1))                       # NCHW -> NHWC
    w1_t = jnp.transpose(w1, (2, 3, 1, 0)).reshape(9, Cin, Cout)  # (tap, Cin, Cout)
    w2_t = jnp.transpose(w2, (2, 3, 1, 0)).reshape(9, Cout, Cout)
    w0_t = jnp.transpose(w0[:, :, 0, 0], (1, 0))                  # (Cin, Cout)
    b0r = b0.reshape(1, Cout)
    b1r = b1.reshape(1, Cout)
    b2r = b2.reshape(1, Cout)

    shortcut_pre_act = activation_fn in _INPLACE_ACTS  # mirror PyTorch inplace aliasing

    kernel = partial(_disc_block_kernel, H=H, W=W, Cin=Cin, Cout=Cout,
                     act=activation_fn, shortcut_pre_act=shortcut_pre_act)

    out_flat = pl.pallas_call(
        kernel,
        out_shape=jax.ShapeDtypeStruct((N, H2 * W2, Cout), x_nchw.dtype),
        grid=(N,),
        in_specs=[
            pl.BlockSpec((1, H, W, Cin), lambda n: (n, 0, 0, 0)),
            pl.BlockSpec((9, Cin, Cout), lambda n: (0, 0, 0)),
            pl.BlockSpec((1, Cout), lambda n: (0, 0)),
            pl.BlockSpec((9, Cout, Cout), lambda n: (0, 0, 0)),
            pl.BlockSpec((1, Cout), lambda n: (0, 0)),
            pl.BlockSpec((Cin, Cout), lambda n: (0, 0)),
            pl.BlockSpec((1, Cout), lambda n: (0, 0)),
        ],
        out_specs=pl.BlockSpec((1, H2 * W2, Cout), lambda n: (n, 0, 0)),
        scratch_shapes=[
            pltpu.VMEM((H + 2, W + 2 * _LPAD, Cin), jnp.float32),   # conv1 halo
            pltpu.VMEM((H + 2, W + 2 * _LPAD, Cout), jnp.float32),  # conv2 halo
            pltpu.VMEM((H2, 2 * W, Cout), jnp.float32),             # H-pool view
            pltpu.VMEM((H2 * W, Cout), jnp.float32),                # W-pool buffer
        ],
        compiler_params=pltpu.CompilerParams(
            dimension_semantics=("parallel",),
            vmem_limit_bytes=32 * 1024 * 1024,
        ),
    )(x, w1_t, b1r, w2_t, b2r, w0_t, b0r)

    out = out_flat.reshape(N, H2, W2, Cout)
    return jnp.transpose(out, (0, 3, 1, 2))                        # NHWC -> NCHW


# ----------------------------------------------------------------------------
# spectral norm (weight parametrization) — plain JAX glue, like torch's
# spectral_norm with n_power_iterations=1, eps=1e-6 (fresh u, no persisted buffer)
# ----------------------------------------------------------------------------
def spectral_normalize(w_oihw, key, eps=1e-6, n_iter=1):
    O = w_oihw.shape[0]
    wm = w_oihw.reshape(O, -1)
    u = jax.random.normal(key, (O,), dtype=w_oihw.dtype)
    u = u / (jnp.linalg.norm(u) + eps)
    v = None
    for _ in range(n_iter):
        v = wm.T @ u
        v = v / (jnp.linalg.norm(v) + eps)
        u = wm @ v
        u = u / (jnp.linalg.norm(u) + eps)
    sigma = u @ (wm @ v)
    return w_oihw / sigma


# ----------------------------------------------------------------------------
# pure-JAX reference (lax conv) for correctness check — same DiscBlock semantics
# ----------------------------------------------------------------------------
def _conv_ref(x_nhwc, w_oihw, b, padding):
    w_hwio = jnp.transpose(w_oihw, (2, 3, 1, 0))
    y = jax.lax.conv_general_dilated(
        x_nhwc, w_hwio, window_strides=(1, 1), padding=padding,
        dimension_numbers=("NHWC", "HWIO", "NHWC"))
    return y + b.reshape(1, 1, 1, -1)


def _avgpool2_ref(x_nhwc):
    N, H, W, C = x_nhwc.shape
    return x_nhwc.reshape(N, H // 2, 2, W // 2, 2, C).mean(axis=(2, 4))


def disc_block_ref(x_nchw, params, activation_fn="ReLU"):
    (w0, b0, w1, b1, w2, b2) = params
    x = jnp.transpose(x_nchw, (0, 2, 3, 1))
    a = _activate(x, activation_fn)
    x0 = a if activation_fn in _INPLACE_ACTS else x   # PyTorch inplace aliasing
    h = _conv_ref(a, w1, b1, "SAME")
    h = _activate(h, activation_fn)
    h = _conv_ref(h, w2, b2, "SAME")
    h = _avgpool2_ref(h)
    s = _conv_ref(x0, w0, b0, "VALID")
    s = _avgpool2_ref(s)
    return jnp.transpose(h + s, (0, 3, 1, 2))


# ----------------------------------------------------------------------------
if __name__ == "__main__":
    key = jax.random.PRNGKey(0)
    N, Cin, Cout, H, W = 2, 4, 8, 16, 16
    keys = jax.random.split(key, 8)

    x = jax.random.normal(keys[0], (N, Cin, H, W), jnp.float32)   # NCHW input

    # deterministic parameters (PyTorch OIHW conv layout)
    w0 = 0.2 * jax.random.normal(keys[1], (Cout, Cin, 1, 1), jnp.float32)
    b0 = 0.1 * jax.random.normal(keys[2], (Cout,), jnp.float32)
    w1 = 0.2 * jax.random.normal(keys[3], (Cout, Cin, 3, 3), jnp.float32)
    b1 = 0.1 * jax.random.normal(keys[4], (Cout,), jnp.float32)
    w2 = 0.2 * jax.random.normal(keys[5], (Cout, Cout, 3, 3), jnp.float32)
    b2 = 0.1 * jax.random.normal(keys[6], (Cout,), jnp.float32)

    sk = jax.random.split(keys[7], 3)
    w0 = spectral_normalize(w0, sk[0])
    w1 = spectral_normalize(w1, sk[1])
    w2 = spectral_normalize(w2, sk[2])
    params = (w0, b0, w1, b1, w2, b2)

    out = jax.block_until_ready(disc_block(x, params, activation_fn="ReLU"))
    assert out.shape == (N, Cout, H // 2, W // 2), out.shape

    ref = disc_block_ref(x, params, activation_fn="ReLU")
    np.testing.assert_allclose(np.asarray(out), np.asarray(ref),
                               atol=1e-4, rtol=1e-4)
    print("KERNEL_OK")
</pallas_src>

<mosaic_0001>
module attributes {stable_mosaic.version = 11 : i64} {
  func.func @_disc_block_kernel(%arg0: i32, %arg1: memref<1x16x16x4xf32, #tpu.memory_space<vmem>>, %arg2: memref<9x4x8xf32, #tpu.memory_space<vmem>>, %arg3: memref<1x8xf32, #tpu.memory_space<vmem>>, %arg4: memref<9x8x8xf32, #tpu.memory_space<vmem>>, %arg5: memref<1x8xf32, #tpu.memory_space<vmem>>, %arg6: memref<4x8xf32, #tpu.memory_space<vmem>>, %arg7: memref<1x8xf32, #tpu.memory_space<vmem>>, %arg8: memref<1x64x8xf32, #tpu.memory_space<vmem>>, %arg9: memref<18x32x4xf32, #tpu.memory_space<vmem>>, %arg10: memref<18x32x8xf32, #tpu.memory_space<vmem>>, %arg11: memref<8x32x8xf32, #tpu.memory_space<vmem>>, %arg12: memref<128x8xf32, #tpu.memory_space<vmem>>) attributes {dimension_semantics = [#tpu.dimension_semantics<parallel>], iteration_bounds = array<i64: 2>, scalar_prefetch = 0 : i64, scratch_operands = 4 : i64, tpu.core_type = #tpu.core_type<tc>, window_params = [{transform_indices = @transform_0, window_bounds = array<i64: 1, 16, 16, 4>}, {pipeline_mode = #tpu.pipeline_mode<synchronous>, transform_indices = @transform_1, window_bounds = array<i64: 9, 4, 8>}, {pipeline_mode = #tpu.pipeline_mode<synchronous>, transform_indices = @transform_2, window_bounds = array<i64: 1, 8>}, {pipeline_mode = #tpu.pipeline_mode<synchronous>, transform_indices = @transform_3, window_bounds = array<i64: 9, 8, 8>}, {pipeline_mode = #tpu.pipeline_mode<synchronous>, transform_indices = @transform_4, window_bounds = array<i64: 1, 8>}, {pipeline_mode = #tpu.pipeline_mode<synchronous>, transform_indices = @transform_5, window_bounds = array<i64: 4, 8>}, {pipeline_mode = #tpu.pipeline_mode<synchronous>, transform_indices = @transform_6, window_bounds = array<i64: 1, 8>}, {transform_indices = @transform_7, window_bounds = array<i64: 1, 64, 8>}]} {
    %c0 = arith.constant 0 : index
    %c0_0 = arith.constant 0 : index
    %c0_1 = arith.constant 0 : index
    %c0_2 = arith.constant 0 : index
    %0 = vector.load %arg1[%c0, %c0_0, %c0_1, %c0_2] : memref<1x16x16x4xf32, #tpu.memory_space<vmem>>, vector<1x16x16x4xf32>
    %1 = vector.shape_cast %0 : vector<1x16x16x4xf32> to vector<16x16x4xf32>
    %cst = arith.constant 0.000000e+00 : f32
    %2 = vector.broadcast %cst : f32 to vector<16x16x4xf32>
    %3 = arith.maximumf %1, %2 : vector<16x16x4xf32>
    %cst_3 = arith.constant 0.000000e+00 : f32
    %4 = vector.broadcast %cst_3 : f32 to vector<18x32x4xf32>
    %c0_4 = arith.constant 0 : index
    %c0_5 = arith.constant 0 : index
    %c0_6 = arith.constant 0 : index
    %5 = vector.load %arg9[%c0_4, %c0_5, %c0_6] : memref<18x32x4xf32, #tpu.memory_space<vmem>>, vector<18x32x4xf32>
    tpu.vector_store %arg9[%c0_4, %c0_5, %c0_6], %4 {strides = array<i32>} : memref<18x32x4xf32, #tpu.memory_space<vmem>>, vector<18x32x4xf32>,
    %c1 = arith.constant 1 : index
    %c8 = arith.constant 8 : index
    %c0_7 = arith.constant 0 : index
    %6 = vector.load %arg9[%c1, %c8, %c0_7] : memref<18x32x4xf32, #tpu.memory_space<vmem>>, vector<16x16x4xf32>
    tpu.vector_store %arg9[%c1, %c8, %c0_7], %3 {strides = array<i32>} : memref<18x32x4xf32, #tpu.memory_space<vmem>>, vector<16x16x4xf32>,
    %cst_8 = arith.constant 0.000000e+00 : f32
    %7 = vector.broadcast %cst_8 : f32 to vector<256x8xf32>
    %c0_9 = arith.constant 0 : index
    %c7 = arith.constant 7 : index
    %c0_10 = arith.constant 0 : index
    %8 = vector.load %arg9[%c0_9, %c7, %c0_10] : memref<18x32x4xf32, #tpu.memory_space<vmem>>, vector<16x16x4xf32>
    %9 = vector.shape_cast %8 : vector<16x16x4xf32> to vector<256x4xf32>
    %c0_11 = arith.constant 0 : index
    %c0_12 = arith.constant 0 : index
    %c0_13 = arith.constant 0 : index
    %10 = vector.load %arg2[%c0_11, %c0_12, %c0_13] : memref<9x4x8xf32, #tpu.memory_space<vmem>>, vector<1x4x8xf32>
    %11 = vector.shape_cast %10 : vector<1x4x8xf32> to vector<4x8xf32>
    %cst_14 = arith.constant dense<0.000000e+00> : vector<256x8xf32>
    %12 = tpu.matmul %9, %11, %cst_14 {dimension_numbers = #tpu.dot_dimension_numbers<[1], [0], [0], [1], [0, 0, 1, 1], [], []>} : vector<256x4xf32>, vector<4x8xf32>, vector<256x8xf32> -> vector<256x8xf32>
    %13 = arith.addf %7, %12 : vector<256x8xf32>
    %c0_15 = arith.constant 0 : index
    %c8_16 = arith.constant 8 : index
    %c0_17 = arith.constant 0 : index
    %14 = vector.load %arg9[%c0_15, %c8_16, %c0_17] : memref<18x32x4xf32, #tpu.memory_space<vmem>>, vector<16x16x4xf32>
    %15 = vector.shape_cast %14 : vector<16x16x4xf32> to vector<256x4xf32>
    %c1_18 = arith.constant 1 : index
    %c0_19 = arith.constant 0 : index
    %c0_20 = arith.constant 0 : index
    %16 = vector.load %arg2[%c1_18, %c0_19, %c0_20] : memref<9x4x8xf32, #tpu.memory_space<vmem>>, vector<1x4x8xf32>
    %17 = vector.shape_cast %16 : vector<1x4x8xf32> to vector<4x8xf32>
    %cst_21 = arith.constant dense<0.000000e+00> : vector<256x8xf32>
    %18 = tpu.matmul %15, %17, %cst_21 {dimension_numbers = #tpu.dot_dimension_numbers<[1], [0], [0], [1], [0, 0, 1, 1], [], []>} : vector<256x4xf32>, vector<4x8xf32>, vector<256x8xf32> -> vector<256x8xf32>
    %19 = arith.addf %13, %18 : vector<256x8xf32>
    %c0_22 = arith.constant 0 : index
    %c9 = arith.constant 9 : index
    %c0_23 = arith.constant 0 : index
    %20 = vector.load %arg9[%c0_22, %c9, %c0_23] : memref<18x32x4xf32, #tpu.memory_space<vmem>>, vector<16x16x4xf32>
    %21 = vector.shape_cast %20 : vector<16x16x4xf32> to vector<256x4xf32>
    %c2 = arith.constant 2 : index
    %c0_24 = arith.constant 0 : index
    %c0_25 = arith.constant 0 : index
    %22 = vector.load %arg2[%c2, %c0_24, %c0_25] : memref<9x4x8xf32, #tpu.memory_space<vmem>>, vector<1x4x8xf32>
    %23 = vector.shape_cast %22 : vector<1x4x8xf32> to vector<4x8xf32>
    %cst_26 = arith.constant dense<0.000000e+00> : vector<256x8xf32>
    %24 = tpu.matmul %21, %23, %cst_26 {dimension_numbers = #tpu.dot_dimension_numbers<[1], [0], [0], [1], [0, 0, 1, 1], [], []>} : vector<256x4xf32>, vector<4x8xf32>, vector<256x8xf32> -> vector<256x8xf32>
    %25 = arith.addf %19, %24 : vector<256x8xf32>
    %c1_27 = arith.constant 1 : index
    %c7_28 = arith.constant 7 : index
    %c0_29 = arith.constant 0 : index
    %26 = vector.load %arg9[%c1_27, %c7_28, %c0_29] : memref<18x32x4xf32, #tpu.memory_space<vmem>>, vector<16x16x4xf32>
    %27 = vector.shape_cast %26 : vector<16x16x4xf32> to vector<256x4xf32>
    %c3 = arith.constant 3 : index
    %c0_30 = arith.constant 0 : index
    %c0_31 = arith.constant 0 : index
    %28 = vector.load %arg2[%c3, %c0_30, %c0_31] : memref<9x4x8xf32, #tpu.memory_space<vmem>>, vector<1x4x8xf32>
    %29 = vector.shape_cast %28 : vector<1x4x8xf32> to vector<4x8xf32>
    %cst_32 = arith.constant dense<0.000000e+00> : vector<256x8xf32>
    %30 = tpu.matmul %27, %29, %cst_32 {dimension_numbers = #tpu.dot_dimension_numbers<[1], [0], [0], [1], [0, 0, 1, 1], [], []>} : vector<256x4xf32>, vector<4x8xf32>, vector<256x8xf32> -> vector<256x8xf32>
    %31 = arith.addf %25, %30 : vector<256x8xf32>
    %c1_33 = arith.constant 1 : index
    %c8_34 = arith.constant 8 : index
    %c0_35 = arith.constant 0 : index
    %32 = vector.load %arg9[%c1_33, %c8_34, %c0_35] : memref<18x32x4xf32, #tpu.memory_space<vmem>>, vector<16x16x4xf32>
    %33 = vector.shape_cast %32 : vector<16x16x4xf32> to vector<256x4xf32>
    %c4 = arith.constant 4 : index
    %c0_36 = arith.constant 0 : index
    %c0_37 = arith.constant 0 : index
    %34 = vector.load %arg2[%c4, %c0_36, %c0_37] : memref<9x4x8xf32, #tpu.memory_space<vmem>>, vector<1x4x8xf32>
    %35 = vector.shape_cast %34 : vector<1x4x8xf32> to vector<4x8xf32>
    %cst_38 = arith.constant dense<0.000000e+00> : vector<256x8xf32>
    %36 = tpu.matmul %33, %35, %cst_38 {dimension_numbers = #tpu.dot_dimension_numbers<[1], [0], [0], [1], [0, 0, 1, 1], [], []>} : vector<256x4xf32>, vector<4x8xf32>, vector<256x8xf32> -> vector<256x8xf32>
    %37 = arith.addf %31, %36 : vector<256x8xf32>
    %c1_39 = arith.constant 1 : index
    %c9_40 = arith.constant 9 : index
    %c0_41 = arith.constant 0 : index
    %38 = vector.load %arg9[%c1_39, %c9_40, %c0_41] : memref<18x32x4xf32, #tpu.memory_space<vmem>>, vector<16x16x4xf32>
    %39 = vector.shape_cast %38 : vector<16x16x4xf32> to vector<256x4xf32>
    %c5 = arith.constant 5 : index
    %c0_42 = arith.constant 0 : index
    %c0_43 = arith.constant 0 : index
    %40 = vector.load %arg2[%c5, %c0_42, %c0_43] : memref<9x4x8xf32, #tpu.memory_space<vmem>>, vector<1x4x8xf32>
    %41 = vector.shape_cast %40 : vector<1x4x8xf32> to vector<4x8xf32>
    %cst_44 = arith.constant dense<0.000000e+00> : vector<256x8xf32>
    %42 = tpu.matmul %39, %41, %cst_44 {dimension_numbers = #tpu.dot_dimension_numbers<[1], [0], [0], [1], [0, 0, 1, 1], [], []>} : vector<256x4xf32>, vector<4x8xf32>, vector<256x8xf32> -> vector<256x8xf32>
    %43 = arith.addf %37, %42 : vector<256x8xf32>
    %c2_45 = arith.constant 2 : index
    %c7_46 = arith.constant 7 : index
    %c0_47 = arith.constant 0 : index
    %44 = vector.load %arg9[%c2_45, %c7_46, %c0_47] : memref<18x32x4xf32, #tpu.memory_space<vmem>>, vector<16x16x4xf32>
    %45 = vector.shape_cast %44 : vector<16x16x4xf32> to vector<256x4xf32>
    %c6 = arith.constant 6 : index
    %c0_48 = arith.constant 0 : index
    %c0_49 = arith.constant 0 : index
    %46 = vector.load %arg2[%c6, %c0_48, %c0_49] : memref<9x4x8xf32, #tpu.memory_space<vmem>>, vector<1x4x8xf32>
    %47 = vector.shape_cast %46 : vector<1x4x8xf32> to vector<4x8xf32>
    %cst_50 = arith.constant dense<0.000000e+00> : vector<256x8xf32>
    %48 = tpu.matmul %45, %47, %cst_50 {dimension_numbers = #tpu.dot_dimension_numbers<[1], [0], [0], [1], [0, 0, 1, 1], [], []>} : vector<256x4xf32>, vector<4x8xf32>, vector<256x8xf32> -> vector<256x8xf32>
    %49 = arith.addf %43, %48 : vector<256x8xf32>
    %c2_51 = arith.constant 2 : index
    %c8_52 = arith.constant 8 : index
    %c0_53 = arith.constant 0 : index
    %50 = vector.load %arg9[%c2_51, %c8_52, %c0_53] : memref<18x32x4xf32, #tpu.memory_space<vmem>>, vector<16x16x4xf32>
    %51 = vector.shape_cast %50 : vector<16x16x4xf32> to vector<256x4xf32>
    %c7_54 = arith.constant 7 : index
    %c0_55 = arith.constant 0 : index
    %c0_56 = arith.constant 0 : index
    %52 = vector.load %arg2[%c7_54, %c0_55, %c0_56] : memref<9x4x8xf32, #tpu.memory_space<vmem>>, vector<1x4x8xf32>
    %53 = vector.shape_cast %52 : vector<1x4x8xf32> to vector<4x8xf32>
    %cst_57 = arith.constant dense<0.000000e+00> : vector<256x8xf32>
    %54 = tpu.matmul %51, %53, %cst_57 {dimension_numbers = #tpu.dot_dimension_numbers<[1], [0], [0], [1], [0, 0, 1, 1], [], []>} : vector<256x4xf32>, vector<4x8xf32>, vector<256x8xf32> -> vector<256x8xf32>
    %55 = arith.addf %49, %54 : vector<256x8xf32>
    %c2_58 = arith.constant 2 : index
    %c9_59 = arith.constant 9 : index
    %c0_60 = arith.constant 0 : index
    %56 = vector.load %arg9[%c2_58, %c9_59, %c0_60] : memref<18x32x4xf32, #tpu.memory_space<vmem>>, vector<16x16x4xf32>
    %57 = vector.shape_cast %56 : vector<16x16x4xf32> to vector<256x4xf32>
    %c8_61 = arith.constant 8 : index
    %c0_62 = arith.constant 0 : index
    %c0_63 = arith.constant 0 : index
    %58 = vector.load %arg2[%c8_61, %c0_62, %c0_63] : memref<9x4x8xf32, #tpu.memory_space<vmem>>, vector<1x4x8xf32>
    %59 = vector.shape_cast %58 : vector<1x4x8xf32> to vector<4x8xf32>
    %cst_64 = arith.constant dense<0.000000e+00> : vector<256x8xf32>
    %60 = tpu.matmul %57, %59, %cst_64 {dimension_numbers = #tpu.dot_dimension_numbers<[1], [0], [0], [1], [0, 0, 1, 1], [], []>} : vector<256x4xf32>, vector<4x8xf32>, vector<256x8xf32> -> vector<256x8xf32>
    %61 = arith.addf %55, %60 : vector<256x8xf32>
    %c0_65 = arith.constant 0 : index
    %c0_66 = arith.constant 0 : index
    %62 = vector.load %arg3[%c0_65, %c0_66] : memref<1x8xf32, #tpu.memory_space<vmem>>, vector<1x8xf32>
    %63 = vector.broadcast %62 : vector<1x8xf32> to vector<256x8xf32>
    %64 = arith.addf %61, %63 : vector<256x8xf32>
    %cst_67 = arith.constant 0.000000e+00 : f32
    %65 = vector.broadcast %cst_67 : f32 to vector<256x8xf32>
    %66 = arith.maximumf %64, %65 : vector<256x8xf32>
    %67 = vector.shape_cast %66 : vector<256x8xf32> to vector<16x16x8xf32>
    %cst_68 = arith.constant 0.000000e+00 : f32
    %68 = vector.broadcast %cst_68 : f32 to vector<18x32x8xf32>
    %c0_69 = arith.constant 0 : index
    %c0_70 = arith.constant 0 : index
    %c0_71 = arith.constant 0 : index
    %69 = vector.load %arg10[%c0_69, %c0_70, %c0_71] : memref<18x32x8xf32, #tpu.memory_space<vmem>>, vector<18x32x8xf32>
    tpu.vector_store %arg10[%c0_69, %c0_70, %c0_71], %68 {strides = array<i32>} : memref<18x32x8xf32, #tpu.memory_space<vmem>>, vector<18x32x8xf32>,
    %c1_72 = arith.constant 1 : index
    %c8_73 = arith.constant 8 : index
    %c0_74 = arith.constant 0 : index
    %70 = vector.load %arg10[%c1_72, %c8_73, %c0_74] : memref<18x32x8xf32, #tpu.memory_space<vmem>>, vector<16x16x8xf32>
    tpu.vector_store %arg10[%c1_72, %c8_73, %c0_74], %67 {strides = array<i32>} : memref<18x32x8xf32, #tpu.memory_space<vmem>>, vector<16x16x8xf32>,
    %cst_75 = arith.constant 0.000000e+00 : f32
    %71 = vector.broadcast %cst_75 : f32 to vector<256x8xf32>
    %c0_76 = arith.constant 0 : index
    %c7_77 = arith.constant 7 : index
    %c0_78 = arith.constant 0 : index
    %72 = vector.load %arg10[%c0_76, %c7_77, %c0_78] : memref<18x32x8xf32, #tpu.memory_space<vmem>>, vector<16x16x8xf32>
    %73 = vector.shape_cast %72 : vector<16x16x8xf32> to vector<256x8xf32>
    %c0_79 = arith.constant 0 : index
    %c0_80 = arith.constant 0 : index
    %c0_81 = arith.constant 0 : index
    %74 = vector.load %arg4[%c0_79, %c0_80, %c0_81] : memref<9x8x8xf32, #tpu.memory_space<vmem>>, vector<1x8x8xf32>
    %75 = vector.shape_cast %74 : vector<1x8x8xf32> to vector<8x8xf32>
    %cst_82 = arith.constant dense<0.000000e+00> : vector<256x8xf32>
    %76 = tpu.matmul %73, %75, %cst_82 {dimension_numbers = #tpu.dot_dimension_numbers<[1], [0], [0], [1], [0, 0, 1, 1], [], []>} : vector<256x8xf32>, vector<8x8xf32>, vector<256x8xf32> -> vector<256x8xf32>
    %77 = arith.addf %71, %76 : vector<256x8xf32>
    %c0_83 = arith.constant 0 : index
    %c8_84 = arith.constant 8 : index
    %c0_85 = arith.constant 0 : index
    %78 = vector.load %arg10[%c0_83, %c8_84, %c0_85] : memref<18x32x8xf32, #tpu.memory_space<vmem>>, vector<16x16x8xf32>
    %79 = vector.shape_cast %78 : vector<16x16x8xf32> to vector<256x8xf32>
    %c1_86 = arith.constant 1 : index
    %c0_87 = arith.constant 0 : index
    %c0_88 = arith.constant 0 : index
    %80 = vector.load %arg4[%c1_86, %c0_87, %c0_88] : memref<9x8x8xf32, #tpu.memory_space<vmem>>, vector<1x8x8xf32>
    %81 = vector.shape_cast %80 : vector<1x8x8xf32> to vector<8x8xf32>
    %cst_89 = arith.constant dense<0.000000e+00> : vector<256x8xf32>
    %82 = tpu.matmul %79, %81, %cst_89 {dimension_numbers = #tpu.dot_dimension_numbers<[1], [0], [0], [1], [0, 0, 1, 1], [], []>} : vector<256x8xf32>, vector<8x8xf32>, vector<256x8xf32> -> vector<256x8xf32>
    %83 = arith.addf %77, %82 : vector<256x8xf32>
    %c0_90 = arith.constant 0 : index
    %c9_91 = arith.constant 9 : index
    %c0_92 = arith.constant 0 : index
    %84 = vector.load %arg10[%c0_90, %c9_91, %c0_92] : memref<18x32x8xf32, #tpu.memory_space<vmem>>, vector<16x16x8xf32>
    %85 = vector.shape_cast %84 : vector<16x16x8xf32> to vector<256x8xf32>
    %c2_93 = arith.constant 2 : index
    %c0_94 = arith.constant 0 : index
    %c0_95 = arith.constant 0 : index
    %86 = vector.load %arg4[%c2_93, %c0_94, %c0_95] : memref<9x8x8xf32, #tpu.memory_space<vmem>>, vector<1x8x8xf32>
    %87 = vector.shape_cast %86 : vector<1x8x8xf32> to vector<8x8xf32>
    %cst_96 = arith.constant dense<0.000000e+00> : vector<256x8xf32>
    %88 = tpu.matmul %85, %87, %cst_96 {dimension_numbers = #tpu.dot_dimension_numbers<[1], [0], [0], [1], [0, 0, 1, 1], [], []>} : vector<256x8xf32>, vector<8x8xf32>, vector<256x8xf32> -> vector<256x8xf32>
    %89 = arith.addf %83, %88 : vector<256x8xf32>
    %c1_97 = arith.constant 1 : index
    %c7_98 = arith.constant 7 : index
    %c0_99 = arith.constant 0 : index
    %90 = vector.load %arg10[%c1_97, %c7_98, %c0_99] : memref<18x32x8xf32, #tpu.memory_space<vmem>>, vector<16x16x8xf32>
    %91 = vector.shape_cast %90 : vector<16x16x8xf32> to vector<256x8xf32>
    %c3_100 = arith.constant 3 : index
    %c0_101 = arith.constant 0 : index
    %c0_102 = arith.constant 0 : index
    %92 = vector.load %arg4[%c3_100, %c0_101, %c0_102] : memref<9x8x8xf32, #tpu.memory_space<vmem>>, vector<1x8x8xf32>
    %93 = vector.shape_cast %92 : vector<1x8x8xf32> to vector<8x8xf32>
    %cst_103 = arith.constant dense<0.000000e+00> : vector<256x8xf32>
    %94 = tpu.matmul %91, %93, %cst_103 {dimension_numbers = #tpu.dot_dimension_numbers<[1], [0], [0], [1], [0, 0, 1, 1], [], []>} : vector<256x8xf32>, vector<8x8xf32>, vector<256x8xf32> -> vector<256x8xf32>
    %95 = arith.addf %89, %94 : vector<256x8xf32>
    %c1_104 = arith.constant 1 : index
    %c8_105 = arith.constant 8 : index
    %c0_106 = arith.constant 0 : index
    %96 = vector.load %arg10[%c1_104, %c8_105, %c0_106] : memref<18x32x8xf32, #tpu.memory_space<vmem>>, vector<16x16x8xf32>
    %97 = vector.shape_cast %96 : vector<16x16x8xf32> to vector<256x8xf32>
    %c4_107 = arith.constant 4 : index
    %c0_108 = arith.constant 0 : index
    %c0_109 = arith.constant 0 : index
    %98 = vector.load %arg4[%c4_107, %c0_108, %c0_109] : memref<9x8x8xf32, #tpu.memory_space<vmem>>, vector<1x8x8xf32>
    %99 = vector.shape_cast %98 : vector<1x8x8xf32> to vector<8x8xf32>
    %cst_110 = arith.constant dense<0.000000e+00> : vector<256x8xf32>
    %100 = tpu.matmul %97, %99, %cst_110 {dimension_numbers = #tpu.dot_dimension_numbers<[1], [0], [0], [1], [0, 0, 1, 1], [], []>} : vector<256x8xf32>, vector<8x8xf32>, vector<256x8xf32> -> vector<256x8xf32>
    %101 = arith.addf %95, %100 : vector<256x8xf32>
    %c1_111 = arith.constant 1 : index
    %c9_112 = arith.constant 9 : index
    %c0_113 = arith.constant 0 : index
    %102 = vector.load %arg10[%c1_111, %c9_112, %c0_113] : memref<18x32x8xf32, #tpu.memory_space<vmem>>, vector<16x16x8xf32>
    %103 = vector.shape_cast %102 : vector<16x16x8xf32> to vector<256x8xf32>
    %c5_114 = arith.constant 5 : index
    %c0_115 = arith.constant 0 : index
    %c0_116 = arith.constant 0 : index
    %104 = vector.load %arg4[%c5_114, %c0_115, %c0_116] : memref<9x8x8xf32, #tpu.memory_space<vmem>>, vector<1x8x8xf32>
    %105 = vector.shape_cast %104 : vector<1x8x8xf32> to vector<8x8xf32>
    %cst_117 = arith.constant dense<0.000000e+00> : vector<256x8xf32>
    %106 = tpu.matmul %103, %105, %cst_117 {dimension_numbers = #tpu.dot_dimension_numbers<[1], [0], [0], [1], [0, 0, 1, 1], [], []>} : vector<256x8xf32>, vector<8x8xf32>, vector<256x8xf32> -> vector<256x8xf32>
    %107 = arith.addf %101, %106 : vector<256x8xf32>
    %c2_118 = arith.constant 2 : index
    %c7_119 = arith.constant 7 : index
    %c0_120 = arith.constant 0 : index
    %108 = vector.load %arg10[%c2_118, %c7_119, %c0_120] : memref<18x32x8xf32, #tpu.memory_space<vmem>>, vector<16x16x8xf32>
    %109 = vector.shape_cast %108 : vector<16x16x8xf32> to vector<256x8xf32>
    %c6_121 = arith.constant 6 : index
    %c0_122 = arith.constant 0 : index
    %c0_123 = arith.constant 0 : index
    %110 = vector.load %arg4[%c6_121, %c0_122, %c0_123] : memref<9x8x8xf32, #tpu.memory_space<vmem>>, vector<1x8x8xf32>
    %111 = vector.shape_cast %110 : vector<1x8x8xf32> to vector<8x8xf32>
    %cst_124 = arith.constant dense<0.000000e+00> : vector<256x8xf32>
    %112 = tpu.matmul %109, %111, %cst_124 {dimension_numbers = #tpu.dot_dimension_numbers<[1], [0], [0], [1], [0, 0, 1, 1], [], []>} : vector<256x8xf32>, vector<8x8xf32>, vector<256x8xf32> -> vector<256x8xf32>
    %113 = arith.addf %107, %112 : vector<256x8xf32>
    %c2_125 = arith.constant 2 : index
    %c8_126 = arith.constant 8 : index
    %c0_127 = arith.constant 0 : index
    %114 = vector.load %arg10[%c2_125, %c8_126, %c0_127] : memref<18x32x8xf32, #tpu.memory_space<vmem>>, vector<16x16x8xf32>
    %115 = vector.shape_cast %114 : vector<16x16x8xf32> to vector<256x8xf32>
    %c7_128 = arith.constant 7 : index
    %c0_129 = arith.constant 0 : index
    %c0_130 = arith.constant 0 : index
    %116 = vector.load %arg4[%c7_128, %c0_129, %c0_130] : memref<9x8x8xf32, #tpu.memory_space<vmem>>, vector<1x8x8xf32>
    %117 = vector.shape_cast %116 : vector<1x8x8xf32> to vector<8x8xf32>
    %cst_131 = arith.constant dense<0.000000e+00> : vector<256x8xf32>
    %118 = tpu.matmul %115, %117, %cst_131 {dimension_numbers = #tpu.dot_dimension_numbers<[1], [0], [0], [1], [0, 0, 1, 1], [], []>} : vector<256x8xf32>, vector<8x8xf32>, vector<256x8xf32> -> vector<256x8xf32>
    %119 = arith.addf %113, %118 : vector<256x8xf32>
    %c2_132 = arith.constant 2 : index
    %c9_133 = arith.constant 9 : index
    %c0_134 = arith.constant 0 : index
    %120 = vector.load %arg10[%c2_132, %c9_133, %c0_134] : memref<18x32x8xf32, #tpu.memory_space<vmem>>, vector<16x16x8xf32>
    %121 = vector.shape_cast %120 : vector<16x16x8xf32> to vector<256x8xf32>
    %c8_135 = arith.constant 8 : index
    %c0_136 = arith.constant 0 : index
    %c0_137 = arith.constant 0 : index
    %122 = vector.load %arg4[%c8_135, %c0_136, %c0_137] : memref<9x8x8xf32, #tpu.memory_space<vmem>>, vector<1x8x8xf32>
    %123 = vector.shape_cast %122 : vector<1x8x8xf32> to vector<8x8xf32>
    %cst_138 = arith.constant dense<0.000000e+00> : vector<256x8xf32>
    %124 = tpu.matmul %121, %123, %cst_138 {dimension_numbers = #tpu.dot_dimension_numbers<[1], [0], [0], [1], [0, 0, 1, 1], [], []>} : vector<256x8xf32>, vector<8x8xf32>, vector<256x8xf32> -> vector<256x8xf32>
    %125 = arith.addf %119, %124 : vector<256x8xf32>
    %c0_139 = arith.constant 0 : index
    %c0_140 = arith.constant 0 : index
    %126 = vector.load %arg5[%c0_139, %c0_140] : memref<1x8xf32, #tpu.memory_space<vmem>>, vector<1x8xf32>
    %127 = vector.broadcast %126 : vector<1x8xf32> to vector<256x8xf32>
    %128 = arith.addf %125, %127 : vector<256x8xf32>
    %129 = vector.shape_cast %3 : vector<16x16x4xf32> to vector<256x4xf32>
    %c0_141 = arith.constant 0 : index
    %c0_142 = arith.constant 0 : index
    %130 = vector.load %arg6[%c0_141, %c0_142] : memref<4x8xf32, #tpu.memory_space<vmem>>, vector<4x8xf32>
    %cst_143 = arith.constant dense<0.000000e+00> : vector<256x8xf32>
    %131 = tpu.matmul %129, %130, %cst_143 {dimension_numbers = #tpu.dot_dimension_numbers<[1], [0], [0], [1], [0, 0, 1, 1], [], []>} : vector<256x4xf32>, vector<4x8xf32>, vector<256x8xf32> -> vector<256x8xf32>
    %c0_144 = arith.constant 0 : index
    %c0_145 = arith.constant 0 : index
    %132 = vector.load %arg7[%c0_144, %c0_145] : memref<1x8xf32, #tpu.memory_space<vmem>>, vector<1x8xf32>
    %133 = vector.broadcast %132 : vector<1x8xf32> to vector<256x8xf32>
    %134 = arith.addf %131, %133 : vector<256x8xf32>
    %135 = arith.addf %128, %134 : vector<256x8xf32>
    %136 = vector.shape_cast %135 : vector<256x8xf32> to vector<8x32x8xf32>
    %c0_146 = arith.constant 0 : index
    %c0_147 = arith.constant 0 : index
    %c0_148 = arith.constant 0 : index
    %137 = vector.load %arg11[%c0_146, %c0_147, %c0_148] : memref<8x32x8xf32, #tpu.memory_space<vmem>>, vector<8x32x8xf32>
    tpu.vector_store %arg11[%c0_146, %c0_147, %c0_148], %136 {strides = array<i32>} : memref<8x32x8xf32, #tpu.memory_space<vmem>>, vector<8x32x8xf32>,
    %c0_149 = arith.constant 0 : index
    %c0_150 = arith.constant 0 : index
    %c0_151 = arith.constant 0 : index
    %138 = vector.load %arg11[%c0_149, %c0_150, %c0_151] : memref<8x32x8xf32, #tpu.memory_space<vmem>>, vector<8x16x8xf32>
    %c0_152 = arith.constant 0 : index
    %c16 = arith.constant 16 : index
    %c0_153 = arith.constant 0 : index
    %139 = vector.load %arg11[%c0_152, %c16, %c0_153] : memref<8x32x8xf32, #tpu.memory_space<vmem>>, vector<8x16x8xf32>
    %140 = arith.addf %138, %139 : vector<8x16x8xf32>
    %141 = vector.shape_cast %140 : vector<8x16x8xf32> to vector<128x8xf32>
    %c0_154 = arith.constant 0 : index
    %c0_155 = arith.constant 0 : index
    %142 = vector.load %arg12[%c0_154, %c0_155] : memref<128x8xf32, #tpu.memory_space<vmem>>, vector<128x8xf32>
    tpu.vector_store %arg12[%c0_154, %c0_155], %141 {strides = array<i32>} : memref<128x8xf32, #tpu.memory_space<vmem>>, vector<128x8xf32>,
    %c0_156 = arith.constant 0 : index
    %c0_157 = arith.constant 0 : index
    %143 = tpu.strided_load %arg12[%c0_156, %c0_157] {strides = array<i32: 2, 1>} : memref<128x8xf32, #tpu.memory_space<vmem>>, vector<64x8xf32>
    %c1_158 = arith.constant 1 : index
    %c0_159 = arith.constant 0 : index
    %144 = tpu.strided_load %arg12[%c1_158, %c0_159] {strides = array<i32: 2, 1>} : memref<128x8xf32, #tpu.memory_space<vmem>>, vector<64x8xf32>
    %145 = arith.addf %143, %144 : vector<64x8xf32>
    %cst_160 = arith.constant 2.500000e-01 : f32
    %146 = vector.broadcast %cst_160 : f32 to vector<64x8xf32>
    %147 = arith.mulf %146, %145 : vector<64x8xf32>
    %c0_161 = arith.constant 0 : index
    %c0_162 = arith.constant 0 : index
    %c0_163 = arith.constant 0 : index
    %148 = vector.load %arg8[%c0_161, %c0_162, %c0_163] : memref<1x64x8xf32, #tpu.memory_space<vmem>>, vector<1x64x8xf32>
    %149 = vector.shape_cast %148 : vector<1x64x8xf32> to vector<64x8xf32>
    %150 = vector.shape_cast %147 : vector<64x8xf32> to vector<1x64x8xf32>
    tpu.vector_store %arg8[%c0_161, %c0_162, %c0_163], %150 {strides = array<i32>} : memref<1x64x8xf32, #tpu.memory_space<vmem>>, vector<1x64x8xf32>,
    return
  }
  func.func @transform_0(%arg0: i32) -> (i32, i32, i32, i32) {
    %c0_i32 = arith.constant 0 : i32
    %c0_i32_0 = arith.constant 0 : i32
    %c0_i32_1 = arith.constant 0 : i32
    %c0_i32_2 = arith.constant 0 : i32
    return %arg0, %c0_i32, %c0_i32_0, %c0_i32_1 : i32, i32, i32, i32
  }
  func.func @transform_1(%arg0: i32) -> (i32, i32, i32) {
    %c0_i32 = arith.constant 0 : i32
    %c0_i32_0 = arith.constant 0 : i32
    %c0_i32_1 = arith.constant 0 : i32
    %c0_i32_2 = arith.constant 0 : i32
    return %c0_i32, %c0_i32_0, %c0_i32_1 : i32, i32, i32
  }
  func.func @transform_2(%arg0: i32) -> (i32, i32) {
    %c0_i32 = arith.constant 0 : i32
    %c0_i32_0 = arith.constant 0 : i32
    %c0_i32_1 = arith.constant 0 : i32
    return %c0_i32, %c0_i32_0 : i32, i32
  }
  func.func @transform_3(%arg0: i32) -> (i32, i32, i32) {
    %c0_i32 = arith.constant 0 : i32
    %c0_i32_0 = arith.constant 0 : i32
    %c0_i32_1 = arith.constant 0 : i32
    %c0_i32_2 = arith.constant 0 : i32
    return %c0_i32, %c0_i32_0, %c0_i32_1 : i32, i32, i32
  }
  func.func @transform_4(%arg0: i32) -> (i32, i32) {
    %c0_i32 = arith.constant 0 : i32
    %c0_i32_0 = arith.constant 0 : i32
    %c0_i32_1 = arith.constant 0 : i32
    return %c0_i32, %c0_i32_0 : i32, i32
  }
  func.func @transform_5(%arg0: i32) -> (i32, i32) {
    %c0_i32 = arith.constant 0 : i32
    %c0_i32_0 = arith.constant 0 : i32
    %c0_i32_1 = arith.constant 0 : i32
    return %c0_i32, %c0_i32_0 : i32, i32
  }
  func.func @transform_6(%arg0: i32) -> (i32, i32) {
    %c0_i32 = arith.constant 0 : i32
    %c0_i32_0 = arith.constant 0 : i32
    %c0_i32_1 = arith.constant 0 : i32
    return %c0_i32, %c0_i32_0 : i32, i32
  }
  func.func @transform_7(%arg0: i32) -> (i32, i32, i32) {
    %c0_i32 = arith.constant 0 : i32
    %c0_i32_0 = arith.constant 0 : i32
    %c0_i32_1 = arith.constant 0 : i32
    return %arg0, %c0_i32, %c0_i32_0 : i32, i32, i32
  }
}

</mosaic_0001>

<llo_original>
// kernel: tpu_custom_call.1
$region0: #{tpu_custom_call.1}
  #allocation0 [shape = 'u32[]', space=smem, size = 0x4, offset = 0x4, fixed_abs, tag = 'smem constant byte address 0x4 - core index']
  #allocation1 [shape = 'u32[72,128]{1,0:T(1,128)}', space=vmem, size = 0x9000, scoped, tag = 'internal scratch']
  #allocation2 [shape = 'f32[18,32,4]{2,1,0:T(8,128)}', space=vmem, size = 0x48000, scoped, tag = 'scratch operand']
  #allocation3 [shape = 'f32[18,32,8]{2,1,0:T(8,128)}', space=vmem, size = 0x48000, scoped, tag = 'scratch operand']
  #allocation4 [shape = 'f32[8,32,8]{2,1,0:T(8,128)}', space=vmem, size = 0x20000, scoped, tag = 'scratch operand']
  #allocation5 [shape = 'f32[128,8]{1,0:T(8,128)}', space=vmem, size = 0x10000, scoped, tag = 'scratch operand']
  %s0 = inlined_call_operand.vmem [shape: f32[2,16,16,4], index: 0, kind: input, shape index: {}]
  %s1 = inlined_call_operand.vmem [shape: f32[9,4,8], index: 1, kind: input, shape index: {}]
  %s2 = inlined_call_operand.vmem [shape: f32[1,8], index: 2, kind: input, shape index: {}]
  %s3 = inlined_call_operand.vmem [shape: f32[9,8,8], index: 3, kind: input, shape index: {}]
  %s4 = inlined_call_operand.vmem [shape: f32[1,8], index: 4, kind: input, shape index: {}]
  %s5 = inlined_call_operand.vmem [shape: f32[4,8], index: 5, kind: input, shape index: {}]
  %s6 = inlined_call_operand.vmem [shape: f32[1,8], index: 6, kind: input, shape index: {}]
  %s7 = inlined_call_operand.vmem [shape: f32[2,64,8], index: 7, kind: output, shape index: {}]
  %s8 = sld [smem:[#allocation0]]
  $region61: #{tpu_custom_call.1} parent=0
    _
  %s10 = ssub.s32 1, %s8
  %s11 = scalar_select 0, %s10, %s8
  loop: start=0, step=1, limit=4
  $region2: #{tpu_custom_call.1} parent=0 // loop_pre_header
    _
  $region3: #{tpu_custom_call.1} parent=0 // loop_header
    %s13 = sphi 0, %s17
    %p14 = scmp.ge.s32.totalorder %s13, 4
    %s23 = sphi 0, %s25
    %s26 = sphi 0, %s23
    %s27 = sphi 0, %s26
    %s43 = sphi 0, %s27
    %s47 = sphi 0, %s47
    %s49 = sphi 0, %s47
    %s50 = sphi 0, %s49
    %s64 = sphi 0, %s50
    %s68 = sphi 0, %s68
    %s70 = sphi 0, %s68
    %s71 = sphi 0, %s70
    %s85 = sphi 0, %s71
    %s89 = sphi 0, %s89
    %s91 = sphi 0, %s89
    %s92 = sphi 0, %s91
    %s106 = sphi 0, %s92
    %s110 = sphi 0, %s110
    %s112 = sphi 0, %s110
    %s113 = sphi 0, %s112
    %s127 = sphi 0, %s113
    %s131 = sphi 0, %s131
    %s133 = sphi 0, %s131
    %s134 = sphi 0, %s133
    %s148 = sphi 0, %s134
    %s152 = sphi 0, %s152
    %s154 = sphi 0, %s152
    %s155 = sphi 0, %s154
    %s169 = sphi 0, %s155
    %s175 = sphi 0, %s177
    %s178 = sphi 0, %s175
    %s179 = sphi 0, %s178
    %s195 = sphi 0, %s179
  $region4: #{tpu_custom_call.1} parent=0 // loop_header_branch
    %16 = sbr.rel (%p14) target = $region8
  $region5: #{tpu_custom_call.1} parent=0 // loop_body
    %s18 = ssub.s32 %s13, 1
    %s19 = ssub.s32 %s13, 2
    %s20 = sadd.s32 %s13, 1
    %s21 = ssub.s32 %s13, %s20
    %p22 = scmp.eq.s32.totalorder %s21, 0
    %s24 = sadd.s32 %s23, 1
    %s25 = scalar_select %p22, %s23, %s24
    %p28 = pneg %p22
    %p29 = scmp.eq.s32.totalorder %s13, 1
    %p30 = por %p28, %p29
    %p31 = scmp.ne.s32.totalorder %s23, %s26
    %p32 = scmp.eq.s32.totalorder %s13, 0
    %p33 = por %p31, %p32
    %p34 = scmp.ne.s32.totalorder %s23, %s26
    %p35 = scmp.eq.s32.totalorder %s18, 1
    %p36 = por %p34, %p35
    %p37 = scmp.ne.s32.totalorder %s26, %s27
    %p38 = scmp.eq.s32.totalorder %s18, 0
    %p39 = por %p37, %p38
    %p40 = scmp.ne.s32.totalorder %s26, %s27
    %p41 = scmp.eq.s32.totalorder %s19, 1
    %p42 = por %p40, %p41
    %p44 = scmp.ne.s32.totalorder %s27, %s43
    %p45 = scmp.eq.s32.totalorder %s19, 0
    %p46 = por %p44, %p45
    %s48 = sadd.s32 %s47, 1
    %p51 = scmp.eq.s32.totalorder %s13, 1
    %p52 = scmp.ne.s32.totalorder %s47, %s49
    %p53 = scmp.eq.s32.totalorder %s13, 0
    %p54 = por %p52, %p53
    %p55 = scmp.ne.s32.totalorder %s47, %s49
    %p56 = scmp.eq.s32.totalorder %s18, 1
    %p57 = por %p55, %p56
    %p58 = scmp.ne.s32.totalorder %s49, %s50
    %p59 = scmp.eq.s32.totalorder %s18, 0
    %p60 = por %p58, %p59
    %p61 = scmp.ne.s32.totalorder %s49, %s50
    %p62 = scmp.eq.s32.totalorder %s19, 1
    %p63 = por %p61, %p62
    %p65 = scmp.ne.s32.totalorder %s50, %s64
    %p66 = scmp.eq.s32.totalorder %s19, 0
    %p67 = por %p65, %p66
    %s69 = sadd.s32 %s68, 1
    %p72 = scmp.eq.s32.totalorder %s13, 1
    %p73 = scmp.ne.s32.totalorder %s68, %s70
    %p74 = scmp.eq.s32.totalorder %s13, 0
    %p75 = por %p73, %p74
    %p76 = scmp.ne.s32.totalorder %s68, %s70
    %p77 = scmp.eq.s32.totalorder %s18, 1
    %p78 = por %p76, %p77
    %p79 = scmp.ne.s32.totalorder %s70, %s71
    %p80 = scmp.eq.s32.totalorder %s18, 0
    %p81 = por %p79, %p80
    %p82 = scmp.ne.s32.totalorder %s70, %s71
    %p83 = scmp.eq.s32.totalorder %s19, 1
    %p84 = por %p82, %p83
    %p86 = scmp.ne.s32.totalorder %s71, %s85
    %p87 = scmp.eq.s32.totalorder %s19, 0
    %p88 = por %p86, %p87
    %s90 = sadd.s32 %s89, 1
    %p93 = scmp.eq.s32.totalorder %s13, 1
    %p94 = scmp.ne.s32.totalorder %s89, %s91
    %p95 = scmp.eq.s32.totalorder %s13, 0
    %p96 = por %p94, %p95
    %p97 = scmp.ne.s32.totalorder %s89, %s91
    %p98 = scmp.eq.s32.totalorder %s18, 1
    %p99 = por %p97, %p98
    %p100 = scmp.ne.s32.totalorder %s91, %s92
    %p101 = scmp.eq.s32.totalorder %s18, 0
    %p102 = por %p100, %p101
    %p103 = scmp.ne.s32.totalorder %s91, %s92
    %p104 = scmp.eq.s32.totalorder %s19, 1
    %p105 = por %p103, %p104
    %p107 = scmp.ne.s32.totalorder %s92, %s106
    %p108 = scmp.eq.s32.totalorder %s19, 0
    %p109 = por %p107, %p108
    %s111 = sadd.s32 %s110, 1
    %p114 = scmp.eq.s32.totalorder %s13, 1
    %p115 = scmp.ne.s32.totalorder %s110, %s112
    %p116 = scmp.eq.s32.totalorder %s13, 0
    %p117 = por %p115, %p116
    %p118 = scmp.ne.s32.totalorder %s110, %s112
    %p119 = scmp.eq.s32.totalorder %s18, 1
    %p120 = por %p118, %p119
    %p121 = scmp.ne.s32.totalorder %s112, %s113
    %p122 = scmp.eq.s32.totalorder %s18, 0
    %p123 = por %p121, %p122
    %p124 = scmp.ne.s32.totalorder %s112, %s113
    %p125 = scmp.eq.s32.totalorder %s19, 1
    %p126 = por %p124, %p125
    %p128 = scmp.ne.s32.totalorder %s113, %s127
    %p129 = scmp.eq.s32.totalorder %s19, 0
    %p130 = por %p128, %p129
    %s132 = sadd.s32 %s131, 1
    %p135 = scmp.eq.s32.totalorder %s13, 1
    %p136 = scmp.ne.s32.totalorder %s131, %s133
    %p137 = scmp.eq.s32.totalorder %s13, 0
    %p138 = por %p136, %p137
    %p139 = scmp.ne.s32.totalorder %s131, %s133
    %p140 = scmp.eq.s32.totalorder %s18, 1
    %p141 = por %p139, %p140
    %p142 = scmp.ne.s32.totalorder %s133, %s134
    %p143 = scmp.eq.s32.totalorder %s18, 0
    %p144 = por %p142, %p143
    %p145 = scmp.ne.s32.totalorder %s133, %s134
    %p146 = scmp.eq.s32.totalorder %s19, 1
    %p147 = por %p145, %p146
    %p149 = scmp.ne.s32.totalorder %s134, %s148
    %p150 = scmp.eq.s32.totalorder %s19, 0
    %p151 = por %p149, %p150
    %s153 = sadd.s32 %s152, 1
    %p156 = scmp.eq.s32.totalorder %s13, 1
    %p157 = scmp.ne.s32.totalorder %s152, %s154
    %p158 = scmp.eq.s32.totalorder %s13, 0
    %p159 = por %p157, %p158
    %p160 = scmp.ne.s32.totalorder %s152, %s154
    %p161 = scmp.eq.s32.totalorder %s18, 1
    %p162 = por %p160, %p161
    %p163 = scmp.ne.s32.totalorder %s154, %s155
    %p164 = scmp.eq.s32.totalorder %s18, 0
    %p165 = por %p163, %p164
    %p166 = scmp.ne.s32.totalorder %s154, %s155
    %p167 = scmp.eq.s32.totalorder %s19, 1
    %p168 = por %p166, %p167
    %p170 = scmp.ne.s32.totalorder %s155, %s169
    %p171 = scmp.eq.s32.totalorder %s19, 0
    %p172 = por %p170, %p171
    %s173 = ssub.s32 %s13, %s20
    %p174 = scmp.eq.s32.totalorder %s173, 0
    %s176 = sadd.s32 %s175, 1
    %s177 = scalar_select %p174, %s175, %s176
    %p180 = pneg %p174
    %p181 = scmp.eq.s32.totalorder %s13, 1
    %p182 = por %p180, %p181
    %p183 = scmp.ne.s32.totalorder %s175, %s178
    %p184 = scmp.eq.s32.totalorder %s13, 0
    %p185 = por %p183, %p184
    %p186 = scmp.ne.s32.totalorder %s175, %s178
    %p187 = scmp.eq.s32.totalorder %s18, 1
    %p188 = por %p186, %p187
    %p189 = scmp.ne.s32.totalorder %s178, %s179
    %p190 = scmp.eq.s32.totalorder %s18, 0
    %p191 = por %p189, %p190
    %p192 = scmp.ne.s32.totalorder %s178, %s179
    %p193 = scmp.eq.s32.totalorder %s19, 1
    %p194 = por %p192, %p193
    %p196 = scmp.ne.s32.totalorder %s179, %s195
    %p197 = scmp.eq.s32.totalorder %s19, 0
    %p198 = por %p196, %p197
    %p199 = scmp.le.s32.totalorder 1, %s13
    %p200 = scmp.lt.s32.totalorder %s13, 3
    %p201 = pnand %p199, %p200
    %p202 = pneg %p201
    // Predicated region
    $region9: #{tpu_custom_call.1} parent=5 // pred_check
      _
    $region10: #{tpu_custom_call.1} parent=5 // pred_check_branch
      %204 = sbr.rel (%p201) target = $region12
    $region11: #{tpu_custom_call.1} parent=5 // pred_region
      %s205 = ssub.s32 %s13, 1
      // Predicated region
      $region13: #{tpu_custom_call.1} parent=11 // pred_check
        %p206 = pneg %p60
      $region14: #{tpu_custom_call.1} parent=11 // pred_check_branch
        %208 = sbr.rel (%p206) target = $region16
      $region15: #{tpu_custom_call.1} parent=11 // pred_region
        _
      $region16: #{tpu_custom_call.1} parent=11 // pred_fallthru
        _
      // Predicated region
      $region17: #{tpu_custom_call.1} parent=11 // pred_check
        %p209 = pneg %p81
      $region18: #{tpu_custom_call.1} parent=11 // pred_check_branch
        %211 = sbr.rel (%p209) target = $region20
      $region19: #{tpu_custom_call.1} parent=11 // pred_region
        _
      $region20: #{tpu_custom_call.1} parent=11 // pred_fallthru
        _
      // Predicated region
      $region21: #{tpu_custom_call.1} parent=11 // pred_check
        %p212 = pneg %p102
      $region22: #{tpu_custom_call.1} parent=11 // pred_check_branch
        %214 = sbr.rel (%p212) target = $region24
      $region23: #{tpu_custom_call.1} parent=11 // pred_region
        _
      $region24: #{tpu_custom_call.1} parent=11 // pred_fallthru
        _
      // Predicated region
      $region25: #{tpu_custom_call.1} parent=11 // pred_check
        %p215 = pneg %p123
      $region26: #{tpu_custom_call.1} parent=11 // pred_check_branch
        %217 = sbr.rel (%p215) target = $region28
      $region27: #{tpu_custom_call.1} parent=11 // pred_region
        _
      $region28: #{tpu_custom_call.1} parent=11 // pred_fallthru
        _
      // Predicated region
      $region29: #{tpu_custom_call.1} parent=11 // pred_check
        %p218 = pneg %p144
      $region30: #{tpu_custom_call.1} parent=11 // pred_check_branch
        %220 = sbr.rel (%p218) target = $region32
      $region31: #{tpu_custom_call.1} parent=11 // pred_region
        _
      $region32: #{tpu_custom_call.1} parent=11 // pred_fallthru
        _
      // Predicated region
      $region33: #{tpu_custom_call.1} parent=11 // pred_check
        %p221 = pneg %p165
      $region34: #{tpu_custom_call.1} parent=11 // pred_check_branch
        %223 = sbr.rel (%p221) target = $region36
      $region35: #{tpu_custom_call.1} parent=11 // pred_region
        _
      $region36: #{tpu_custom_call.1} parent=11 // pred_fallthru
        _
    $region12: #{tpu_custom_call.1} parent=5 // pred_fallthru
      _
    %p224 = scmp.lt.s32.totalorder %s13, 2
    // Predicated region
    $region37: #{tpu_custom_call.1} parent=5 // pred_check
      %p225 = pneg %p224
    $region38: #{tpu_custom_call.1} parent=5 // pred_check_branch
      %227 = sbr.rel (%p225) target = $region40
    $region39: #{tpu_custom_call.1} parent=5 // pred_region
      // Predicated region
      $region41: #{tpu_custom_call.1} parent=39 // pred_check
        %p228 = pneg %p33
      $region42: #{tpu_custom_call.1} parent=39 // pred_check_branch
        %230 = sbr.rel (%p228) target = $region44
      $region43: #{tpu_custom_call.1} parent=39 // pred_region
        %p231 = scmp.lt.s32.totalorder %s13, 1
        %s232 = scalar_select %p231, %s13, 1
        %s233 = smul.addr %s232, 32
        %s234 = smul.addr %s233, 8
        %s235 = scalar_lea.vmem %s0, %s234
      $region44: #{tpu_custom_call.1} parent=39 // pred_fallthru
        _
    $region40: #{tpu_custom_call.1} parent=5 // pred_fallthru
      _
    %p236 = scmp.le.s32.totalorder 1, %s13
    %p237 = scmp.lt.s32.totalorder %s13, 3
    %p238 = pnand %p236, %p237
    %p239 = pneg %p238
    // Predicated region
    $region45: #{tpu_custom_call.1} parent=5 // pred_check
      _
    $region46: #{tpu_custom_call.1} parent=5 // pred_check_branch
      %241 = sbr.rel (%p238) target = $region48
    $region47: #{tpu_custom_call.1} parent=5 // pred_region
      %s242 = ssub.s32 %s13, 1
      %p243 = scmp.lt.s32.totalorder %s18, 1
      %s244 = scalar_select %p243, %s18, 1
      %s245 = smul.addr %s244, 32
      %s246 = smul.addr %s245, 8
      %s247 = scalar_lea.vmem %s0, %s246
      %p248 = pneg %p39
      %p249 = pneg %p36
      %p250 = pneg %p60
      %p251 = pneg %p57
      %p252 = pneg %p81
      %p253 = pneg %p78
      %p254 = pneg %p102
      %p255 = pneg %p99
      %p256 = pneg %p123
      %p257 = pneg %p120
      %p258 = pneg %p144
      %p259 = pneg %p141
      %p260 = pneg %p165
      %p261 = pneg %p162
      %p262 = pneg %p191
      %p263 = pneg %p188
      %p264 = scmp.lt.s32.totalorder %s18, 1
      %s265 = scalar_select %p264, %s18, 1
      %s266 = smul.addr %s265, 8
      %s267 = smul.addr %s266, 8
      %s268 = scalar_lea.vmem %s7, %s267
      %p269 = scmp.lt.s32.totalorder %s18, 1
      %s270 = scalar_select %p269, %s18, 1
      %s271 = smul.addr %s270, 32
      %s272 = smul.addr %s271, 8
      %s273 = scalar_lea.vmem %s0, %s272
      %p274 = scmp.lt.s32.totalorder %s18, 1
      %s275 = scalar_select %p274, %s18, 1
      %s276 = smul.addr %s275, 8
      %s277 = smul.addr %s276, 8
      %s278 = scalar_lea.vmem %s7, %s277
      %v279 = vld [vmem:[%s273] sm:$0xff]
      %v280 = vld [vmem:[%s273 + $0x8] sm:$0xff]
      %v281 = vld [vmem:[%s273 + $0x10] sm:$0xff]
      %v282 = vld [vmem:[%s273 + $0x18] sm:$0xff]
      %v283 = vld [vmem:[%s273 + $0x20] sm:$0xff]
      %v284 = vld [vmem:[%s273 + $0x28] sm:$0xff]
      %v285 = vld [vmem:[%s273 + $0x30] sm:$0xff]
      %v286 = vld [vmem:[%s273 + $0x38] sm:$0xff]
      %v287 = vld [vmem:[%s273 + $0x40] sm:$0xff]
      %v288 = vld [vmem:[%s273 + $0x48] sm:$0xff]
      %v289 = vld [vmem:[%s273 + $0x50] sm:$0xff]
      %v290 = vld [vmem:[%s273 + $0x58] sm:$0xff]
      %v291 = vld [vmem:[%s273 + $0x60] sm:$0xff]
      %v292 = vld [vmem:[%s273 + $0x68] sm:$0xff]
      %v293 = vld [vmem:[%s273 + $0x70] sm:$0xff]
      %v294 = vld [vmem:[%s273 + $0x78] sm:$0xff]
      %v295 = vld [vmem:[%s273 + $0x80] sm:$0xff]
      %v296 = vld [vmem:[%s273 + $0x88] sm:$0xff]
      %v297 = vld [vmem:[%s273 + $0x90] sm:$0xff]
      %v298 = vld [vmem:[%s273 + $0x98] sm:$0xff]
      %v299 = vld [vmem:[%s273 + $0xa0] sm:$0xff]
      %v300 = vld [vmem:[%s273 + $0xa8] sm:$0xff]
      %v301 = vld [vmem:[%s273 + $0xb0] sm:$0xff]
      %v302 = vld [vmem:[%s273 + $0xb8] sm:$0xff]
      %v303 = vld [vmem:[%s273 + $0xc0] sm:$0xff]
      %v304 = vld [vmem:[%s273 + $0xc8] sm:$0xff]
      %v305 = vld [vmem:[%s273 + $0xd0] sm:$0xff]
      %v306 = vld [vmem:[%s273 + $0xd8] sm:$0xff]
      %v307 = vld [vmem:[%s273 + $0xe0] sm:$0xff]
      %v308 = vld [vmem:[%s273 + $0xe8] sm:$0xff]
      %v309 = vld [vmem:[%s273 + $0xf0] sm:$0xff]
      %v310 = vld [vmem:[%s273 + $0xf8] sm:$0xff]
      %v311 = vmax.f32 %v279, 0.0
      %v312 = vmax.f32 %v280, 0.0
      %v313 = vmax.f32 %v281, 0.0
      %v314 = vmax.f32 %v282, 0.0
      %v315 = vmax.f32 %v283, 0.0
      %v316 = vmax.f32 %v284, 0.0
      %v317 = vmax.f32 %v285, 0.0
      %v318 = vmax.f32 %v286, 0.0
      %v319 = vmax.f32 %v287, 0.0
      %v320 = vmax.f32 %v288, 0.0
      %v321 = vmax.f32 %v289, 0.0
      %v322 = vmax.f32 %v290, 0.0
      %v323 = vmax.f32 %v291, 0.0
      %v324 = vmax.f32 %v292, 0.0
      %v325 = vmax.f32 %v293, 0.0
      %v326 = vmax.f32 %v294, 0.0
      %v327 = vmax.f32 %v295, 0.0
      %v328 = vmax.f32 %v296, 0.0
      %v329 = vmax.f32 %v297, 0.0
      %v330 = vmax.f32 %v298, 0.0
      %v331 = vmax.f32 %v299, 0.0
      %v332 = vmax.f32 %v300, 0.0
      %v333 = vmax.f32 %v301, 0.0
      %v334 = vmax.f32 %v302, 0.0
      %v335 = vmax.f32 %v303, 0.0
      %v336 = vmax.f32 %v304, 0.0
      %v337 = vmax.f32 %v305, 0.0
      %v338 = vmax.f32 %v306, 0.0
      %v339 = vmax.f32 %v307, 0.0
      %v340 = vmax.f32 %v308, 0.0
      %v341 = vmax.f32 %v309, 0.0
      %v342 = vmax.f32 %v310, 0.0
      %vm343 = vcmask 31744
      %344 = vst.msk [vmem:[#allocation2] sm:$0xff] %vm343, 0.0
      %345 = vst.msk [vmem:[#allocation2 + $0x8] sm:$0xff] %vm343, 0.0
      %346 = vst.msk [vmem:[#allocation2 + $0x10] sm:$0xff] %vm343, 0.0
      %347 = vst.msk [vmem:[#allocation2 + $0x18] sm:$0xff] %vm343, 0.0
      %348 = vst.msk [vmem:[#allocation2 + $0x20] sm:$0xff] %vm343, 0.0
      %349 = vst.msk [vmem:[#allocation2 + $0x28] sm:$0xff] %vm343, 0.0
      %350 = vst.msk [vmem:[#allocation2 + $0x30] sm:$0xff] %vm343, 0.0
      %351 = vst.msk [vmem:[#allocation2 + $0x38] sm:$0xff] %vm343, 0.0
      %352 = vst.msk [vmem:[#allocation2 + $0x40] sm:$0xff] %vm343, 0.0
      %353 = vst.msk [vmem:[#allocation2 + $0x48] sm:$0xff] %vm343, 0.0
      %354 = vst.msk [vmem:[#allocation2 + $0x50] sm:$0xff] %vm343, 0.0
      %355 = vst.msk [vmem:[#allocation2 + $0x58] sm:$0xff] %vm343, 0.0
      %356 = vst.msk [vmem:[#allocation2 + $0x60] sm:$0xff] %vm343, 0.0
      %357 = vst.msk [vmem:[#allocation2 + $0x68] sm:$0xff] %vm343, 0.0
      %358 = vst.msk [vmem:[#allocation2 + $0x70] sm:$0xff] %vm343, 0.0
      %359 = vst.msk [vmem:[#allocation2 + $0x78] sm:$0xff] %vm343, 0.0
      %360 = vst.msk [vmem:[#allocation2 + $0x80] sm:$0xff] %vm343, 0.0
      %361 = vst.msk [vmem:[#allocation2 + $0x88] sm:$0xff] %vm343, 0.0
      %362 = vst.msk [vmem:[#allocation2 + $0x90] sm:$0xff] %vm343, 0.0
      %363 = vst.msk [vmem:[#allocation2 + $0x98] sm:$0xff] %vm343, 0.0
      %364 = vst.msk [vmem:[#allocation2 + $0xa0] sm:$0xff] %vm343, 0.0
      %365 = vst.msk [vmem:[#allocation2 + $0xa8] sm:$0xff] %vm343, 0.0
      %366 = vst.msk [vmem:[#allocation2 + $0xb0] sm:$0xff] %vm343, 0.0
      %367 = vst.msk [vmem:[#allocation2 + $0xb8] sm:$0xff] %vm343, 0.0
      %368 = vst.msk [vmem:[#allocation2 + $0xc0] sm:$0xff] %vm343, 0.0
      %369 = vst.msk [vmem:[#allocation2 + $0xc8] sm:$0xff] %vm343, 0.0
      %370 = vst.msk [vmem:[#allocation2 + $0xd0] sm:$0xff] %vm343, 0.0
      %371 = vst.msk [vmem:[#allocation2 + $0xd8] sm:$0xff] %vm343, 0.0
      %372 = vst.msk [vmem:[#allocation2 + $0xe0] sm:$0xff] %vm343, 0.0
      %373 = vst.msk [vmem:[#allocation2 + $0xe8] sm:$0xff] %vm343, 0.0
      %374 = vst.msk [vmem:[#allocation2 + $0xf0] sm:$0xff] %vm343, 0.0
      %375 = vst.msk [vmem:[#allocation2 + $0xf8] sm:$0xff] %vm343, 0.0
      %376 = vst.msk [vmem:[#allocation2 + $0x100] sm:$0xff] %vm343, 0.0
      %377 = vst.msk [vmem:[#allocation2 + $0x108] sm:$0xff] %vm343, 0.0
      %378 = vst.msk [vmem:[#allocation2 + $0x110] sm:$0xff] %vm343, 0.0
      %379 = vst.msk [vmem:[#allocation2 + $0x118] sm:$0xff] %vm343, 0.0
      %380 = vst.msk [vmem:[#allocation2 + $0x120] sm:$0xff] %vm343, 0.0
      %381 = vst.msk [vmem:[#allocation2 + $0x128] sm:$0xff] %vm343, 0.0
      %382 = vst.msk [vmem:[#allocation2 + $0x130] sm:$0xff] %vm343, 0.0
      %383 = vst.msk [vmem:[#allocation2 + $0x138] sm:$0xff] %vm343, 0.0
      %384 = vst.msk [vmem:[#allocation2 + $0x140] sm:$0xff] %vm343, 0.0
      %385 = vst.msk [vmem:[#allocation2 + $0x148] sm:$0xff] %vm343, 0.0
      %386 = vst.msk [vmem:[#allocation2 + $0x150] sm:$0xff] %vm343, 0.0
      %387 = vst.msk [vmem:[#allocation2 + $0x158] sm:$0xff] %vm343, 0.0
      %388 = vst.msk [vmem:[#allocation2 + $0x160] sm:$0xff] %vm343, 0.0
      %389 = vst.msk [vmem:[#allocation2 + $0x168] sm:$0xff] %vm343, 0.0
      %390 = vst.msk [vmem:[#allocation2 + $0x170] sm:$0xff] %vm343, 0.0
      %391 = vst.msk [vmem:[#allocation2 + $0x178] sm:$0xff] %vm343, 0.0
      %392 = vst.msk [vmem:[#allocation2 + $0x180] sm:$0xff] %vm343, 0.0
      %393 = vst.msk [vmem:[#allocation2 + $0x188] sm:$0xff] %vm343, 0.0
      %394 = vst.msk [vmem:[#allocation2 + $0x190] sm:$0xff] %vm343, 0.0
      %395 = vst.msk [vmem:[#allocation2 + $0x198] sm:$0xff] %vm343, 0.0
      %396 = vst.msk [vmem:[#allocation2 + $0x1a0] sm:$0xff] %vm343, 0.0
      %397 = vst.msk [vmem:[#allocation2 + $0x1a8] sm:$0xff] %vm343, 0.0
      %398 = vst.msk [vmem:[#allocation2 + $0x1b0] sm:$0xff] %vm343, 0.0
      %399 = vst.msk [vmem:[#allocation2 + $0x1b8] sm:$0xff] %vm343, 0.0
      %400 = vst.msk [vmem:[#allocation2 + $0x1c0] sm:$0xff] %vm343, 0.0
      %401 = vst.msk [vmem:[#allocation2 + $0x1c8] sm:$0xff] %vm343, 0.0
      %402 = vst.msk [vmem:[#allocation2 + $0x1d0] sm:$0xff] %vm343, 0.0
      %403 = vst.msk [vmem:[#allocation2 + $0x1d8] sm:$0xff] %vm343, 0.0
      %404 = vst.msk [vmem:[#allocation2 + $0x1e0] sm:$0xff] %vm343, 0.0
      %405 = vst.msk [vmem:[#allocation2 + $0x1e8] sm:$0xff] %vm343, 0.0
      %406 = vst.msk [vmem:[#allocation2 + $0x1f0] sm:$0xff] %vm343, 0.0
      %407 = vst.msk [vmem:[#allocation2 + $0x1f8] sm:$0xff] %vm343, 0.0
      %408 = vst.msk [vmem:[#allocation2 + $0x200] sm:$0xff] %vm343, 0.0
      %409 = vst.msk [vmem:[#allocation2 + $0x208] sm:$0xff] %vm343, 0.0
      %410 = vst.msk [vmem:[#allocation2 + $0x210] sm:$0xff] %vm343, 0.0
      %411 = vst.msk [vmem:[#allocation2 + $0x218] sm:$0xff] %vm343, 0.0
      %412 = vst.msk [vmem:[#allocation2 + $0x220] sm:$0xff] %vm343, 0.0
      %413 = vst.msk [vmem:[#allocation2 + $0x228] sm:$0xff] %vm343, 0.0
      %414 = vst.msk [vmem:[#allocation2 + $0x230] sm:$0xff] %vm343, 0.0
      %415 = vst.msk [vmem:[#allocation2 + $0x238] sm:$0xff] %vm343, 0.0
      %s416 = scalar_lea.vmem [#allocation2], 32
      %417 = vst.msk [vmem:[%s416 + $0x8] sm:$0xff] %vm343, %v311
      %418 = vst.msk [vmem:[%s416 + $0x10] sm:$0xff] %vm343, %v312
      %419 = vst.msk [vmem:[%s416 + $0x28] sm:$0xff] %vm343, %v313
      %420 = vst.msk [vmem:[%s416 + $0x30] sm:$0xff] %vm343, %v314
      %421 = vst.msk [vmem:[%s416 + $0x48] sm:$0xff] %vm343, %v315
      %422 = vst.msk [vmem:[%s416 + $0x50] sm:$0xff] %vm343, %v316
      %423 = vst.msk [vmem:[%s416 + $0x68] sm:$0xff] %vm343, %v317
      %424 = vst.msk [vmem:[%s416 + $0x70] sm:$0xff] %vm343, %v318
      %425 = vst.msk [vmem:[%s416 + $0x88] sm:$0xff] %vm343, %v319
      %426 = vst.msk [vmem:[%s416 + $0x90] sm:$0xff] %vm343, %v320
      %427 = vst.msk [vmem:[%s416 + $0xa8] sm:$0xff] %vm343, %v321
      %428 = vst.msk [vmem:[%s416 + $0xb0] sm:$0xff] %vm343, %v322
      %429 = vst.msk [vmem:[%s416 + $0xc8] sm:$0xff] %vm343, %v323
      %430 = vst.msk [vmem:[%s416 + $0xd0] sm:$0xff] %vm343, %v324
      %431 = vst.msk [vmem:[%s416 + $0xe8] sm:$0xff] %vm343, %v325
      %432 = vst.msk [vmem:[%s416 + $0xf0] sm:$0xff] %vm343, %v326
      %433 = vst.msk [vmem:[%s416 + $0x108] sm:$0xff] %vm343, %v327
      %434 = vst.msk [vmem:[%s416 + $0x110] sm:$0xff] %vm343, %v328
      %435 = vst.msk [vmem:[%s416 + $0x128] sm:$0xff] %vm343, %v329
      %436 = vst.msk [vmem:[%s416 + $0x130] sm:$0xff] %vm343, %v330
      %437 = vst.msk [vmem:[%s416 + $0x148] sm:$0xff] %vm343, %v331
      %438 = vst.msk [vmem:[%s416 + $0x150] sm:$0xff] %vm343, %v332
      %439 = vst.msk [vmem:[%s416 + $0x168] sm:$0xff] %vm343, %v333
      %440 = vst.msk [vmem:[%s416 + $0x170] sm:$0xff] %vm343, %v334
      %441 = vst.msk [vmem:[%s416 + $0x188] sm:$0xff] %vm343, %v335
      %442 = vst.msk [vmem:[%s416 + $0x190] sm:$0xff] %vm343, %v336
      %443 = vst.msk [vmem:[%s416 + $0x1a8] sm:$0xff] %vm343, %v337
      %444 = vst.msk [vmem:[%s416 + $0x1b0] sm:$0xff] %vm343, %v338
      %445 = vst.msk [vmem:[%s416 + $0x1c8] sm:$0xff] %vm343, %v339
      %446 = vst.msk [vmem:[%s416 + $0x1d0] sm:$0xff] %vm343, %v340
      %447 = vst.msk [vmem:[%s416 + $0x1e8] sm:$0xff] %vm343, %v341
      %448 = vst.msk [vmem:[%s416 + $0x1f0] sm:$0xff] %vm343, %v342
      %v449 = vld [vmem:[#allocation2 + $0x7] sm:$0xff]
      %v450 = vld [vmem:[#allocation2 + $0xf] sm:$0xff]
      %v451 = vld [vmem:[#allocation2 + $0x27] sm:$0xff]
      %v452 = vld [vmem:[#allocation2 + $0x2f] sm:$0xff]
      %v453 = vld [vmem:[#allocation2 + $0x47] sm:$0xff]
      %v454 = vld [vmem:[#allocation2 + $0x4f] sm:$0xff]
      %v455 = vld [vmem:[#allocation2 + $0x67] sm:$0xff]
      %v456 = vld [vmem:[#allocation2 + $0x6f] sm:$0xff]
      %v457 = vld [vmem:[#allocation2 + $0x87] sm:$0xff]
      %v458 = vld [vmem:[#allocation2 + $0x8f] sm:$0xff]
      %v459 = vld [vmem:[#allocation2 + $0xa7] sm:$0xff]
      %v460 = vld [vmem:[#allocation2 + $0xaf] sm:$0xff]
      %v461 = vld [vmem:[#allocation2 + $0xc7] sm:$0xff]
      %v462 = vld [vmem:[#allocation2 + $0xcf] sm:$0xff]
      %v463 = vld [vmem:[#allocation2 + $0xe7] sm:$0xff]
      %v464 = vld [vmem:[#allocation2 + $0xef] sm:$0xff]
      %v465 = vld [vmem:[#allocation2 + $0x107] sm:$0xff]
      %v466 = vld [vmem:[#allocation2 + $0x10f] sm:$0xff]
      %v467 = vld [vmem:[#allocation2 + $0x127] sm:$0xff]
      %v468 = vld [vmem:[#allocation2 + $0x12f] sm:$0xff]
      %v469 = vld [vmem:[#allocation2 + $0x147] sm:$0xff]
      %v470 = vld [vmem:[#allocation2 + $0x14f] sm:$0xff]
      %v471 = vld [vmem:[#allocation2 + $0x167] sm:$0xff]
      %v472 = vld [vmem:[#allocation2 + $0x16f] sm:$0xff]
      %v473 = vld [vmem:[#allocation2 + $0x187] sm:$0xff]
      %v474 = vld [vmem:[#allocation2 + $0x18f] sm:$0xff]
      %v475 = vld [vmem:[#allocation2 + $0x1a7] sm:$0xff]
      %v476 = vld [vmem:[#allocation2 + $0x1af] sm:$0xff]
      %v477 = vld [vmem:[#allocation2 + $0x1c7] sm:$0xff]
      %v478 = vld [vmem:[#allocation2 + $0x1cf] sm:$0xff]
      %v479 = vld [vmem:[#allocation2 + $0x1e7] sm:$0xff]
      %v480 = vld [vmem:[#allocation2 + $0x1ef] sm:$0xff]
      %v481 = vld [vmem:[%s1] sm:$0xf]
      %v482 = vld [vmem:[#allocation2 + $0x8] sm:$0xff]
      %v483 = vld [vmem:[#allocation2 + $0x10] sm:$0xff]
      %v484 = vld [vmem:[#allocation2 + $0x28] sm:$0xff]
      %v485 = vld [vmem:[#allocation2 + $0x30] sm:$0xff]
      %v486 = vld [vmem:[#allocation2 + $0x48] sm:$0xff]
      %v487 = vld [vmem:[#allocation2 + $0x50] sm:$0xff]
      %v488 = vld [vmem:[#allocation2 + $0x68] sm:$0xff]
      %v489 = vld [vmem:[#allocation2 + $0x70] sm:$0xff]
      %v490 = vld [vmem:[#allocation2 + $0x88] sm:$0xff]
      %v491 = vld [vmem:[#allocation2 + $0x90] sm:$0xff]
      %v492 = vld [vmem:[#allocation2 + $0xa8] sm:$0xff]
      %v493 = vld [vmem:[#allocation2 + $0xb0] sm:$0xff]
      %v494 = vld [vmem:[#allocation2 + $0xc8] sm:$0xff]
      %v495 = vld [vmem:[#allocation2 + $0xd0] sm:$0xff]
      %v496 = vld [vmem:[#allocation2 + $0xe8] sm:$0xff]
      %v497 = vld [vmem:[#allocation2 + $0xf0] sm:$0xff]
      %v498 = vld [vmem:[#allocation2 + $0x108] sm:$0xff]
      %v499 = vld [vmem:[#allocation2 + $0x110] sm:$0xff]
      %v500 = vld [vmem:[#allocation2 + $0x128] sm:$0xff]
      %v501 = vld [vmem:[#allocation2 + $0x130] sm:$0xff]
      %v502 = vld [vmem:[#allocation2 + $0x148] sm:$0xff]
      %v503 = vld [vmem:[#allocation2 + $0x150] sm:$0xff]
      %v504 = vld [vmem:[#allocation2 + $0x168] sm:$0xff]
      %v505 = vld [vmem:[#allocation2 + $0x170] sm:$0xff]
      %v506 = vld [vmem:[#allocation2 + $0x188] sm:$0xff]
      %v507 = vld [vmem:[#allocation2 + $0x190] sm:$0xff]
      %v508 = vld [vmem:[#allocation2 + $0x1a8] sm:$0xff]
      %v509 = vld [vmem:[#allocation2 + $0x1b0] sm:$0xff]
      %v510 = vld [vmem:[#allocation2 + $0x1c8] sm:$0xff]
      %v511 = vld [vmem:[#allocation2 + $0x1d0] sm:$0xff]
      %v512 = vld [vmem:[#allocation2 + $0x1e8] sm:$0xff]
      %v513 = vld [vmem:[#allocation2 + $0x1f0] sm:$0xff]
      %s514 = scalar_lea.vmem %s1, 4
      %v515 = vld [vmem:[%s514] sm:$0xf]
      %v517 = vsel %vm343, %v482, 0
      %v520 = vsel %vm343, %v483, 0
      %v523 = vsel %vm343, %v484, 0
      %v526 = vsel %vm343, %v485, 0
      %v529 = vsel %vm343, %v486, 0
      %v532 = vsel %vm343, %v487, 0
      %v535 = vsel %vm343, %v488, 0
      %v538 = vsel %vm343, %v489, 0
      %v541 = vsel %vm343, %v490, 0
      %v544 = vsel %vm343, %v491, 0
      %v547 = vsel %vm343, %v492, 0
      %v550 = vsel %vm343, %v493, 0
      %v553 = vsel %vm343, %v494, 0
      %v556 = vsel %vm343, %v495, 0
      %v559 = vsel %vm343, %v496, 0
      %v562 = vsel %vm343, %v497, 0
      %v565 = vsel %vm343, %v498, 0
      %v568 = vsel %vm343, %v499, 0
      %v571 = vsel %vm343, %v500, 0
      %v574 = vsel %vm343, %v501, 0
      %v577 = vsel %vm343, %v502, 0
      %v580 = vsel %vm343, %v503, 0
      %v583 = vsel %vm343, %v504, 0
      %v586 = vsel %vm343, %v505, 0
      %v589 = vsel %vm343, %v506, 0
      %v592 = vsel %vm343, %v507, 0
      %v595 = vsel %vm343, %v508, 0
      %v598 = vsel %vm343, %v509, 0
      %v601 = vsel %vm343, %v510, 0
      %v604 = vsel %vm343, %v511, 0
      %v607 = vsel %vm343, %v512, 0
      %v610 = vsel %vm343, %v513, 0
      %vm612 = vcmask 1043456
      %v614 = vsel %vm612, %v515, 0
      %616 = vmatpush.msra.mxu0 0.0
      %617 = vmatpush.msra.mxu0 0.0
      %618 = vmatpush.msra.mxu0 0.0
      %619 = vmatpush.msra.mxu0 0.0
      %620 = vmatpush.msra.mxu0 0.0
      %621 = vmatpush.msra.mxu0 0.0
      %622 = vmatpush.msra.mxu0 0.0
      %623 = vmatpush.msra.mxu0 0.0
      %624 = vmatpush.msra.mxu0 0.0
      %625 = vmatpush.msra.mxu0 0.0
      %626 = vmatpush.msra.mxu0 0.0
      %627 = vmatpush.msra.mxu0 0.0
      %628 = vmatpush.msra.mxu0 0.0
      %629 = vmatpush.msra.mxu0 0.0
      %630 = vmatpush.msra.mxu0 0.0
      %631 = vmatpush.msra.mxu0 %v614
      %632 = vmatmul.f32.gmra.mxu0 %v517
      %v633 = vpop.f32.mrf.mxu0
      %v634 = vadd.f32 0.0, %v633
      %635 = vmatmul.f32.gmra.mxu0 %v520
      %v636 = vpop.f32.mrf.mxu0
      %v637 = vadd.f32 0.0, %v636
      %638 = vmatmul.f32.gmra.mxu0 %v523
      %v639 = vpop.f32.mrf.mxu0
      %v640 = vadd.f32 0.0, %v639
      %641 = vmatmul.f32.gmra.mxu0 %v526
      %v642 = vpop.f32.mrf.mxu0
      %v643 = vadd.f32 0.0, %v642
      %644 = vmatmul.f32.gmra.mxu0 %v529
      %v645 = vpop.f32.mrf.mxu0
      %v646 = vadd.f32 0.0, %v645
      %647 = vmatmul.f32.gmra.mxu0 %v532
      %v648 = vpop.f32.mrf.mxu0
      %v649 = vadd.f32 0.0, %v648
      %650 = vmatmul.f32.gmra.mxu0 %v535
      %v651 = vpop.f32.mrf.mxu0
      %v652 = vadd.f32 0.0, %v651
      %653 = vmatmul.f32.gmra.mxu0 %v538
      %v654 = vpop.f32.mrf.mxu0
      %v655 = vadd.f32 0.0, %v654
      %656 = vmatmul.f32.gmra.mxu0 %v541
      %v657 = vpop.f32.mrf.mxu0
      %v658 = vadd.f32 0.0, %v657
      %659 = vmatmul.f32.gmra.mxu0 %v544
      %v660 = vpop.f32.mrf.mxu0
      %v661 = vadd.f32 0.0, %v660
      %662 = vmatmul.f32.gmra.mxu0 %v547
      %v663 = vpop.f32.mrf.mxu0
      %v664 = vadd.f32 0.0, %v663
      %665 = vmatmul.f32.gmra.mxu0 %v550
      %v666 = vpop.f32.mrf.mxu0
      %v667 = vadd.f32 0.0, %v666
      %668 = vmatmul.f32.gmra.mxu0 %v553
      %v669 = vpop.f32.mrf.mxu0
      %v670 = vadd.f32 0.0, %v669
      %671 = vmatmul.f32.gmra.mxu0 %v556
      %v672 = vpop.f32.mrf.mxu0
      %v673 = vadd.f32 0.0, %v672
      %674 = vmatmul.f32.gmra.mxu0 %v559
      %v675 = vpop.f32.mrf.mxu0
      %v676 = vadd.f32 0.0, %v675
      %677 = vmatmul.f32.gmra.mxu0 %v562
      %v678 = vpop.f32.mrf.mxu0
      %v679 = vadd.f32 0.0, %v678
      %680 = vmatmul.f32.gmra.mxu0 %v565
      %v681 = vpop.f32.mrf.mxu0
      %v682 = vadd.f32 0.0, %v681
      %683 = vmatmul.f32.gmra.mxu0 %v568
      %v684 = vpop.f32.mrf.mxu0
      %v685 = vadd.f32 0.0, %v684
      %686 = vmatmul.f32.gmra.mxu0 %v571
      %v687 = vpop.f32.mrf.mxu0
      %v688 = vadd.f32 0.0, %v687
      %689 = vmatmul.f32.gmra.mxu0 %v574
      %v690 = vpop.f32.mrf.mxu0
      %v691 = vadd.f32 0.0, %v690
      %692 = vmatmul.f32.gmra.mxu0 %v577
      %v693 = vpop.f32.mrf.mxu0
      %v694 = vadd.f32 0.0, %v693
      %695 = vmatmul.f32.gmra.mxu0 %v580
      %v696 = vpop.f32.mrf.mxu0
      %v697 = vadd.f32 0.0, %v696
      %698 = vmatmul.f32.gmra.mxu0 %v583
      %v699 = vpop.f32.mrf.mxu0
      %v700 = vadd.f32 0.0, %v699
      %701 = vmatmul.f32.gmra.mxu0 %v586
      %v702 = vpop.f32.mrf.mxu0
      %v703 = vadd.f32 0.0, %v702
      %704 = vmatmul.f32.gmra.mxu0 %v589
      %v705 = vpop.f32.mrf.mxu0
      %v706 = vadd.f32 0.0, %v705
      %707 = vmatmul.f32.gmra.mxu0 %v592
      %v708 = vpop.f32.mrf.mxu0
      %v709 = vadd.f32 0.0, %v708
      %710 = vmatmul.f32.gmra.mxu0 %v595
      %v711 = vpop.f32.mrf.mxu0
      %v712 = vadd.f32 0.0, %v711
      %713 = vmatmul.f32.gmra.mxu0 %v598
      %v714 = vpop.f32.mrf.mxu0
      %v715 = vadd.f32 0.0, %v714
      %716 = vmatmul.f32.gmra.mxu0 %v601
      %v717 = vpop.f32.mrf.mxu0
      %v718 = vadd.f32 0.0, %v717
      %719 = vmatmul.f32.gmra.mxu0 %v604
      %v720 = vpop.f32.mrf.mxu0
      %v721 = vadd.f32 0.0, %v720
      %722 = vmatmul.f32.gmra.mxu0 %v607
      %v723 = vpop.f32.mrf.mxu0
      %v724 = vadd.f32 0.0, %v723
      %725 = vmatmul.f32.gmra.mxu0 %v610
      %v726 = vpop.f32.mrf.mxu0
      %v727 = vadd.f32 0.0, %v726
      %728 = vdwg.mxu0
      %v730 = vsel %vm343, %v449, 0
      %v733 = vsel %vm343, %v450, 0
      %v736 = vsel %vm343, %v451, 0
      %v739 = vsel %vm343, %v452, 0
      %v742 = vsel %vm343, %v453, 0
      %v745 = vsel %vm343, %v454, 0
      %v748 = vsel %vm343, %v455, 0
      %v751 = vsel %vm343, %v456, 0
      %v754 = vsel %vm343, %v457, 0
      %v757 = vsel %vm343, %v458, 0
      %v760 = vsel %vm343, %v459, 0
      %v763 = vsel %vm343, %v460, 0
      %v766 = vsel %vm343, %v461, 0
      %v769 = vsel %vm343, %v462, 0
      %v772 = vsel %vm343, %v463, 0
      %v775 = vsel %vm343, %v464, 0
      %v778 = vsel %vm343, %v465, 0
      %v781 = vsel %vm343, %v466, 0
      %v784 = vsel %vm343, %v467, 0
      %v787 = vsel %vm343, %v468, 0
      %v790 = vsel %vm343, %v469, 0
      %v793 = vsel %vm343, %v470, 0
      %v796 = vsel %vm343, %v471, 0
      %v799 = vsel %vm343, %v472, 0
      %v802 = vsel %vm343, %v473, 0
      %v805 = vsel %vm343, %v474, 0
      %v808 = vsel %vm343, %v475, 0
      %v811 = vsel %vm343, %v476, 0
      %v814 = vsel %vm343, %v477, 0
      %v817 = vsel %vm343, %v478, 0
      %v820 = vsel %vm343, %v479, 0
      %v823 = vsel %vm343, %v480, 0
      %v826 = vsel %vm612, %v481, 0
      %828 = vmatpush.msra.mxu0 0.0
      %829 = vmatpush.msra.mxu0 0.0
      %830 = vmatpush.msra.mxu0 0.0
      %831 = vmatpush.msra.mxu0 0.0
      %832 = vmatpush.msra.mxu0 0.0
      %833 = vmatpush.msra.mxu0 0.0
      %834 = vmatpush.msra.mxu0 0.0
      %835 = vmatpush.msra.mxu0 0.0
      %836 = vmatpush.msra.mxu0 0.0
      %837 = vmatpush.msra.mxu0 0.0
      %838 = vmatpush.msra.mxu0 0.0
      %839 = vmatpush.msra.mxu0 0.0
      %840 = vmatpush.msra.mxu0 0.0
      %841 = vmatpush.msra.mxu0 0.0
      %842 = vmatpush.msra.mxu0 0.0
      %843 = vmatpush.msra.mxu0 %v826
      %844 = vmatmul.f32.gmra.mxu0 %v730
      %v845 = vpop.f32.mrf.mxu0
      %v846 = vadd.f32 %v634, %v845
      %847 = vmatmul.f32.gmra.mxu0 %v733
      %v848 = vpop.f32.mrf.mxu0
      %v849 = vadd.f32 %v637, %v848
      %850 = vmatmul.f32.gmra.mxu0 %v736
      %v851 = vpop.f32.mrf.mxu0
      %v852 = vadd.f32 %v640, %v851
      %853 = vmatmul.f32.gmra.mxu0 %v739
      %v854 = vpop.f32.mrf.mxu0
      %v855 = vadd.f32 %v643, %v854
      %856 = vmatmul.f32.gmra.mxu0 %v742
      %v857 = vpop.f32.mrf.mxu0
      %v858 = vadd.f32 %v646, %v857
      %859 = vmatmul.f32.gmra.mxu0 %v745
      %v860 = vpop.f32.mrf.mxu0
      %v861 = vadd.f32 %v649, %v860
      %862 = vmatmul.f32.gmra.mxu0 %v748
      %v863 = vpop.f32.mrf.mxu0
      %v864 = vadd.f32 %v652, %v863
      %865 = vmatmul.f32.gmra.mxu0 %v751
      %v866 = vpop.f32.mrf.mxu0
      %v867 = vadd.f32 %v655, %v866
      %868 = vmatmul.f32.gmra.mxu0 %v754
      %v869 = vpop.f32.mrf.mxu0
      %v870 = vadd.f32 %v658, %v869
      %871 = vmatmul.f32.gmra.mxu0 %v757
      %v872 = vpop.f32.mrf.mxu0
      %v873 = vadd.f32 %v661, %v872
      %874 = vmatmul.f32.gmra.mxu0 %v760
      %v875 = vpop.f32.mrf.mxu0
      %v876 = vadd.f32 %v664, %v875
      %877 = vmatmul.f32.gmra.mxu0 %v763
      %v878 = vpop.f32.mrf.mxu0
      %v879 = vadd.f32 %v667, %v878
      %880 = vmatmul.f32.gmra.mxu0 %v766
      %v881 = vpop.f32.mrf.mxu0
      %v882 = vadd.f32 %v670, %v881
      %883 = vmatmul.f32.gmra.mxu0 %v769
      %v884 = vpop.f32.mrf.mxu0
      %v885 = vadd.f32 %v673, %v884
      %886 = vmatmul.f32.gmra.mxu0 %v772
      %v887 = vpop.f32.mrf.mxu0
      %v888 = vadd.f32 %v676, %v887
      %889 = vmatmul.f32.gmra.mxu0 %v775
      %v890 = vpop.f32.mrf.mxu0
      %v891 = vadd.f32 %v679, %v890
      %892 = vmatmul.f32.gmra.mxu0 %v778
      %v893 = vpop.f32.mrf.mxu0
      %v894 = vadd.f32 %v682, %v893
      %895 = vmatmul.f32.gmra.mxu0 %v781
      %v896 = vpop.f32.mrf.mxu0
      %v897 = vadd.f32 %v685, %v896
      %898 = vmatmul.f32.gmra.mxu0 %v784
      %v899 = vpop.f32.mrf.mxu0
      %v900 = vadd.f32 %v688, %v899
      %901 = vmatmul.f32.gmra.mxu0 %v787
      %v902 = vpop.f32.mrf.mxu0
      %v903 = vadd.f32 %v691, %v902
      %904 = vmatmul.f32.gmra.mxu0 %v790
      %v905 = vpop.f32.mrf.mxu0
      %v906 = vadd.f32 %v694, %v905
      %907 = vmatmul.f32.gmra.mxu0 %v793
      %v908 = vpop.f32.mrf.mxu0
      %v909 = vadd.f32 %v697, %v908
      %910 = vmatmul.f32.gmra.mxu0 %v796
      %v911 = vpop.f32.mrf.mxu0
      %v912 = vadd.f32 %v700, %v911
      %913 = vmatmul.f32.gmra.mxu0 %v799
      %v914 = vpop.f32.mrf.mxu0
      %v915 = vadd.f32 %v703, %v914
      %916 = vmatmul.f32.gmra.mxu0 %v802
      %v917 = vpop.f32.mrf.mxu0
      %v918 = vadd.f32 %v706, %v917
      %919 = vmatmul.f32.gmra.mxu0 %v805
      %v920 = vpop.f32.mrf.mxu0
      %v921 = vadd.f32 %v709, %v920
      %922 = vmatmul.f32.gmra.mxu0 %v808
      %v923 = vpop.f32.mrf.mxu0
      %v924 = vadd.f32 %v712, %v923
      %925 = vmatmul.f32.gmra.mxu0 %v811
      %v926 = vpop.f32.mrf.mxu0
      %v927 = vadd.f32 %v715, %v926
      %928 = vmatmul.f32.gmra.mxu0 %v814
      %v929 = vpop.f32.mrf.mxu0
      %v930 = vadd.f32 %v718, %v929
      %931 = vmatmul.f32.gmra.mxu0 %v817
      %v932 = vpop.f32.mrf.mxu0
      %v933 = vadd.f32 %v721, %v932
      %934 = vmatmul.f32.gmra.mxu0 %v820
      %v935 = vpop.f32.mrf.mxu0
      %v936 = vadd.f32 %v724, %v935
      %937 = vmatmul.f32.gmra.mxu0 %v823
      %v938 = vpop.f32.mrf.mxu0
      %v939 = vadd.f32 %v727, %v938
      %940 = vdwg.mxu0
      %v941 = vld [vmem:[#allocation2 + $0x9] sm:$0xff]
      %v942 = vld [vmem:[#allocation2 + $0x11] sm:$0xff]
      %v943 = vld [vmem:[#allocation2 + $0x29] sm:$0xff]
      %v944 = vld [vmem:[#allocation2 + $0x31] sm:$0xff]
      %v945 = vld [vmem:[#allocation2 + $0x49] sm:$0xff]
      %v946 = vld [vmem:[#allocation2 + $0x51] sm:$0xff]
      %v947 = vld [vmem:[#allocation2 + $0x69] sm:$0xff]
      %v948 = vld [vmem:[#allocation2 + $0x71] sm:$0xff]
      %v949 = vld [vmem:[#allocation2 + $0x89] sm:$0xff]
      %v950 = vld [vmem:[#allocation2 + $0x91] sm:$0xff]
      %v951 = vld [vmem:[#allocation2 + $0xa9] sm:$0xff]
      %v952 = vld [vmem:[#allocation2 + $0xb1] sm:$0xff]
      %v953 = vld [vmem:[#allocation2 + $0xc9] sm:$0xff]
      %v954 = vld [vmem:[#allocation2 + $0xd1] sm:$0xff]
      %v955 = vld [vmem:[#allocation2 + $0xe9] sm:$0xff]
      %v956 = vld [vmem:[#allocation2 + $0xf1] sm:$0xff]
      %v957 = vld [vmem:[#allocation2 + $0x109] sm:$0xff]
      %v958 = vld [vmem:[#allocation2 + $0x111] sm:$0xff]
      %v959 = vld [vmem:[#allocation2 + $0x129] sm:$0xff]
      %v960 = vld [vmem:[#allocation2 + $0x131] sm:$0xff]
      %v961 = vld [vmem:[#allocation2 + $0x149] sm:$0xff]
      %v962 = vld [vmem:[#allocation2 + $0x151] sm:$0xff]
      %v963 = vld [vmem:[#allocation2 + $0x169] sm:$0xff]
      %v964 = vld [vmem:[#allocation2 + $0x171] sm:$0xff]
      %v965 = vld [vmem:[#allocation2 + $0x189] sm:$0xff]
      %v966 = vld [vmem:[#allocation2 + $0x191] sm:$0xff]
      %v967 = vld [vmem:[#allocation2 + $0x1a9] sm:$0xff]
      %v968 = vld [vmem:[#allocation2 + $0x1b1] sm:$0xff]
      %v969 = vld [vmem:[#allocation2 + $0x1c9] sm:$0xff]
      %v970 = vld [vmem:[#allocation2 + $0x1d1] sm:$0xff]
      %v971 = vld [vmem:[#allocation2 + $0x1e9] sm:$0xff]
      %v972 = vld [vmem:[#allocation2 + $0x1f1] sm:$0xff]
      %s973 = scalar_lea.vmem %s1, 8
      %v974 = vld [vmem:[%s973] sm:$0xf]
      %v976 = vsel %vm343, %v941, 0
      %v979 = vsel %vm343, %v942, 0
      %v982 = vsel %vm343, %v943, 0
      %v985 = vsel %vm343, %v944, 0
      %v988 = vsel %vm343, %v945, 0
      %v991 = vsel %vm343, %v946, 0
      %v994 = vsel %vm343, %v947, 0
      %v997 = vsel %vm343, %v948, 0
      %v1000 = vsel %vm343, %v949, 0
      %v1003 = vsel %vm343, %v950, 0
      %v1006 = vsel %vm343, %v951, 0
      %v1009 = vsel %vm343, %v952, 0
      %v1012 = vsel %vm343, %v953, 0
      %v1015 = vsel %vm343, %v954, 0
      %v1018 = vsel %vm343, %v955, 0
      %v1021 = vsel %vm343, %v956, 0
      %v1024 = vsel %vm343, %v957, 0
      %v1027 = vsel %vm343, %v958, 0
      %v1030 = vsel %vm343, %v959, 0
      %v1033 = vsel %vm343, %v960, 0
      %v1036 = vsel %vm343, %v961, 0
      %v1039 = vsel %vm343, %v962, 0
      %v1042 = vsel %vm343, %v963, 0
      %v1045 = vsel %vm343, %v964, 0
      %v1048 = vsel %vm343, %v965, 0
      %v1051 = vsel %vm343, %v966, 0
      %v1054 = vsel %vm343, %v967, 0
      %v1057 = vsel %vm343, %v968, 0
      %v1060 = vsel %vm343, %v969, 0
      %v1063 = vsel %vm343, %v970, 0
      %v1066 = vsel %vm343, %v971, 0
      %v1069 = vsel %vm343, %v972, 0
      %v1072 = vsel %vm612, %v974, 0
      %1074 = vmatpush.msra.mxu0 0.0
      %1075 = vmatpush.msra.mxu0 0.0
      %1076 = vmatpush.msra.mxu0 0.0
      %1077 = vmatpush.msra.mxu0 0.0
      %1078 = vmatpush.msra.mxu0 0.0
      %1079 = vmatpush.msra.mxu0 0.0
      %1080 = vmatpush.msra.mxu0 0.0
      %1081 = vmatpush.msra.mxu0 0.0
      %1082 = vmatpush.msra.mxu0 0.0
      %1083 = vmatpush.msra.mxu0 0.0
      %1084 = vmatpush.msra.mxu0 0.0
      %1085 = vmatpush.msra.mxu0 0.0
      %1086 = vmatpush.msra.mxu0 0.0
      %1087 = vmatpush.msra.mxu0 0.0
      %1088 = vmatpush.msra.mxu0 0.0
      %1089 = vmatpush.msra.mxu0 %v1072
      %1090 = vmatmul.f32.gmra.mxu0 %v976
      %v1091 = vpop.f32.mrf.mxu0
      %v1092 = vadd.f32 0.0, %v1091
      %1093 = vmatmul.f32.gmra.mxu0 %v979
      %v1094 = vpop.f32.mrf.mxu0
      %v1095 = vadd.f32 0.0, %v1094
      %1096 = vmatmul.f32.gmra.mxu0 %v982
      %v1097 = vpop.f32.mrf.mxu0
      %v1098 = vadd.f32 0.0, %v1097
      %1099 = vmatmul.f32.gmra.mxu0 %v985
      %v1100 = vpop.f32.mrf.mxu0
      %v1101 = vadd.f32 0.0, %v1100
      %1102 = vmatmul.f32.gmra.mxu0 %v988
      %v1103 = vpop.f32.mrf.mxu0
      %v1104 = vadd.f32 0.0, %v1103
      %1105 = vmatmul.f32.gmra.mxu0 %v991
      %v1106 = vpop.f32.mrf.mxu0
      %v1107 = vadd.f32 0.0, %v1106
      %1108 = vmatmul.f32.gmra.mxu0 %v994
      %v1109 = vpop.f32.mrf.mxu0
      %v1110 = vadd.f32 0.0, %v1109
      %1111 = vmatmul.f32.gmra.mxu0 %v997
      %v1112 = vpop.f32.mrf.mxu0
      %v1113 = vadd.f32 0.0, %v1112
      %1114 = vmatmul.f32.gmra.mxu0 %v1000
      %v1115 = vpop.f32.mrf.mxu0
      %v1116 = vadd.f32 0.0, %v1115
      %1117 = vmatmul.f32.gmra.mxu0 %v1003
      %v1118 = vpop.f32.mrf.mxu0
      %v1119 = vadd.f32 0.0, %v1118
      %1120 = vmatmul.f32.gmra.mxu0 %v1006
      %v1121 = vpop.f32.mrf.mxu0
      %v1122 = vadd.f32 0.0, %v1121
      %1123 = vmatmul.f32.gmra.mxu0 %v1009
      %v1124 = vpop.f32.mrf.mxu0
      %v1125 = vadd.f32 0.0, %v1124
      %1126 = vmatmul.f32.gmra.mxu0 %v1012
      %v1127 = vpop.f32.mrf.mxu0
      %v1128 = vadd.f32 0.0, %v1127
      %1129 = vmatmul.f32.gmra.mxu0 %v1015
      %v1130 = vpop.f32.mrf.mxu0
      %v1131 = vadd.f32 0.0, %v1130
      %1132 = vmatmul.f32.gmra.mxu0 %v1018
      %v1133 = vpop.f32.mrf.mxu0
      %v1134 = vadd.f32 0.0, %v1133
      %1135 = vmatmul.f32.gmra.mxu0 %v1021
      %v1136 = vpop.f32.mrf.mxu0
      %v1137 = vadd.f32 0.0, %v1136
      %1138 = vmatmul.f32.gmra.mxu0 %v1024
      %v1139 = vpop.f32.mrf.mxu0
      %v1140 = vadd.f32 0.0, %v1139
      %1141 = vmatmul.f32.gmra.mxu0 %v1027
      %v1142 = vpop.f32.mrf.mxu0
      %v1143 = vadd.f32 0.0, %v1142
      %1144 = vmatmul.f32.gmra.mxu0 %v1030
      %v1145 = vpop.f32.mrf.mxu0
      %v1146 = vadd.f32 0.0, %v1145
      %1147 = vmatmul.f32.gmra.mxu0 %v1033
      %v1148 = vpop.f32.mrf.mxu0
      %v1149 = vadd.f32 0.0, %v1148
      %1150 = vmatmul.f32.gmra.mxu0 %v1036
      %v1151 = vpop.f32.mrf.mxu0
      %v1152 = vadd.f32 0.0, %v1151
      %1153 = vmatmul.f32.gmra.mxu0 %v1039
      %v1154 = vpop.f32.mrf.mxu0
      %v1155 = vadd.f32 0.0, %v1154
      %1156 = vmatmul.f32.gmra.mxu0 %v1042
      %v1157 = vpop.f32.mrf.mxu0
      %v1158 = vadd.f32 0.0, %v1157
      %1159 = vmatmul.f32.gmra.mxu0 %v1045
      %v1160 = vpop.f32.mrf.mxu0
      %v1161 = vadd.f32 0.0, %v1160
      %1162 = vmatmul.f32.gmra.mxu0 %v1048
      %v1163 = vpop.f32.mrf.mxu0
      %v1164 = vadd.f32 0.0, %v1163
      %1165 = vmatmul.f32.gmra.mxu0 %v1051
      %v1166 = vpop.f32.mrf.mxu0
      %v1167 = vadd.f32 0.0, %v1166
      %1168 = vmatmul.f32.gmra.mxu0 %v1054
      %v1169 = vpop.f32.mrf.mxu0
      %v1170 = vadd.f32 0.0, %v1169
      %1171 = vmatmul.f32.gmra.mxu0 %v1057
      %v1172 = vpop.f32.mrf.mxu0
      %v1173 = vadd.f32 0.0, %v1172
      %1174 = vmatmul.f32.gmra.mxu0 %v1060
      %v1175 = vpop.f32.mrf.mxu0
      %v1176 = vadd.f32 0.0, %v1175
      %1177 = vmatmul.f32.gmra.mxu0 %v1063
      %v1178 = vpop.f32.mrf.mxu0
      %v1179 = vadd.f32 0.0, %v1178
      %1180 = vmatmul.f32.gmra.mxu0 %v1066
      %v1181 = vpop.f32.mrf.mxu0
      %v1182 = vadd.f32 0.0, %v1181
      %1183 = vmatmul.f32.gmra.mxu0 %v1069
      %v1184 = vpop.f32.mrf.mxu0
      %v1185 = vadd.f32 0.0, %v1184
      %1186 = vdwg.mxu0
      %v1187 = vadd.f32 %v846, %v1092
      %v1188 = vadd.f32 %v849, %v1095
      %v1189 = vadd.f32 %v852, %v1098
      %v1190 = vadd.f32 %v855, %v1101
      %v1191 = vadd.f32 %v858, %v1104
      %v1192 = vadd.f32 %v861, %v1107
      %v1193 = vadd.f32 %v864, %v1110
      %v1194 = vadd.f32 %v867, %v1113
      %v1195 = vadd.f32 %v870, %v1116
      %v1196 = vadd.f32 %v873, %v1119
      %v1197 = vadd.f32 %v876, %v1122
      %v1198 = vadd.f32 %v879, %v1125
      %v1199 = vadd.f32 %v882, %v1128
      %v1200 = vadd.f32 %v885, %v1131
      %v1201 = vadd.f32 %v888, %v1134
      %v1202 = vadd.f32 %v891, %v1137
      %v1203 = vadd.f32 %v894, %v1140
      %v1204 = vadd.f32 %v897, %v1143
      %v1205 = vadd.f32 %v900, %v1146
      %v1206 = vadd.f32 %v903, %v1149
      %v1207 = vadd.f32 %v906, %v1152
      %v1208 = vadd.f32 %v909, %v1155
      %v1209 = vadd.f32 %v912, %v1158
      %v1210 = vadd.f32 %v915, %v1161
      %v1211 = vadd.f32 %v918, %v1164
      %v1212 = vadd.f32 %v921, %v1167
      %v1213 = vadd.f32 %v924, %v1170
      %v1214 = vadd.f32 %v927, %v1173
      %v1215 = vadd.f32 %v930, %v1176
      %v1216 = vadd.f32 %v933, %v1179
      %v1217 = vadd.f32 %v936, %v1182
      %v1218 = vadd.f32 %v939, %v1185
      %v1219 = vld [vmem:[%s416 + $0x7] sm:$0xff]
      %v1220 = vld [vmem:[%s416 + $0xf] sm:$0xff]
      %v1221 = vld [vmem:[%s416 + $0x27] sm:$0xff]
      %v1222 = vld [vmem:[%s416 + $0x2f] sm:$0xff]
      %v1223 = vld [vmem:[%s416 + $0x47] sm:$0xff]
      %v1224 = vld [vmem:[%s416 + $0x4f] sm:$0xff]
      %v1225 = vld [vmem:[%s416 + $0x67] sm:$0xff]
      %v1226 = vld [vmem:[%s416 + $0x6f] sm:$0xff]
      %v1227 = vld [vmem:[%s416 + $0x87] sm:$0xff]
      %v1228 = vld [vmem:[%s416 + $0x8f] sm:$0xff]
      %v1229 = vld [vmem:[%s416 + $0xa7] sm:$0xff]
      %v1230 = vld [vmem:[%s416 + $0xaf] sm:$0xff]
      %v1231 = vld [vmem:[%s416 + $0xc7] sm:$0xff]
      %v1232 = vld [vmem:[%s416 + $0xcf] sm:$0xff]
      %v1233 = vld [vmem:[%s416 + $0xe7] sm:$0xff]
      %v1234 = vld [vmem:[%s416 + $0xef] sm:$0xff]
      %v1235 = vld [vmem:[%s416 + $0x107] sm:$0xff]
      %v1236 = vld [vmem:[%s416 + $0x10f] sm:$0xff]
      %v1237 = vld [vmem:[%s416 + $0x127] sm:$0xff]
      %v1238 = vld [vmem:[%s416 + $0x12f] sm:$0xff]
      %v1239 = vld [vmem:[%s416 + $0x147] sm:$0xff]
      %v1240 = vld [vmem:[%s416 + $0x14f] sm:$0xff]
      %v1241 = vld [vmem:[%s416 + $0x167] sm:$0xff]
      %v1242 = vld [vmem:[%s416 + $0x16f] sm:$0xff]
      %v1243 = vld [vmem:[%s416 + $0x187] sm:$0xff]
      %v1244 = vld [vmem:[%s416 + $0x18f] sm:$0xff]
      %v1245 = vld [vmem:[%s416 + $0x1a7] sm:$0xff]
      %v1246 = vld [vmem:[%s416 + $0x1af] sm:$0xff]
      %v1247 = vld [vmem:[%s416 + $0x1c7] sm:$0xff]
      %v1248 = vld [vmem:[%s416 + $0x1cf] sm:$0xff]
      %v1249 = vld [vmem:[%s416 + $0x1e7] sm:$0xff]
      %v1250 = vld [vmem:[%s416 + $0x1ef] sm:$0xff]
      %s1251 = scalar_lea.vmem %s1, 12
      %v1252 = vld [vmem:[%s1251] sm:$0xf]
      %v1254 = vsel %vm343, %v1219, 0
      %v1257 = vsel %vm343, %v1220, 0
      %v1260 = vsel %vm343, %v1221, 0
      %v1263 = vsel %vm343, %v1222, 0
      %v1266 = vsel %vm343, %v1223, 0
      %v1269 = vsel %vm343, %v1224, 0
      %v1272 = vsel %vm343, %v1225, 0
      %v1275 = vsel %vm343, %v1226, 0
      %v1278 = vsel %vm343, %v1227, 0
      %v1281 = vsel %vm343, %v1228, 0
      %v1284 = vsel %vm343, %v1229, 0
      %v1287 = vsel %vm343, %v1230, 0
      %v1290 = vsel %vm343, %v1231, 0
      %v1293 = vsel %vm343, %v1232, 0
      %v1296 = vsel %vm343, %v1233, 0
      %v1299 = vsel %vm343, %v1234, 0
      %v1302 = vsel %vm343, %v1235, 0
      %v1305 = vsel %vm343, %v1236, 0
      %v1308 = vsel %vm343, %v1237, 0
      %v1311 = vsel %vm343, %v1238, 0
      %v1314 = vsel %vm343, %v1239, 0
      %v1317 = vsel %vm343, %v1240, 0
      %v1320 = vsel %vm343, %v1241, 0
      %v1323 = vsel %vm343, %v1242, 0
      %v1326 = vsel %vm343, %v1243, 0
      %v1329 = vsel %vm343, %v1244, 0
      %v1332 = vsel %vm343, %v1245, 0
      %v1335 = vsel %vm343, %v1246, 0
      %v1338 = vsel %vm343, %v1247, 0
      %v1341 = vsel %vm343, %v1248, 0
      %v1344 = vsel %vm343, %v1249, 0
      %v1347 = vsel %vm343, %v1250, 0
      %v1350 = vsel %vm612, %v1252, 0
      %1352 = vmatpush.msra.mxu0 0.0
      %1353 = vmatpush.msra.mxu0 0.0
      %1354 = vmatpush.msra.mxu0 0.0
      %1355 = vmatpush.msra.mxu0 0.0
      %1356 = vmatpush.msra.mxu0 0.0
      %1357 = vmatpush.msra.mxu0 0.0
      %1358 = vmatpush.msra.mxu0 0.0
      %1359 = vmatpush.msra.mxu0 0.0
      %1360 = vmatpush.msra.mxu0 0.0
      %1361 = vmatpush.msra.mxu0 0.0
      %1362 = vmatpush.msra.mxu0 0.0
      %1363 = vmatpush.msra.mxu0 0.0
      %1364 = vmatpush.msra.mxu0 0.0
      %1365 = vmatpush.msra.mxu0 0.0
      %1366 = vmatpush.msra.mxu0 0.0
      %1367 = vmatpush.msra.mxu0 %v1350
      %1368 = vmatmul.f32.gmra.mxu0 %v1254
      %v1369 = vpop.f32.mrf.mxu0
      %v1370 = vadd.f32 0.0, %v1369
      %1371 = vmatmul.f32.gmra.mxu0 %v1257
      %v1372 = vpop.f32.mrf.mxu0
      %v1373 = vadd.f32 0.0, %v1372
      %1374 = vmatmul.f32.gmra.mxu0 %v1260
      %v1375 = vpop.f32.mrf.mxu0
      %v1376 = vadd.f32 0.0, %v1375
      %1377 = vmatmul.f32.gmra.mxu0 %v1263
      %v1378 = vpop.f32.mrf.mxu0
      %v1379 = vadd.f32 0.0, %v1378
      %1380 = vmatmul.f32.gmra.mxu0 %v1266
      %v1381 = vpop.f32.mrf.mxu0
      %v1382 = vadd.f32 0.0, %v1381
      %1383 = vmatmul.f32.gmra.mxu0 %v1269
      %v1384 = vpop.f32.mrf.mxu0
      %v1385 = vadd.f32 0.0, %v1384
      %1386 = vmatmul.f32.gmra.mxu0 %v1272
      %v1387 = vpop.f32.mrf.mxu0
      %v1388 = vadd.f32 0.0, %v1387
      %1389 = vmatmul.f32.gmra.mxu0 %v1275
      %v1390 = vpop.f32.mrf.mxu0
      %v1391 = vadd.f32 0.0, %v1390
      %1392 = vmatmul.f32.gmra.mxu0 %v1278
      %v1393 = vpop.f32.mrf.mxu0
      %v1394 = vadd.f32 0.0, %v1393
      %1395 = vmatmul.f32.gmra.mxu0 %v1281
      %v1396 = vpop.f32.mrf.mxu0
      %v1397 = vadd.f32 0.0, %v1396
      %1398 = vmatmul.f32.gmra.mxu0 %v1284
      %v1399 = vpop.f32.mrf.mxu0
      %v1400 = vadd.f32 0.0, %v1399
      %1401 = vmatmul.f32.gmra.mxu0 %v1287
      %v1402 = vpop.f32.mrf.mxu0
      %v1403 = vadd.f32 0.0, %v1402
      %1404 = vmatmul.f32.gmra.mxu0 %v1290
      %v1405 = vpop.f32.mrf.mxu0
      %v1406 = vadd.f32 0.0, %v1405
      %1407 = vmatmul.f32.gmra.mxu0 %v1293
      %v1408 = vpop.f32.mrf.mxu0
      %v1409 = vadd.f32 0.0, %v1408
      %1410 = vmatmul.f32.gmra.mxu0 %v1296
      %v1411 = vpop.f32.mrf.mxu0
      %v1412 = vadd.f32 0.0, %v1411
      %1413 = vmatmul.f32.gmra.mxu0 %v1299
      %v1414 = vpop.f32.mrf.mxu0
      %v1415 = vadd.f32 0.0, %v1414
      %1416 = vmatmul.f32.gmra.mxu0 %v1302
      %v1417 = vpop.f32.mrf.mxu0
      %v1418 = vadd.f32 0.0, %v1417
      %1419 = vmatmul.f32.gmra.mxu0 %v1305
      %v1420 = vpop.f32.mrf.mxu0
      %v1421 = vadd.f32 0.0, %v1420
      %1422 = vmatmul.f32.gmra.mxu0 %v1308
      %v1423 = vpop.f32.mrf.mxu0
      %v1424 = vadd.f32 0.0, %v1423
      %1425 = vmatmul.f32.gmra.mxu0 %v1311
      %v1426 = vpop.f32.mrf.mxu0
      %v1427 = vadd.f32 0.0, %v1426
      %1428 = vmatmul.f32.gmra.mxu0 %v1314
      %v1429 = vpop.f32.mrf.mxu0
      %v1430 = vadd.f32 0.0, %v1429
      %1431 = vmatmul.f32.gmra.mxu0 %v1317
      %v1432 = vpop.f32.mrf.mxu0
      %v1433 = vadd.f32 0.0, %v1432
      %1434 = vmatmul.f32.gmra.mxu0 %v1320
      %v1435 = vpop.f32.mrf.mxu0
      %v1436 = vadd.f32 0.0, %v1435
      %1437 = vmatmul.f32.gmra.mxu0 %v1323
      %v1438 = vpop.f32.mrf.mxu0
      %v1439 = vadd.f32 0.0, %v1438
      %1440 = vmatmul.f32.gmra.mxu0 %v1326
      %v1441 = vpop.f32.mrf.mxu0
      %v1442 = vadd.f32 0.0, %v1441
      %1443 = vmatmul.f32.gmra.mxu0 %v1329
      %v1444 = vpop.f32.mrf.mxu0
      %v1445 = vadd.f32 0.0, %v1444
      %1446 = vmatmul.f32.gmra.mxu0 %v1332
      %v1447 = vpop.f32.mrf.mxu0
      %v1448 = vadd.f32 0.0, %v1447
      %1449 = vmatmul.f32.gmra.mxu0 %v1335
      %v1450 = vpop.f32.mrf.mxu0
      %v1451 = vadd.f32 0.0, %v1450
      %1452 = vmatmul.f32.gmra.mxu0 %v1338
      %v1453 = vpop.f32.mrf.mxu0
      %v1454 = vadd.f32 0.0, %v1453
      %1455 = vmatmul.f32.gmra.mxu0 %v1341
      %v1456 = vpop.f32.mrf.mxu0
      %v1457 = vadd.f32 0.0, %v1456
      %1458 = vmatmul.f32.gmra.mxu0 %v1344
      %v1459 = vpop.f32.mrf.mxu0
      %v1460 = vadd.f32 0.0, %v1459
      %1461 = vmatmul.f32.gmra.mxu0 %v1347
      %v1462 = vpop.f32.mrf.mxu0
      %v1463 = vadd.f32 0.0, %v1462
      %1464 = vdwg.mxu0
      %v1465 = vadd.f32 %v1187, %v1370
      %v1466 = vadd.f32 %v1188, %v1373
      %v1467 = vadd.f32 %v1189, %v1376
      %v1468 = vadd.f32 %v1190, %v1379
      %v1469 = vadd.f32 %v1191, %v1382
      %v1470 = vadd.f32 %v1192, %v1385
      %v1471 = vadd.f32 %v1193, %v1388
      %v1472 = vadd.f32 %v1194, %v1391
      %v1473 = vadd.f32 %v1195, %v1394
      %v1474 = vadd.f32 %v1196, %v1397
      %v1475 = vadd.f32 %v1197, %v1400
      %v1476 = vadd.f32 %v1198, %v1403
      %v1477 = vadd.f32 %v1199, %v1406
      %v1478 = vadd.f32 %v1200, %v1409
      %v1479 = vadd.f32 %v1201, %v1412
      %v1480 = vadd.f32 %v1202, %v1415
      %v1481 = vadd.f32 %v1203, %v1418
      %v1482 = vadd.f32 %v1204, %v1421
      %v1483 = vadd.f32 %v1205, %v1424
      %v1484 = vadd.f32 %v1206, %v1427
      %v1485 = vadd.f32 %v1207, %v1430
      %v1486 = vadd.f32 %v1208, %v1433
      %v1487 = vadd.f32 %v1209, %v1436
      %v1488 = vadd.f32 %v1210, %v1439
      %v1489 = vadd.f32 %v1211, %v1442
      %v1490 = vadd.f32 %v1212, %v1445
      %v1491 = vadd.f32 %v1213, %v1448
      %v1492 = vadd.f32 %v1214, %v1451
      %v1493 = vadd.f32 %v1215, %v1454
      %v1494 = vadd.f32 %v1216, %v1457
      %v1495 = vadd.f32 %v1217, %v1460
      %v1496 = vadd.f32 %v1218, %v1463
      %v1497 = vld [vmem:[%s416 + $0x8] sm:$0xff]
      %v1498 = vld [vmem:[%s416 + $0x10] sm:$0xff]
      %v1499 = vld [vmem:[%s416 + $0x28] sm:$0xff]
      %v1500 = vld [vmem:[%s416 + $0x30] sm:$0xff]
      %v1501 = vld [vmem:[%s416 + $0x48] sm:$0xff]
      %v1502 = vld [vmem:[%s416 + $0x50] sm:$0xff]
      %v1503 = vld [vmem:[%s416 + $0x68] sm:$0xff]
      %v1504 = vld [vmem:[%s416 + $0x70] sm:$0xff]
      %v1505 = vld [vmem:[%s416 + $0x88] sm:$0xff]
      %v1506 = vld [vmem:[%s416 + $0x90] sm:$0xff]
      %v1507 = vld [vmem:[%s416 + $0xa8] sm:$0xff]
      %v1508 = vld [vmem:[%s416 + $0xb0] sm:$0xff]
      %v1509 = vld [vmem:[%s416 + $0xc8] sm:$0xff]
      %v1510 = vld [vmem:[%s416 + $0xd0] sm:$0xff]
      %v1511 = vld [vmem:[%s416 + $0xe8] sm:$0xff]
      %v1512 = vld [vmem:[%s416 + $0xf0] sm:$0xff]
      %v1513 = vld [vmem:[%s416 + $0x108] sm:$0xff]
      %v1514 = vld [vmem:[%s416 + $0x110] sm:$0xff]
      %v1515 = vld [vmem:[%s416 + $0x128] sm:$0xff]
      %v1516 = vld [vmem:[%s416 + $0x130] sm:$0xff]
      %v1517 = vld [vmem:[%s416 + $0x148] sm:$0xff]
      %v1518 = vld [vmem:[%s416 + $0x150] sm:$0xff]
      %v1519 = vld [vmem:[%s416 + $0x168] sm:$0xff]
      %v1520 = vld [vmem:[%s416 + $0x170] sm:$0xff]
      %v1521 = vld [vmem:[%s416 + $0x188] sm:$0xff]
      %v1522 = vld [vmem:[%s416 + $0x190] sm:$0xff]
      %v1523 = vld [vmem:[%s416 + $0x1a8] sm:$0xff]
      %v1524 = vld [vmem:[%s416 + $0x1b0] sm:$0xff]
      %v1525 = vld [vmem:[%s416 + $0x1c8] sm:$0xff]
      %v1526 = vld [vmem:[%s416 + $0x1d0] sm:$0xff]
      %v1527 = vld [vmem:[%s416 + $0x1e8] sm:$0xff]
      %v1528 = vld [vmem:[%s416 + $0x1f0] sm:$0xff]
      %s1529 = scalar_lea.vmem %s1, 16
      %v1530 = vld [vmem:[%s1529] sm:$0xf]
      %v1532 = vsel %vm343, %v1497, 0
      %v1535 = vsel %vm343, %v1498, 0
      %v1538 = vsel %vm343, %v1499, 0
      %v1541 = vsel %vm343, %v1500, 0
      %v1544 = vsel %vm343, %v1501, 0
      %v1547 = vsel %vm343, %v1502, 0
      %v1550 = vsel %vm343, %v1503, 0
      %v1553 = vsel %vm343, %v1504, 0
      %v1556 = vsel %vm343, %v1505, 0
      %v1559 = vsel %vm343, %v1506, 0
      %v1562 = vsel %vm343, %v1507, 0
      %v1565 = vsel %vm343, %v1508, 0
      %v1568 = vsel %vm343, %v1509, 0
      %v1571 = vsel %vm343, %v1510, 0
      %v1574 = vsel %vm343, %v1511, 0
      %v1577 = vsel %vm343, %v1512, 0
      %v1580 = vsel %vm343, %v1513, 0
      %v1583 = vsel %vm343, %v1514, 0
      %v1586 = vsel %vm343, %v1515, 0
      %v1589 = vsel %vm343, %v1516, 0
      %v1592 = vsel %vm343, %v1517, 0
      %v1595 = vsel %vm343, %v1518, 0
      %v1598 = vsel %vm343, %v1519, 0
      %v1601 = vsel %vm343, %v1520, 0
      %v1604 = vsel %vm343, %v1521, 0
      %v1607 = vsel %vm343, %v1522, 0
      %v1610 = vsel %vm343, %v1523, 0
      %v1613 = vsel %vm343, %v1524, 0
      %v1616 = vsel %vm343, %v1525, 0
      %v1619 = vsel %vm343, %v1526, 0
      %v1622 = vsel %vm343, %v1527, 0
      %v1625 = vsel %vm343, %v1528, 0
      %v1628 = vsel %vm612, %v1530, 0
      %1630 = vmatpush.msra.mxu0 0.0
      %1631 = vmatpush.msra.mxu0 0.0
      %1632 = vmatpush.msra.mxu0 0.0
      %1633 = vmatpush.msra.mxu0 0.0
      %1634 = vmatpush.msra.mxu0 0.0
      %1635 = vmatpush.msra.mxu0 0.0
      %1636 = vmatpush.msra.mxu0 0.0
      %1637 = vmatpush.msra.mxu0 0.0
      %1638 = vmatpush.msra.mxu0 0.0
      %1639 = vmatpush.msra.mxu0 0.0
      %1640 = vmatpush.msra.mxu0 0.0
      %1641 = vmatpush.msra.mxu0 0.0
      %1642 = vmatpush.msra.mxu0 0.0
      %1643 = vmatpush.msra.mxu0 0.0
      %1644 = vmatpush.msra.mxu0 0.0
      %1645 = vmatpush.msra.mxu0 %v1628
      %1646 = vmatmul.f32.gmra.mxu0 %v1532
      %v1647 = vpop.f32.mrf.mxu0
      %v1648 = vadd.f32 0.0, %v1647
      %1649 = vmatmul.f32.gmra.mxu0 %v1535
      %v1650 = vpop.f32.mrf.mxu0
      %v1651 = vadd.f32 0.0, %v1650
      %1652 = vmatmul.f32.gmra.mxu0 %v1538
      %v1653 = vpop.f32.mrf.mxu0
      %v1654 = vadd.f32 0.0, %v1653
      %1655 = vmatmul.f32.gmra.mxu0 %v1541
      %v1656 = vpop.f32.mrf.mxu0
      %v1657 = vadd.f32 0.0, %v1656
      %1658 = vmatmul.f32.gmra.mxu0 %v1544
      %v1659 = vpop.f32.mrf.mxu0
      %v1660 = vadd.f32 0.0, %v1659
      %1661 = vmatmul.f32.gmra.mxu0 %v1547
      %v1662 = vpop.f32.mrf.mxu0
      %v1663 = vadd.f32 0.0, %v1662
      %1664 = vmatmul.f32.gmra.mxu0 %v1550
      %v1665 = vpop.f32.mrf.mxu0
      %v1666 = vadd.f32 0.0, %v1665
      %1667 = vmatmul.f32.gmra.mxu0 %v1553
      %v1668 = vpop.f32.mrf.mxu0
      %v1669 = vadd.f32 0.0, %v1668
      %1670 = vmatmul.f32.gmra.mxu0 %v1556
      %v1671 = vpop.f32.mrf.mxu0
      %v1672 = vadd.f32 0.0, %v1671
      %1673 = vmatmul.f32.gmra.mxu0 %v1559
      %v1674 = vpop.f32.mrf.mxu0
      %v1675 = vadd.f32 0.0, %v1674
      %1676 = vmatmul.f32.gmra.mxu0 %v1562
      %v1677 = vpop.f32.mrf.mxu0
      %v1678 = vadd.f32 0.0, %v1677
      %1679 = vmatmul.f32.gmra.mxu0 %v1565
      %v1680 = vpop.f32.mrf.mxu0
      %v1681 = vadd.f32 0.0, %v1680
      %1682 = vmatmul.f32.gmra.mxu0 %v1568
      %v1683 = vpop.f32.mrf.mxu0
      %v1684 = vadd.f32 0.0, %v1683
      %1685 = vmatmul.f32.gmra.mxu0 %v1571
      %v1686 = vpop.f32.mrf.mxu0
      %v1687 = vadd.f32 0.0, %v1686
      %1688 = vmatmul.f32.gmra.mxu0 %v1574
      %v1689 = vpop.f32.mrf.mxu0
      %v1690 = vadd.f32 0.0, %v1689
      %1691 = vmatmul.f32.gmra.mxu0 %v1577
      %v1692 = vpop.f32.mrf.mxu0
      %v1693 = vadd.f32 0.0, %v1692
      %1694 = vmatmul.f32.gmra.mxu0 %v1580
      %v1695 = vpop.f32.mrf.mxu0
      %v1696 = vadd.f32 0.0, %v1695
      %1697 = vmatmul.f32.gmra.mxu0 %v1583
      %v1698 = vpop.f32.mrf.mxu0
      %v1699 = vadd.f32 0.0, %v1698
      %1700 = vmatmul.f32.gmra.mxu0 %v1586
      %v1701 = vpop.f32.mrf.mxu0
      %v1702 = vadd.f32 0.0, %v1701
      %1703 = vmatmul.f32.gmra.mxu0 %v1589
      %v1704 = vpop.f32.mrf.mxu0
      %v1705 = vadd.f32 0.0, %v1704
      %1706 = vmatmul.f32.gmra.mxu0 %v1592
      %v1707 = vpop.f32.mrf.mxu0
      %v1708 = vadd.f32 0.0, %v1707
      %1709 = vmatmul.f32.gmra.mxu0 %v1595
      %v1710 = vpop.f32.mrf.mxu0
      %v1711 = vadd.f32 0.0, %v1710
      %1712 = vmatmul.f32.gmra.mxu0 %v1598
      %v1713 = vpop.f32.mrf.mxu0
      %v1714 = vadd.f32 0.0, %v1713
      %1715 = vmatmul.f32.gmra.mxu0 %v1601
      %v1716 = vpop.f32.mrf.mxu0
      %v1717 = vadd.f32 0.0, %v1716
      %1718 = vmatmul.f32.gmra.mxu0 %v1604
      %v1719 = vpop.f32.mrf.mxu0
      %v1720 = vadd.f32 0.0, %v1719
      %1721 = vmatmul.f32.gmra.mxu0 %v1607
      %v1722 = vpop.f32.mrf.mxu0
      %v1723 = vadd.f32 0.0, %v1722
      %1724 = vmatmul.f32.gmra.mxu0 %v1610
      %v1725 = vpop.f32.mrf.mxu0
      %v1726 = vadd.f32 0.0, %v1725
      %1727 = vmatmul.f32.gmra.mxu0 %v1613
      %v1728 = vpop.f32.mrf.mxu0
      %v1729 = vadd.f32 0.0, %v1728
      %1730 = vmatmul.f32.gmra.mxu0 %v1616
      %v1731 = vpop.f32.mrf.mxu0
      %v1732 = vadd.f32 0.0, %v1731
      %1733 = vmatmul.f32.gmra.mxu0 %v1619
      %v1734 = vpop.f32.mrf.mxu0
      %v1735 = vadd.f32 0.0, %v1734
      %1736 = vmatmul.f32.gmra.mxu0 %v1622
      %v1737 = vpop.f32.mrf.mxu0
      %v1738 = vadd.f32 0.0, %v1737
      %1739 = vmatmul.f32.gmra.mxu0 %v1625
      %v1740 = vpop.f32.mrf.mxu0
      %v1741 = vadd.f32 0.0, %v1740
      %1742 = vdwg.mxu0
      %v1743 = vadd.f32 %v1465, %v1648
      %v1744 = vadd.f32 %v1466, %v1651
      %v1745 = vadd.f32 %v1467, %v1654
      %v1746 = vadd.f32 %v1468, %v1657
      %v1747 = vadd.f32 %v1469, %v1660
      %v1748 = vadd.f32 %v1470, %v1663
      %v1749 = vadd.f32 %v1471, %v1666
      %v1750 = vadd.f32 %v1472, %v1669
      %v1751 = vadd.f32 %v1473, %v1672
      %v1752 = vadd.f32 %v1474, %v1675
      %v1753 = vadd.f32 %v1475, %v1678
      %v1754 = vadd.f32 %v1476, %v1681
      %v1755 = vadd.f32 %v1477, %v1684
      %v1756 = vadd.f32 %v1478, %v1687
      %v1757 = vadd.f32 %v1479, %v1690
      %v1758 = vadd.f32 %v1480, %v1693
      %v1759 = vadd.f32 %v1481, %v1696
      %v1760 = vadd.f32 %v1482, %v1699
      %v1761 = vadd.f32 %v1483, %v1702
      %v1762 = vadd.f32 %v1484, %v1705
      %v1763 = vadd.f32 %v1485, %v1708
      %v1764 = vadd.f32 %v1486, %v1711
      %v1765 = vadd.f32 %v1487, %v1714
      %v1766 = vadd.f32 %v1488, %v1717
      %v1767 = vadd.f32 %v1489, %v1720
      %v1768 = vadd.f32 %v1490, %v1723
      %v1769 = vadd.f32 %v1491, %v1726
      %v1770 = vadd.f32 %v1492, %v1729
      %v1771 = vadd.f32 %v1493, %v1732
      %v1772 = vadd.f32 %v1494, %v1735
      %v1773 = vadd.f32 %v1495, %v1738
      %v1774 = vadd.f32 %v1496, %v1741
      %v1775 = vld [vmem:[%s416 + $0x9] sm:$0xff]
      %v1776 = vld [vmem:[%s416 + $0x11] sm:$0xff]
      %v1777 = vld [vmem:[%s416 + $0x29] sm:$0xff]
      %v1778 = vld [vmem:[%s416 + $0x31] sm:$0xff]
      %v1779 = vld [vmem:[%s416 + $0x49] sm:$0xff]
      %v1780 = vld [vmem:[%s416 + $0x51] sm:$0xff]
      %v1781 = vld [vmem:[%s416 + $0x69] sm:$0xff]
      %v1782 = vld [vmem:[%s416 + $0x71] sm:$0xff]
      %v1783 = vld [vmem:[%s416 + $0x89] sm:$0xff]
      %v1784 = vld [vmem:[%s416 + $0x91] sm:$0xff]
      %v1785 = vld [vmem:[%s416 + $0xa9] sm:$0xff]
      %v1786 = vld [vmem:[%s416 + $0xb1] sm:$0xff]
      %v1787 = vld [vmem:[%s416 + $0xc9] sm:$0xff]
      %v1788 = vld [vmem:[%s416 + $0xd1] sm:$0xff]
      %v1789 = vld [vmem:[%s416 + $0xe9] sm:$0xff]
      %v1790 = vld [vmem:[%s416 + $0xf1] sm:$0xff]
      %v1791 = vld [vmem:[%s416 + $0x109] sm:$0xff]
      %v1792 = vld [vmem:[%s416 + $0x111] sm:$0xff]
      %v1793 = vld [vmem:[%s416 + $0x129] sm:$0xff]
      %v1794 = vld [vmem:[%s416 + $0x131] sm:$0xff]
      %v1795 = vld [vmem:[%s416 + $0x149] sm:$0xff]
      %v1796 = vld [vmem:[%s416 + $0x151] sm:$0xff]
      %v1797 = vld [vmem:[%s416 + $0x169] sm:$0xff]
      %v1798 = vld [vmem:[%s416 + $0x171] sm:$0xff]
      %v1799 = vld [vmem:[%s416 + $0x189] sm:$0xff]
      %v1800 = vld [vmem:[%s416 + $0x191] sm:$0xff]
      %v1801 = vld [vmem:[%s416 + $0x1a9] sm:$0xff]
      %v1802 = vld [vmem:[%s416 + $0x1b1] sm:$0xff]
      %v1803 = vld [vmem:[%s416 + $0x1c9] sm:$0xff]
      %v1804 = vld [vmem:[%s416 + $0x1d1] sm:$0xff]
      %v1805 = vld [vmem:[%s416 + $0x1e9] sm:$0xff]
      %v1806 = vld [vmem:[%s416 + $0x1f1] sm:$0xff]
      %s1807 = scalar_lea.vmem %s1, 20
      %v1808 = vld [vmem:[%s1807] sm:$0xf]
      %v1810 = vsel %vm343, %v1775, 0
      %v1813 = vsel %vm343, %v1776, 0
      %v1816 = vsel %vm343, %v1777, 0
      %v1819 = vsel %vm343, %v1778, 0
      %v1822 = vsel %vm343, %v1779, 0
      %v1825 = vsel %vm343, %v1780, 0
      %v1828 = vsel %vm343, %v1781, 0
      %v1831 = vsel %vm343, %v1782, 0
      %v1834 = vsel %vm343, %v1783, 0
      %v1837 = vsel %vm343, %v1784, 0
      %v1840 = vsel %vm343, %v1785, 0
      %v1843 = vsel %vm343, %v1786, 0
      %v1846 = vsel %vm343, %v1787, 0
      %v1849 = vsel %vm343, %v1788, 0
      %v1852 = vsel %vm343, %v1789, 0
      %v1855 = vsel %vm343, %v1790, 0
      %v1858 = vsel %vm343, %v1791, 0
      %v1861 = vsel %vm343, %v1792, 0
      %v1864 = vsel %vm343, %v1793, 0
      %v1867 = vsel %vm343, %v1794, 0
      %v1870 = vsel %vm343, %v1795, 0
      %v1873 = vsel %vm343, %v1796, 0
      %v1876 = vsel %vm343, %v1797, 0
      %v1879 = vsel %vm343, %v1798, 0
      %v1882 = vsel %vm343, %v1799, 0
      %v1885 = vsel %vm343, %v1800, 0
      %v1888 = vsel %vm343, %v1801, 0
      %v1891 = vsel %vm343, %v1802, 0
      %v1894 = vsel %vm343, %v1803, 0
      %v1897 = vsel %vm343, %v1804, 0
      %v1900 = vsel %vm343, %v1805, 0
      %v1903 = vsel %vm343, %v1806, 0
      %v1906 = vsel %vm612, %v1808, 0
      %1908 = vmatpush.msra.mxu0 0.0
      %1909 = vmatpush.msra.mxu0 0.0
      %1910 = vmatpush.msra.mxu0 0.0
      %1911 = vmatpush.msra.mxu0 0.0
      %1912 = vmatpush.msra.mxu0 0.0
      %1913 = vmatpush.msra.mxu0 0.0
      %1914 = vmatpush.msra.mxu0 0.0
      %1915 = vmatpush.msra.mxu0 0.0
      %1916 = vmatpush.msra.mxu0 0.0
      %1917 = vmatpush.msra.mxu0 0.0
      %1918 = vmatpush.msra.mxu0 0.0
      %1919 = vmatpush.msra.mxu0 0.0
      %1920 = vmatpush.msra.mxu0 0.0
      %1921 = vmatpush.msra.mxu0 0.0
      %1922 = vmatpush.msra.mxu0 0.0
      %1923 = vmatpush.msra.mxu0 %v1906
      %1924 = vmatmul.f32.gmra.mxu0 %v1810
      %v1925 = vpop.f32.mrf.mxu0
      %v1926 = vadd.f32 0.0, %v1925
      %1927 = vmatmul.f32.gmra.mxu0 %v1813
      %v1928 = vpop.f32.mrf.mxu0
      %v1929 = vadd.f32 0.0, %v1928
      %1930 = vmatmul.f32.gmra.mxu0 %v1816
      %v1931 = vpop.f32.mrf.mxu0
      %v1932 = vadd.f32 0.0, %v1931
      %1933 = vmatmul.f32.gmra.mxu0 %v1819
      %v1934 = vpop.f32.mrf.mxu0
      %v1935 = vadd.f32 0.0, %v1934
      %1936 = vmatmul.f32.gmra.mxu0 %v1822
      %v1937 = vpop.f32.mrf.mxu0
      %v1938 = vadd.f32 0.0, %v1937
      %1939 = vmatmul.f32.gmra.mxu0 %v1825
      %v1940 = vpop.f32.mrf.mxu0
      %v1941 = vadd.f32 0.0, %v1940
      %1942 = vmatmul.f32.gmra.mxu0 %v1828
      %v1943 = vpop.f32.mrf.mxu0
      %v1944 = vadd.f32 0.0, %v1943
      %1945 = vmatmul.f32.gmra.mxu0 %v1831
      %v1946 = vpop.f32.mrf.mxu0
      %v1947 = vadd.f32 0.0, %v1946
      %1948 = vmatmul.f32.gmra.mxu0 %v1834
      %v1949 = vpop.f32.mrf.mxu0
      %v1950 = vadd.f32 0.0, %v1949
      %1951 = vmatmul.f32.gmra.mxu0 %v1837
      %v1952 = vpop.f32.mrf.mxu0
      %v1953 = vadd.f32 0.0, %v1952
      %1954 = vmatmul.f32.gmra.mxu0 %v1840
      %v1955 = vpop.f32.mrf.mxu0
      %v1956 = vadd.f32 0.0, %v1955
      %1957 = vmatmul.f32.gmra.mxu0 %v1843
      %v1958 = vpop.f32.mrf.mxu0
      %v1959 = vadd.f32 0.0, %v1958
      %1960 = vmatmul.f32.gmra.mxu0 %v1846
      %v1961 = vpop.f32.mrf.mxu0
      %v1962 = vadd.f32 0.0, %v1961
      %1963 = vmatmul.f32.gmra.mxu0 %v1849
      %v1964 = vpop.f32.mrf.mxu0
      %v1965 = vadd.f32 0.0, %v1964
      %1966 = vmatmul.f32.gmra.mxu0 %v1852
      %v1967 = vpop.f32.mrf.mxu0
      %v1968 = vadd.f32 0.0, %v1967
      %1969 = vmatmul.f32.gmra.mxu0 %v1855
      %v1970 = vpop.f32.mrf.mxu0
      %v1971 = vadd.f32 0.0, %v1970
      %1972 = vmatmul.f32.gmra.mxu0 %v1858
      %v1973 = vpop.f32.mrf.mxu0
      %v1974 = vadd.f32 0.0, %v1973
      %1975 = vmatmul.f32.gmra.mxu0 %v1861
      %v1976 = vpop.f32.mrf.mxu0
      %v1977 = vadd.f32 0.0, %v1976
      %1978 = vmatmul.f32.gmra.mxu0 %v1864
      %v1979 = vpop.f32.mrf.mxu0
      %v1980 = vadd.f32 0.0, %v1979
      %1981 = vmatmul.f32.gmra.mxu0 %v1867
      %v1982 = vpop.f32.mrf.mxu0
      %v1983 = vadd.f32 0.0, %v1982
      %1984 = vmatmul.f32.gmra.mxu0 %v1870
      %v1985 = vpop.f32.mrf.mxu0
      %v1986 = vadd.f32 0.0, %v1985
      %1987 = vmatmul.f32.gmra.mxu0 %v1873
      %v1988 = vpop.f32.mrf.mxu0
      %v1989 = vadd.f32 0.0, %v1988
      %1990 = vmatmul.f32.gmra.mxu0 %v1876
      %v1991 = vpop.f32.mrf.mxu0
      %v1992 = vadd.f32 0.0, %v1991
      %1993 = vmatmul.f32.gmra.mxu0 %v1879
      %v1994 = vpop.f32.mrf.mxu0
      %v1995 = vadd.f32 0.0, %v1994
      %1996 = vmatmul.f32.gmra.mxu0 %v1882
      %v1997 = vpop.f32.mrf.mxu0
      %v1998 = vadd.f32 0.0, %v1997
      %1999 = vmatmul.f32.gmra.mxu0 %v1885
      %v2000 = vpop.f32.mrf.mxu0
      %v2001 = vadd.f32 0.0, %v2000
      %2002 = vmatmul.f32.gmra.mxu0 %v1888
      %v2003 = vpop.f32.mrf.mxu0
      %v2004 = vadd.f32 0.0, %v2003
      %2005 = vmatmul.f32.gmra.mxu0 %v1891
      %v2006 = vpop.f32.mrf.mxu0
      %v2007 = vadd.f32 0.0, %v2006
      %2008 = vmatmul.f32.gmra.mxu0 %v1894
      %v2009 = vpop.f32.mrf.mxu0
      %v2010 = vadd.f32 0.0, %v2009
      %2011 = vmatmul.f32.gmra.mxu0 %v1897
      %v2012 = vpop.f32.mrf.mxu0
      %v2013 = vadd.f32 0.0, %v2012
      %2014 = vmatmul.f32.gmra.mxu0 %v1900
      %v2015 = vpop.f32.mrf.mxu0
      %v2016 = vadd.f32 0.0, %v2015
      %2017 = vmatmul.f32.gmra.mxu0 %v1903
      %v2018 = vpop.f32.mrf.mxu0
      %v2019 = vadd.f32 0.0, %v2018
      %2020 = vdwg.mxu0
      %v2021 = vadd.f32 %v1743, %v1926
      %v2022 = vadd.f32 %v1744, %v1929
      %v2023 = vadd.f32 %v1745, %v1932
      %v2024 = vadd.f32 %v1746, %v1935
      %v2025 = vadd.f32 %v1747, %v1938
      %v2026 = vadd.f32 %v1748, %v1941
      %v2027 = vadd.f32 %v1749, %v1944
      %v2028 = vadd.f32 %v1750, %v1947
      %v2029 = vadd.f32 %v1751, %v1950
      %v2030 = vadd.f32 %v1752, %v1953
      %v2031 = vadd.f32 %v1753, %v1956
      %v2032 = vadd.f32 %v1754, %v1959
      %v2033 = vadd.f32 %v1755, %v1962
      %v2034 = vadd.f32 %v1756, %v1965
      %v2035 = vadd.f32 %v1757, %v1968
      %v2036 = vadd.f32 %v1758, %v1971
      %v2037 = vadd.f32 %v1759, %v1974
      %v2038 = vadd.f32 %v1760, %v1977
      %v2039 = vadd.f32 %v1761, %v1980
      %v2040 = vadd.f32 %v1762, %v1983
      %v2041 = vadd.f32 %v1763, %v1986
      %v2042 = vadd.f32 %v1764, %v1989
      %v2043 = vadd.f32 %v1765, %v1992
      %v2044 = vadd.f32 %v1766, %v1995
      %v2045 = vadd.f32 %v1767, %v1998
      %v2046 = vadd.f32 %v1768, %v2001
      %v2047 = vadd.f32 %v1769, %v2004
      %v2048 = vadd.f32 %v1770, %v2007
      %v2049 = vadd.f32 %v1771, %v2010
      %v2050 = vadd.f32 %v1772, %v2013
      %v2051 = vadd.f32 %v1773, %v2016
      %v2052 = vadd.f32 %v1774, %v2019
      %s2053 = scalar_lea.vmem [#allocation2], 64
      %v2054 = vld [vmem:[%s2053 + $0x7] sm:$0xff]
      %v2055 = vld [vmem:[%s2053 + $0xf] sm:$0xff]
      %v2056 = vld [vmem:[%s2053 + $0x27] sm:$0xff]
      %v2057 = vld [vmem:[%s2053 + $0x2f] sm:$0xff]
      %v2058 = vld [vmem:[%s2053 + $0x47] sm:$0xff]
      %v2059 = vld [vmem:[%s2053 + $0x4f] sm:$0xff]
      %v2060 = vld [vmem:[%s2053 + $0x67] sm:$0xff]
      %v2061 = vld [vmem:[%s2053 + $0x6f] sm:$0xff]
      %v2062 = vld [vmem:[%s2053 + $0x87] sm:$0xff]
      %v2063 = vld [vmem:[%s2053 + $0x8f] sm:$0xff]
      %v2064 = vld [vmem:[%s2053 + $0xa7] sm:$0xff]
      %v2065 = vld [vmem:[%s2053 + $0xaf] sm:$0xff]
      %v2066 = vld [vmem:[%s2053 + $0xc7] sm:$0xff]
      %v2067 = vld [vmem:[%s2053 + $0xcf] sm:$0xff]
      %v2068 = vld [vmem:[%s2053 + $0xe7] sm:$0xff]
      %v2069 = vld [vmem:[%s2053 + $0xef] sm:$0xff]
      %v2070 = vld [vmem:[%s2053 + $0x107] sm:$0xff]
      %v2071 = vld [vmem:[%s2053 + $0x10f] sm:$0xff]
      %v2072 = vld [vmem:[%s2053 + $0x127] sm:$0xff]
      %v2073 = vld [vmem:[%s2053 + $0x12f] sm:$0xff]
      %v2074 = vld [vmem:[%s2053 + $0x147] sm:$0xff]
      %v2075 = vld [vmem:[%s2053 + $0x14f] sm:$0xff]
      %v2076 = vld [vmem:[%s2053 + $0x167] sm:$0xff]
      %v2077 = vld [vmem:[%s2053 + $0x16f] sm:$0xff]
      %v2078 = vld [vmem:[%s2053 + $0x187] sm:$0xff]
      %v2079 = vld [vmem:[%s2053 + $0x18f] sm:$0xff]
      %v2080 = vld [vmem:[%s2053 + $0x1a7] sm:$0xff]
      %v2081 = vld [vmem:[%s2053 + $0x1af] sm:$0xff]
      %v2082 = vld [vmem:[%s2053 + $0x1c7] sm:$0xff]
      %v2083 = vld [vmem:[%s2053 + $0x1cf] sm:$0xff]
      %v2084 = vld [vmem:[%s2053 + $0x1e7] sm:$0xff]
      %v2085 = vld [vmem:[%s2053 + $0x1ef] sm:$0xff]
      %s2086 = scalar_lea.vmem %s1, 24
      %v2087 = vld [vmem:[%s2086] sm:$0xf]
      %v2089 = vsel %vm343, %v2054, 0
      %v2092 = vsel %vm343, %v2055, 0
      %v2095 = vsel %vm343, %v2056, 0
      %v2098 = vsel %vm343, %v2057, 0
      %v2101 = vsel %vm343, %v2058, 0
      %v2104 = vsel %vm343, %v2059, 0
      %v2107 = vsel %vm343, %v2060, 0
      %v2110 = vsel %vm343, %v2061, 0
      %v2113 = vsel %vm343, %v2062, 0
      %v2116 = vsel %vm343, %v2063, 0
      %v2119 = vsel %vm343, %v2064, 0
      %v2122 = vsel %vm343, %v2065, 0
      %v2125 = vsel %vm343, %v2066, 0
      %v2128 = vsel %vm343, %v2067, 0
      %v2131 = vsel %vm343, %v2068, 0
      %v2134 = vsel %vm343, %v2069, 0
      %v2137 = vsel %vm343, %v2070, 0
      %v2140 = vsel %vm343, %v2071, 0
      %v2143 = vsel %vm343, %v2072, 0
      %v2146 = vsel %vm343, %v2073, 0
      %v2149 = vsel %vm343, %v2074, 0
      %v2152 = vsel %vm343, %v2075, 0
      %v2155 = vsel %vm343, %v2076, 0
      %v2158 = vsel %vm343, %v2077, 0
      %v2161 = vsel %vm343, %v2078, 0
      %v2164 = vsel %vm343, %v2079, 0
      %v2167 = vsel %vm343, %v2080, 0
      %v2170 = vsel %vm343, %v2081, 0
      %v2173 = vsel %vm343, %v2082, 0
      %v2176 = vsel %vm343, %v2083, 0
      %v2179 = vsel %vm343, %v2084, 0
      %v2182 = vsel %vm343, %v2085, 0
      %v2185 = vsel %vm612, %v2087, 0
      %2187 = vmatpush.msra.mxu0 0.0
      %2188 = vmatpush.msra.mxu0 0.0
      %2189 = vmatpush.msra.mxu0 0.0
      %2190 = vmatpush.msra.mxu0 0.0
      %2191 = vmatpush.msra.mxu0 0.0
      %2192 = vmatpush.msra.mxu0 0.0
      %2193 = vmatpush.msra.mxu0 0.0
      %2194 = vmatpush.msra.mxu0 0.0
      %2195 = vmatpush.msra.mxu0 0.0
      %2196 = vmatpush.msra.mxu0 0.0
      %2197 = vmatpush.msra.mxu0 0.0
      %2198 = vmatpush.msra.mxu0 0.0
      %2199 = vmatpush.msra.mxu0 0.0
      %2200 = vmatpush.msra.mxu0 0.0
      %2201 = vmatpush.msra.mxu0 0.0
      %2202 = vmatpush.msra.mxu0 %v2185
      %2203 = vmatmul.f32.gmra.mxu0 %v2089
      %v2204 = vpop.f32.mrf.mxu0
      %v2205 = vadd.f32 0.0, %v2204
      %2206 = vmatmul.f32.gmra.mxu0 %v2092
      %v2207 = vpop.f32.mrf.mxu0
      %v2208 = vadd.f32 0.0, %v2207
      %2209 = vmatmul.f32.gmra.mxu0 %v2095
      %v2210 = vpop.f32.mrf.mxu0
      %v2211 = vadd.f32 0.0, %v2210
      %2212 = vmatmul.f32.gmra.mxu0 %v2098
      %v2213 = vpop.f32.mrf.mxu0
      %v2214 = vadd.f32 0.0, %v2213
      %2215 = vmatmul.f32.gmra.mxu0 %v2101
      %v2216 = vpop.f32.mrf.mxu0
      %v2217 = vadd.f32 0.0, %v2216
      %2218 = vmatmul.f32.gmra.mxu0 %v2104
      %v2219 = vpop.f32.mrf.mxu0
      %v2220 = vadd.f32 0.0, %v2219
      %2221 = vmatmul.f32.gmra.mxu0 %v2107
      %v2222 = vpop.f32.mrf.mxu0
      %v2223 = vadd.f32 0.0, %v2222
      %2224 = vmatmul.f32.gmra.mxu0 %v2110
      %v2225 = vpop.f32.mrf.mxu0
      %v2226 = vadd.f32 0.0, %v2225
      %2227 = vmatmul.f32.gmra.mxu0 %v2113
      %v2228 = vpop.f32.mrf.mxu0
      %v2229 = vadd.f32 0.0, %v2228
      %2230 = vmatmul.f32.gmra.mxu0 %v2116
      %v2231 = vpop.f32.mrf.mxu0
      %v2232 = vadd.f32 0.0, %v2231
      %2233 = vmatmul.f32.gmra.mxu0 %v2119
      %v2234 = vpop.f32.mrf.mxu0
      %v2235 = vadd.f32 0.0, %v2234
      %2236 = vmatmul.f32.gmra.mxu0 %v2122
      %v2237 = vpop.f32.mrf.mxu0
      %v2238 = vadd.f32 0.0, %v2237
      %2239 = vmatmul.f32.gmra.mxu0 %v2125
      %v2240 = vpop.f32.mrf.mxu0
      %v2241 = vadd.f32 0.0, %v2240
      %2242 = vmatmul.f32.gmra.mxu0 %v2128
      %v2243 = vpop.f32.mrf.mxu0
      %v2244 = vadd.f32 0.0, %v2243
      %2245 = vmatmul.f32.gmra.mxu0 %v2131
      %v2246 = vpop.f32.mrf.mxu0
      %v2247 = vadd.f32 0.0, %v2246
      %2248 = vmatmul.f32.gmra.mxu0 %v2134
      %v2249 = vpop.f32.mrf.mxu0
      %v2250 = vadd.f32 0.0, %v2249
      %2251 = vmatmul.f32.gmra.mxu0 %v2137
      %v2252 = vpop.f32.mrf.mxu0
      %v2253 = vadd.f32 0.0, %v2252
      %2254 = vmatmul.f32.gmra.mxu0 %v2140
      %v2255 = vpop.f32.mrf.mxu0
      %v2256 = vadd.f32 0.0, %v2255
      %2257 = vmatmul.f32.gmra.mxu0 %v2143
      %v2258 = vpop.f32.mrf.mxu0
      %v2259 = vadd.f32 0.0, %v2258
      %2260 = vmatmul.f32.gmra.mxu0 %v2146
      %v2261 = vpop.f32.mrf.mxu0
      %v2262 = vadd.f32 0.0, %v2261
      %2263 = vmatmul.f32.gmra.mxu0 %v2149
      %v2264 = vpop.f32.mrf.mxu0
      %v2265 = vadd.f32 0.0, %v2264
      %2266 = vmatmul.f32.gmra.mxu0 %v2152
      %v2267 = vpop.f32.mrf.mxu0
      %v2268 = vadd.f32 0.0, %v2267
      %2269 = vmatmul.f32.gmra.mxu0 %v2155
      %v2270 = vpop.f32.mrf.mxu0
      %v2271 = vadd.f32 0.0, %v2270
      %2272 = vmatmul.f32.gmra.mxu0 %v2158
      %v2273 = vpop.f32.mrf.mxu0
      %v2274 = vadd.f32 0.0, %v2273
      %2275 = vmatmul.f32.gmra.mxu0 %v2161
      %v2276 = vpop.f32.mrf.mxu0
      %v2277 = vadd.f32 0.0, %v2276
      %2278 = vmatmul.f32.gmra.mxu0 %v2164
      %v2279 = vpop.f32.mrf.mxu0
      %v2280 = vadd.f32 0.0, %v2279
      %2281 = vmatmul.f32.gmra.mxu0 %v2167
      %v2282 = vpop.f32.mrf.mxu0
      %v2283 = vadd.f32 0.0, %v2282
      %2284 = vmatmul.f32.gmra.mxu0 %v2170
      %v2285 = vpop.f32.mrf.mxu0
      %v2286 = vadd.f32 0.0, %v2285
      %2287 = vmatmul.f32.gmra.mxu0 %v2173
      %v2288 = vpop.f32.mrf.mxu0
      %v2289 = vadd.f32 0.0, %v2288
      %2290 = vmatmul.f32.gmra.mxu0 %v2176
      %v2291 = vpop.f32.mrf.mxu0
      %v2292 = vadd.f32 0.0, %v2291
      %2293 = vmatmul.f32.gmra.mxu0 %v2179
      %v2294 = vpop.f32.mrf.mxu0
      %v2295 = vadd.f32 0.0, %v2294
      %2296 = vmatmul.f32.gmra.mxu0 %v2182
      %v2297 = vpop.f32.mrf.mxu0
      %v2298 = vadd.f32 0.0, %v2297
      %2299 = vdwg.mxu0
      %v2300 = vadd.f32 %v2021, %v2205
      %v2301 = vadd.f32 %v2022, %v2208
      %v2302 = vadd.f32 %v2023, %v2211
      %v2303 = vadd.f32 %v2024, %v2214
      %v2304 = vadd.f32 %v2025, %v2217
      %v2305 = vadd.f32 %v2026, %v2220
      %v2306 = vadd.f32 %v2027, %v2223
      %v2307 = vadd.f32 %v2028, %v2226
      %v2308 = vadd.f32 %v2029, %v2229
      %v2309 = vadd.f32 %v2030, %v2232
      %v2310 = vadd.f32 %v2031, %v2235
      %v2311 = vadd.f32 %v2032, %v2238
      %v2312 = vadd.f32 %v2033, %v2241
      %v2313 = vadd.f32 %v2034, %v2244
      %v2314 = vadd.f32 %v2035, %v2247
      %v2315 = vadd.f32 %v2036, %v2250
      %v2316 = vadd.f32 %v2037, %v2253
      %v2317 = vadd.f32 %v2038, %v2256
      %v2318 = vadd.f32 %v2039, %v2259
      %v2319 = vadd.f32 %v2040, %v2262
      %v2320 = vadd.f32 %v2041, %v2265
      %v2321 = vadd.f32 %v2042, %v2268
      %v2322 = vadd.f32 %v2043, %v2271
      %v2323 = vadd.f32 %v2044, %v2274
      %v2324 = vadd.f32 %v2045, %v2277
      %v2325 = vadd.f32 %v2046, %v2280
      %v2326 = vadd.f32 %v2047, %v2283
      %v2327 = vadd.f32 %v2048, %v2286
      %v2328 = vadd.f32 %v2049, %v2289
      %v2329 = vadd.f32 %v2050, %v2292
      %v2330 = vadd.f32 %v2051, %v2295
      %v2331 = vadd.f32 %v2052, %v2298
      %v2332 = vld [vmem:[%s2053 + $0x8] sm:$0xff]
      %v2333 = vld [vmem:[%s2053 + $0x10] sm:$0xff]
      %v2334 = vld [vmem:[%s2053 + $0x28] sm:$0xff]
      %v2335 = vld [vmem:[%s2053 + $0x30] sm:$0xff]
      %v2336 = vld [vmem:[%s2053 + $0x48] sm:$0xff]
      %v2337 = vld [vmem:[%s2053 + $0x50] sm:$0xff]
      %v2338 = vld [vmem:[%s2053 + $0x68] sm:$0xff]
      %v2339 = vld [vmem:[%s2053 + $0x70] sm:$0xff]
      %v2340 = vld [vmem:[%s2053 + $0x88] sm:$0xff]
      %v2341 = vld [vmem:[%s2053 + $0x90] sm:$0xff]
      %v2342 = vld [vmem:[%s2053 + $0xa8] sm:$0xff]
      %v2343 = vld [vmem:[%s2053 + $0xb0] sm:$0xff]
      %v2344 = vld [vmem:[%s2053 + $0xc8] sm:$0xff]
      %v2345 = vld [vmem:[%s2053 + $0xd0] sm:$0xff]
      %v2346 = vld [vmem:[%s2053 + $0xe8] sm:$0xff]
      %v2347 = vld [vmem:[%s2053 + $0xf0] sm:$0xff]
      %v2348 = vld [vmem:[%s2053 + $0x108] sm:$0xff]
      %v2349 = vld [vmem:[%s2053 + $0x110] sm:$0xff]
      %v2350 = vld [vmem:[%s2053 + $0x128] sm:$0xff]
      %v2351 = vld [vmem:[%s2053 + $0x130] sm:$0xff]
      %v2352 = vld [vmem:[%s2053 + $0x148] sm:$0xff]
      %v2353 = vld [vmem:[%s2053 + $0x150] sm:$0xff]
      %v2354 = vld [vmem:[%s2053 + $0x168] sm:$0xff]
      %v2355 = vld [vmem:[%s2053 + $0x170] sm:$0xff]
      %v2356 = vld [vmem:[%s2053 + $0x188] sm:$0xff]
      %v2357 = vld [vmem:[%s2053 + $0x190] sm:$0xff]
      %v2358 = vld [vmem:[%s2053 + $0x1a8] sm:$0xff]
      %v2359 = vld [vmem:[%s2053 + $0x1b0] sm:$0xff]
      %v2360 = vld [vmem:[%s2053 + $0x1c8] sm:$0xff]
      %v2361 = vld [vmem:[%s2053 + $0x1d0] sm:$0xff]
      %v2362 = vld [vmem:[%s2053 + $0x1e8] sm:$0xff]
      %v2363 = vld [vmem:[%s2053 + $0x1f0] sm:$0xff]
      %s2364 = scalar_lea.vmem %s1, 28
      %v2365 = vld [vmem:[%s2364] sm:$0xf]
      %v2367 = vsel %vm343, %v2332, 0
      %v2370 = vsel %vm343, %v2333, 0
      %v2373 = vsel %vm343, %v2334, 0
      %v2376 = vsel %vm343, %v2335, 0
      %v2379 = vsel %vm343, %v2336, 0
      %v2382 = vsel %vm343, %v2337, 0
      %v2385 = vsel %vm343, %v2338, 0
      %v2388 = vsel %vm343, %v2339, 0
      %v2391 = vsel %vm343, %v2340, 0
      %v2394 = vsel %vm343, %v2341, 0
      %v2397 = vsel %vm343, %v2342, 0
      %v2400 = vsel %vm343, %v2343, 0
      %v2403 = vsel %vm343, %v2344, 0
      %v2406 = vsel %vm343, %v2345, 0
      %v2409 = vsel %vm343, %v2346, 0
      %v2412 = vsel %vm343, %v2347, 0
      %v2415 = vsel %vm343, %v2348, 0
      %v2418 = vsel %vm343, %v2349, 0
      %v2421 = vsel %vm343, %v2350, 0
      %v2424 = vsel %vm343, %v2351, 0
      %v2427 = vsel %vm343, %v2352, 0
      %v2430 = vsel %vm343, %v2353, 0
      %v2433 = vsel %vm343, %v2354, 0
      %v2436 = vsel %vm343, %v2355, 0
      %v2439 = vsel %vm343, %v2356, 0
      %v2442 = vsel %vm343, %v2357, 0
      %v2445 = vsel %vm343, %v2358, 0
      %v2448 = vsel %vm343, %v2359, 0
      %v2451 = vsel %vm343, %v2360, 0
      %v2454 = vsel %vm343, %v2361, 0
      %v2457 = vsel %vm343, %v2362, 0
      %v2460 = vsel %vm343, %v2363, 0
      %v2463 = vsel %vm612, %v2365, 0
      %2465 = vmatpush.msra.mxu0 0.0
      %2466 = vmatpush.msra.mxu0 0.0
      %2467 = vmatpush.msra.mxu0 0.0
      %2468 = vmatpush.msra.mxu0 0.0
      %2469 = vmatpush.msra.mxu0 0.0
      %2470 = vmatpush.msra.mxu0 0.0
      %2471 = vmatpush.msra.mxu0 0.0
      %2472 = vmatpush.msra.mxu0 0.0
      %2473 = vmatpush.msra.mxu0 0.0
      %2474 = vmatpush.msra.mxu0 0.0
      %2475 = vmatpush.msra.mxu0 0.0
      %2476 = vmatpush.msra.mxu0 0.0
      %2477 = vmatpush.msra.mxu0 0.0
      %2478 = vmatpush.msra.mxu0 0.0
      %2479 = vmatpush.msra.mxu0 0.0
      %2480 = vmatpush.msra.mxu0 %v2463
      %2481 = vmatmul.f32.gmra.mxu0 %v2367
      %v2482 = vpop.f32.mrf.mxu0
      %v2483 = vadd.f32 0.0, %v2482
      %2484 = vmatmul.f32.gmra.mxu0 %v2370
      %v2485 = vpop.f32.mrf.mxu0
      %v2486 = vadd.f32 0.0, %v2485
      %2487 = vmatmul.f32.gmra.mxu0 %v2373
      %v2488 = vpop.f32.mrf.mxu0
      %v2489 = vadd.f32 0.0, %v2488
      %2490 = vmatmul.f32.gmra.mxu0 %v2376
      %v2491 = vpop.f32.mrf.mxu0
      %v2492 = vadd.f32 0.0, %v2491
      %2493 = vmatmul.f32.gmra.mxu0 %v2379
      %v2494 = vpop.f32.mrf.mxu0
      %v2495 = vadd.f32 0.0, %v2494
      %2496 = vmatmul.f32.gmra.mxu0 %v2382
      %v2497 = vpop.f32.mrf.mxu0
      %v2498 = vadd.f32 0.0, %v2497
      %2499 = vmatmul.f32.gmra.mxu0 %v2385
      %v2500 = vpop.f32.mrf.mxu0
      %v2501 = vadd.f32 0.0, %v2500
      %2502 = vmatmul.f32.gmra.mxu0 %v2388
      %v2503 = vpop.f32.mrf.mxu0
      %v2504 = vadd.f32 0.0, %v2503
      %2505 = vmatmul.f32.gmra.mxu0 %v2391
      %v2506 = vpop.f32.mrf.mxu0
      %v2507 = vadd.f32 0.0, %v2506
      %2508 = vmatmul.f32.gmra.mxu0 %v2394
      %v2509 = vpop.f32.mrf.mxu0
      %v2510 = vadd.f32 0.0, %v2509
      %2511 = vmatmul.f32.gmra.mxu0 %v2397
      %v2512 = vpop.f32.mrf.mxu0
      %v2513 = vadd.f32 0.0, %v2512
      %2514 = vmatmul.f32.gmra.mxu0 %v2400
      %v2515 = vpop.f32.mrf.mxu0
      %v2516 = vadd.f32 0.0, %v2515
      %2517 = vmatmul.f32.gmra.mxu0 %v2403
      %v2518 = vpop.f32.mrf.mxu0
      %v2519 = vadd.f32 0.0, %v2518
      %2520 = vmatmul.f32.gmra.mxu0 %v2406
      %v2521 = vpop.f32.mrf.mxu0
      %v2522 = vadd.f32 0.0, %v2521
      %2523 = vmatmul.f32.gmra.mxu0 %v2409
      %v2524 = vpop.f32.mrf.mxu0
      %v2525 = vadd.f32 0.0, %v2524
      %2526 = vmatmul.f32.gmra.mxu0 %v2412
      %v2527 = vpop.f32.mrf.mxu0
      %v2528 = vadd.f32 0.0, %v2527
      %2529 = vmatmul.f32.gmra.mxu0 %v2415
      %v2530 = vpop.f32.mrf.mxu0
      %v2531 = vadd.f32 0.0, %v2530
      %2532 = vmatmul.f32.gmra.mxu0 %v2418
      %v2533 = vpop.f32.mrf.mxu0
      %v2534 = vadd.f32 0.0, %v2533
      %2535 = vmatmul.f32.gmra.mxu0 %v2421
      %v2536 = vpop.f32.mrf.mxu0
      %v2537 = vadd.f32 0.0, %v2536
      %2538 = vmatmul.f32.gmra.mxu0 %v2424
      %v2539 = vpop.f32.mrf.mxu0
      %v2540 = vadd.f32 0.0, %v2539
      %2541 = vmatmul.f32.gmra.mxu0 %v2427
      %v2542 = vpop.f32.mrf.mxu0
      %v2543 = vadd.f32 0.0, %v2542
      %2544 = vmatmul.f32.gmra.mxu0 %v2430
      %v2545 = vpop.f32.mrf.mxu0
      %v2546 = vadd.f32 0.0, %v2545
      %2547 = vmatmul.f32.gmra.mxu0 %v2433
      %v2548 = vpop.f32.mrf.mxu0
      %v2549 = vadd.f32 0.0, %v2548
      %2550 = vmatmul.f32.gmra.mxu0 %v2436
      %v2551 = vpop.f32.mrf.mxu0
      %v2552 = vadd.f32 0.0, %v2551
      %2553 = vmatmul.f32.gmra.mxu0 %v2439
      %v2554 = vpop.f32.mrf.mxu0
      %v2555 = vadd.f32 0.0, %v2554
      %2556 = vmatmul.f32.gmra.mxu0 %v2442
      %v2557 = vpop.f32.mrf.mxu0
      %v2558 = vadd.f32 0.0, %v2557
      %2559 = vmatmul.f32.gmra.mxu0 %v2445
      %v2560 = vpop.f32.mrf.mxu0
      %v2561 = vadd.f32 0.0, %v2560
      %2562 = vmatmul.f32.gmra.mxu0 %v2448
      %v2563 = vpop.f32.mrf.mxu0
      %v2564 = vadd.f32 0.0, %v2563
      %2565 = vmatmul.f32.gmra.mxu0 %v2451
      %v2566 = vpop.f32.mrf.mxu0
      %v2567 = vadd.f32 0.0, %v2566
      %2568 = vmatmul.f32.gmra.mxu0 %v2454
      %v2569 = vpop.f32.mrf.mxu0
      %v2570 = vadd.f32 0.0, %v2569
      %2571 = vmatmul.f32.gmra.mxu0 %v2457
      %v2572 = vpop.f32.mrf.mxu0
      %v2573 = vadd.f32 0.0, %v2572
      %2574 = vmatmul.f32.gmra.mxu0 %v2460
      %v2575 = vpop.f32.mrf.mxu0
      %v2576 = vadd.f32 0.0, %v2575
      %2577 = vdwg.mxu0
      %v2578 = vadd.f32 %v2300, %v2483
      %v2579 = vadd.f32 %v2301, %v2486
      %v2580 = vadd.f32 %v2302, %v2489
      %v2581 = vadd.f32 %v2303, %v2492
      %v2582 = vadd.f32 %v2304, %v2495
      %v2583 = vadd.f32 %v2305, %v2498
      %v2584 = vadd.f32 %v2306, %v2501
      %v2585 = vadd.f32 %v2307, %v2504
      %v2586 = vadd.f32 %v2308, %v2507
      %v2587 = vadd.f32 %v2309, %v2510
      %v2588 = vadd.f32 %v2310, %v2513
      %v2589 = vadd.f32 %v2311, %v2516
      %v2590 = vadd.f32 %v2312, %v2519
      %v2591 = vadd.f32 %v2313, %v2522
      %v2592 = vadd.f32 %v2314, %v2525
      %v2593 = vadd.f32 %v2315, %v2528
      %v2594 = vadd.f32 %v2316, %v2531
      %v2595 = vadd.f32 %v2317, %v2534
      %v2596 = vadd.f32 %v2318, %v2537
      %v2597 = vadd.f32 %v2319, %v2540
      %v2598 = vadd.f32 %v2320, %v2543
      %v2599 = vadd.f32 %v2321, %v2546
      %v2600 = vadd.f32 %v2322, %v2549
      %v2601 = vadd.f32 %v2323, %v2552
      %v2602 = vadd.f32 %v2324, %v2555
      %v2603 = vadd.f32 %v2325, %v2558
      %v2604 = vadd.f32 %v2326, %v2561
      %v2605 = vadd.f32 %v2327, %v2564
      %v2606 = vadd.f32 %v2328, %v2567
      %v2607 = vadd.f32 %v2329, %v2570
      %v2608 = vadd.f32 %v2330, %v2573
      %v2609 = vadd.f32 %v2331, %v2576
      %v2610 = vld [vmem:[%s2053 + $0x9] sm:$0xff]
      %v2611 = vld [vmem:[%s2053 + $0x11] sm:$0xff]
      %v2612 = vld [vmem:[%s2053 + $0x29] sm:$0xff]
      %v2613 = vld [vmem:[%s2053 + $0x31] sm:$0xff]
      %v2614 = vld [vmem:[%s2053 + $0x49] sm:$0xff]
      %v2615 = vld [vmem:[%s2053 + $0x51] sm:$0xff]
      %v2616 = vld [vmem:[%s2053 + $0x69] sm:$0xff]
      %v2617 = vld [vmem:[%s2053 + $0x71] sm:$0xff]
      %v2618 = vld [vmem:[%s2053 + $0x89] sm:$0xff]
      %v2619 = vld [vmem:[%s2053 + $0x91] sm:$0xff]
      %v2620 = vld [vmem:[%s2053 + $0xa9] sm:$0xff]
      %v2621 = vld [vmem:[%s2053 + $0xb1] sm:$0xff]
      %v2622 = vld [vmem:[%s2053 + $0xc9] sm:$0xff]
      %v2623 = vld [vmem:[%s2053 + $0xd1] sm:$0xff]
      %v2624 = vld [vmem:[%s2053 + $0xe9] sm:$0xff]
      %v2625 = vld [vmem:[%s2053 + $0xf1] sm:$0xff]
      %v2626 = vld [vmem:[%s2053 + $0x109] sm:$0xff]
      %v2627 = vld [vmem:[%s2053 + $0x111] sm:$0xff]
      %v2628 = vld [vmem:[%s2053 + $0x129] sm:$0xff]
      %v2629 = vld [vmem:[%s2053 + $0x131] sm:$0xff]
      %v2630 = vld [vmem:[%s2053 + $0x149] sm:$0xff]
      %v2631 = vld [vmem:[%s2053 + $0x151] sm:$0xff]
      %v2632 = vld [vmem:[%s2053 + $0x169] sm:$0xff]
      %v2633 = vld [vmem:[%s2053 + $0x171] sm:$0xff]
      %v2634 = vld [vmem:[%s2053 + $0x189] sm:$0xff]
      %v2635 = vld [vmem:[%s2053 + $0x191] sm:$0xff]
      %v2636 = vld [vmem:[%s2053 + $0x1a9] sm:$0xff]
      %v2637 = vld [vmem:[%s2053 + $0x1b1] sm:$0xff]
      %v2638 = vld [vmem:[%s2053 + $0x1c9] sm:$0xff]
      %v2639 = vld [vmem:[%s2053 + $0x1d1] sm:$0xff]
      %v2640 = vld [vmem:[%s2053 + $0x1e9] sm:$0xff]
      %v2641 = vld [vmem:[%s2053 + $0x1f1] sm:$0xff]
      %s2642 = scalar_lea.vmem %s1, 32
      %v2643 = vld [vmem:[%s2642] sm:$0xf]
      %v2645 = vsel %vm343, %v2610, 0
      %v2648 = vsel %vm343, %v2611, 0
      %v2651 = vsel %vm343, %v2612, 0
      %v2654 = vsel %vm343, %v2613, 0
      %v2657 = vsel %vm343, %v2614, 0
      %v2660 = vsel %vm343, %v2615, 0
      %v2663 = vsel %vm343, %v2616, 0
      %v2666 = vsel %vm343, %v2617, 0
      %v2669 = vsel %vm343, %v2618, 0
      %v2672 = vsel %vm343, %v2619, 0
      %v2675 = vsel %vm343, %v2620, 0
      %v2678 = vsel %vm343, %v2621, 0
      %v2681 = vsel %vm343, %v2622, 0
      %v2684 = vsel %vm343, %v2623, 0
      %v2687 = vsel %vm343, %v2624, 0
      %v2690 = vsel %vm343, %v2625, 0
      %v2693 = vsel %vm343, %v2626, 0
      %v2696 = vsel %vm343, %v2627, 0
      %v2699 = vsel %vm343, %v2628, 0
      %v2702 = vsel %vm343, %v2629, 0
      %v2705 = vsel %vm343, %v2630, 0
      %v2708 = vsel %vm343, %v2631, 0
      %v2711 = vsel %vm343, %v2632, 0
      %v2714 = vsel %vm343, %v2633, 0
      %v2717 = vsel %vm343, %v2634, 0
      %v2720 = vsel %vm343, %v2635, 0
      %v2723 = vsel %vm343, %v2636, 0
      %v2726 = vsel %vm343, %v2637, 0
      %v2729 = vsel %vm343, %v2638, 0
      %v2732 = vsel %vm343, %v2639, 0
      %v2735 = vsel %vm343, %v2640, 0
      %v2738 = vsel %vm343, %v2641, 0
      %v2741 = vsel %vm612, %v2643, 0
      %2743 = vmatpush.msra.mxu0 0.0
      %2744 = vmatpush.msra.mxu0 0.0
      %2745 = vmatpush.msra.mxu0 0.0
      %2746 = vmatpush.msra.mxu0 0.0
      %2747 = vmatpush.msra.mxu0 0.0
      %2748 = vmatpush.msra.mxu0 0.0
      %2749 = vmatpush.msra.mxu0 0.0
      %2750 = vmatpush.msra.mxu0 0.0
      %2751 = vmatpush.msra.mxu0 0.0
      %2752 = vmatpush.msra.mxu0 0.0
      %2753 = vmatpush.msra.mxu0 0.0
      %2754 = vmatpush.msra.mxu0 0.0
      %2755 = vmatpush.msra.mxu0 0.0
      %2756 = vmatpush.msra.mxu0 0.0
      %2757 = vmatpush.msra.mxu0 0.0
      %2758 = vmatpush.msra.mxu0 %v2741
      %2759 = vmatmul.f32.gmra.mxu0 %v2645
      %v2760 = vpop.f32.mrf.mxu0
      %v2761 = vadd.f32 0.0, %v2760
      %2762 = vmatmul.f32.gmra.mxu0 %v2648
      %v2763 = vpop.f32.mrf.mxu0
      %v2764 = vadd.f32 0.0, %v2763
      %2765 = vmatmul.f32.gmra.mxu0 %v2651
      %v2766 = vpop.f32.mrf.mxu0
      %v2767 = vadd.f32 0.0, %v2766
      %2768 = vmatmul.f32.gmra.mxu0 %v2654
      %v2769 = vpop.f32.mrf.mxu0
      %v2770 = vadd.f32 0.0, %v2769
      %2771 = vmatmul.f32.gmra.mxu0 %v2657
      %v2772 = vpop.f32.mrf.mxu0
      %v2773 = vadd.f32 0.0, %v2772
      %2774 = vmatmul.f32.gmra.mxu0 %v2660
      %v2775 = vpop.f32.mrf.mxu0
      %v2776 = vadd.f32 0.0, %v2775
      %2777 = vmatmul.f32.gmra.mxu0 %v2663
      %v2778 = vpop.f32.mrf.mxu0
      %v2779 = vadd.f32 0.0, %v2778
      %2780 = vmatmul.f32.gmra.mxu0 %v2666
      %v2781 = vpop.f32.mrf.mxu0
      %v2782 = vadd.f32 0.0, %v2781
      %2783 = vmatmul.f32.gmra.mxu0 %v2669
      %v2784 = vpop.f32.mrf.mxu0
      %v2785 = vadd.f32 0.0, %v2784
      %2786 = vmatmul.f32.gmra.mxu0 %v2672
      %v2787 = vpop.f32.mrf.mxu0
      %v2788 = vadd.f32 0.0, %v2787
      %2789 = vmatmul.f32.gmra.mxu0 %v2675
      %v2790 = vpop.f32.mrf.mxu0
      %v2791 = vadd.f32 0.0, %v2790
      %2792 = vmatmul.f32.gmra.mxu0 %v2678
      %v2793 = vpop.f32.mrf.mxu0
      %v2794 = vadd.f32 0.0, %v2793
      %2795 = vmatmul.f32.gmra.mxu0 %v2681
      %v2796 = vpop.f32.mrf.mxu0
      %v2797 = vadd.f32 0.0, %v2796
      %2798 = vmatmul.f32.gmra.mxu0 %v2684
      %v2799 = vpop.f32.mrf.mxu0
      %v2800 = vadd.f32 0.0, %v2799
      %2801 = vmatmul.f32.gmra.mxu0 %v2687
      %v2802 = vpop.f32.mrf.mxu0
      %v2803 = vadd.f32 0.0, %v2802
      %2804 = vmatmul.f32.gmra.mxu0 %v2690
      %v2805 = vpop.f32.mrf.mxu0
      %v2806 = vadd.f32 0.0, %v2805
      %2807 = vmatmul.f32.gmra.mxu0 %v2693
      %v2808 = vpop.f32.mrf.mxu0
      %v2809 = vadd.f32 0.0, %v2808
      %2810 = vmatmul.f32.gmra.mxu0 %v2696
      %v2811 = vpop.f32.mrf.mxu0
      %v2812 = vadd.f32 0.0, %v2811
      %2813 = vmatmul.f32.gmra.mxu0 %v2699
      %v2814 = vpop.f32.mrf.mxu0
      %v2815 = vadd.f32 0.0, %v2814
      %2816 = vmatmul.f32.gmra.mxu0 %v2702
      %v2817 = vpop.f32.mrf.mxu0
      %v2818 = vadd.f32 0.0, %v2817
      %2819 = vmatmul.f32.gmra.mxu0 %v2705
      %v2820 = vpop.f32.mrf.mxu0
      %v2821 = vadd.f32 0.0, %v2820
      %2822 = vmatmul.f32.gmra.mxu0 %v2708
      %v2823 = vpop.f32.mrf.mxu0
      %v2824 = vadd.f32 0.0, %v2823
      %2825 = vmatmul.f32.gmra.mxu0 %v2711
      %v2826 = vpop.f32.mrf.mxu0
      %v2827 = vadd.f32 0.0, %v2826
      %2828 = vmatmul.f32.gmra.mxu0 %v2714
      %v2829 = vpop.f32.mrf.mxu0
      %v2830 = vadd.f32 0.0, %v2829
      %2831 = vmatmul.f32.gmra.mxu0 %v2717
      %v2832 = vpop.f32.mrf.mxu0
      %v2833 = vadd.f32 0.0, %v2832
      %2834 = vmatmul.f32.gmra.mxu0 %v2720
      %v2835 = vpop.f32.mrf.mxu0
      %v2836 = vadd.f32 0.0, %v2835
      %2837 = vmatmul.f32.gmra.mxu0 %v2723
      %v2838 = vpop.f32.mrf.mxu0
      %v2839 = vadd.f32 0.0, %v2838
      %2840 = vmatmul.f32.gmra.mxu0 %v2726
      %v2841 = vpop.f32.mrf.mxu0
      %v2842 = vadd.f32 0.0, %v2841
      %2843 = vmatmul.f32.gmra.mxu0 %v2729
      %v2844 = vpop.f32.mrf.mxu0
      %v2845 = vadd.f32 0.0, %v2844
      %2846 = vmatmul.f32.gmra.mxu0 %v2732
      %v2847 = vpop.f32.mrf.mxu0
      %v2848 = vadd.f32 0.0, %v2847
      %2849 = vmatmul.f32.gmra.mxu0 %v2735
      %v2850 = vpop.f32.mrf.mxu0
      %v2851 = vadd.f32 0.0, %v2850
      %2852 = vmatmul.f32.gmra.mxu0 %v2738
      %v2853 = vpop.f32.mrf.mxu0
      %v2854 = vadd.f32 0.0, %v2853
      %2855 = vdwg.mxu0
      %v2856 = vadd.f32 %v2578, %v2761
      %v2857 = vadd.f32 %v2579, %v2764
      %v2858 = vadd.f32 %v2580, %v2767
      %v2859 = vadd.f32 %v2581, %v2770
      %v2860 = vadd.f32 %v2582, %v2773
      %v2861 = vadd.f32 %v2583, %v2776
      %v2862 = vadd.f32 %v2584, %v2779
      %v2863 = vadd.f32 %v2585, %v2782
      %v2864 = vadd.f32 %v2586, %v2785
      %v2865 = vadd.f32 %v2587, %v2788
      %v2866 = vadd.f32 %v2588, %v2791
      %v2867 = vadd.f32 %v2589, %v2794
      %v2868 = vadd.f32 %v2590, %v2797
      %v2869 = vadd.f32 %v2591, %v2800
      %v2870 = vadd.f32 %v2592, %v2803
      %v2871 = vadd.f32 %v2593, %v2806
      %v2872 = vadd.f32 %v2594, %v2809
      %v2873 = vadd.f32 %v2595, %v2812
      %v2874 = vadd.f32 %v2596, %v2815
      %v2875 = vadd.f32 %v2597, %v2818
      %v2876 = vadd.f32 %v2598, %v2821
      %v2877 = vadd.f32 %v2599, %v2824
      %v2878 = vadd.f32 %v2600, %v2827
      %v2879 = vadd.f32 %v2601, %v2830
      %v2880 = vadd.f32 %v2602, %v2833
      %v2881 = vadd.f32 %v2603, %v2836
      %v2882 = vadd.f32 %v2604, %v2839
      %v2883 = vadd.f32 %v2605, %v2842
      %v2884 = vadd.f32 %v2606, %v2845
      %v2885 = vadd.f32 %v2607, %v2848
      %v2886 = vadd.f32 %v2608, %v2851
      %v2887 = vadd.f32 %v2609, %v2854
      %v2888 = vld [vmem:[%s2] sm:$0x1]
      %v2890 = vperm.slane %v2888, 0
      %v2892 = vadd.f32 %v2856, %v2890
      %v2893 = vadd.f32 %v2857, %v2890
      %v2894 = vadd.f32 %v2858, %v2890
      %v2895 = vadd.f32 %v2859, %v2890
      %v2896 = vadd.f32 %v2860, %v2890
      %v2897 = vadd.f32 %v2861, %v2890
      %v2898 = vadd.f32 %v2862, %v2890
      %v2899 = vadd.f32 %v2863, %v2890
      %v2900 = vadd.f32 %v2864, %v2890
      %v2901 = vadd.f32 %v2865, %v2890
      %v2902 = vadd.f32 %v2866, %v2890
      %v2903 = vadd.f32 %v2867, %v2890
      %v2904 = vadd.f32 %v2868, %v2890
      %v2905 = vadd.f32 %v2869, %v2890
      %v2906 = vadd.f32 %v2870, %v2890
      %v2907 = vadd.f32 %v2871, %v2890
      %v2908 = vadd.f32 %v2872, %v2890
      %v2909 = vadd.f32 %v2873, %v2890
      %v2910 = vadd.f32 %v2874, %v2890
      %v2911 = vadd.f32 %v2875, %v2890
      %v2912 = vadd.f32 %v2876, %v2890
      %v2913 = vadd.f32 %v2877, %v2890
      %v2914 = vadd.f32 %v2878, %v2890
      %v2915 = vadd.f32 %v2879, %v2890
      %v2916 = vadd.f32 %v2880, %v2890
      %v2917 = vadd.f32 %v2881, %v2890
      %v2918 = vadd.f32 %v2882, %v2890
      %v2919 = vadd.f32 %v2883, %v2890
      %v2920 = vadd.f32 %v2884, %v2890
      %v2921 = vadd.f32 %v2885, %v2890
      %v2922 = vadd.f32 %v2886, %v2890
      %v2923 = vadd.f32 %v2887, %v2890
      %v2924 = vmax.f32 %v2892, 0.0
      %v2925 = vmax.f32 %v2893, 0.0
      %v2926 = vmax.f32 %v2894, 0.0
      %v2927 = vmax.f32 %v2895, 0.0
      %v2928 = vmax.f32 %v2896, 0.0
      %v2929 = vmax.f32 %v2897, 0.0
      %v2930 = vmax.f32 %v2898, 0.0
      %v2931 = vmax.f32 %v2899, 0.0
      %v2932 = vmax.f32 %v2900, 0.0
      %v2933 = vmax.f32 %v2901, 0.0
      %v2934 = vmax.f32 %v2902, 0.0
      %v2935 = vmax.f32 %v2903, 0.0
      %v2936 = vmax.f32 %v2904, 0.0
      %v2937 = vmax.f32 %v2905, 0.0
      %v2938 = vmax.f32 %v2906, 0.0
      %v2939 = vmax.f32 %v2907, 0.0
      %v2940 = vmax.f32 %v2908, 0.0
      %v2941 = vmax.f32 %v2909, 0.0
      %v2942 = vmax.f32 %v2910, 0.0
      %v2943 = vmax.f32 %v2911, 0.0
      %v2944 = vmax.f32 %v2912, 0.0
      %v2945 = vmax.f32 %v2913, 0.0
      %v2946 = vmax.f32 %v2914, 0.0
      %v2947 = vmax.f32 %v2915, 0.0
      %v2948 = vmax.f32 %v2916, 0.0
      %v2949 = vmax.f32 %v2917, 0.0
      %v2950 = vmax.f32 %v2918, 0.0
      %v2951 = vmax.f32 %v2919, 0.0
      %v2952 = vmax.f32 %v2920, 0.0
      %v2953 = vmax.f32 %v2921, 0.0
      %v2954 = vmax.f32 %v2922, 0.0
      %v2955 = vmax.f32 %v2923, 0.0
      %vm2956 = vcmask 64512
      %2957 = vst.msk [vmem:[#allocation3] sm:$0xff] %vm2956, 0.0
      %2958 = vst.msk [vmem:[#allocation3 + $0x8] sm:$0xff] %vm2956, 0.0
      %2959 = vst.msk [vmem:[#allocation3 + $0x10] sm:$0xff] %vm2956, 0.0
      %2960 = vst.msk [vmem:[#allocation3 + $0x18] sm:$0xff] %vm2956, 0.0
      %2961 = vst.msk [vmem:[#allocation3 + $0x20] sm:$0xff] %vm2956, 0.0
      %2962 = vst.msk [vmem:[#allocation3 + $0x28] sm:$0xff] %vm2956, 0.0
      %2963 = vst.msk [vmem:[#allocation3 + $0x30] sm:$0xff] %vm2956, 0.0
      %2964 = vst.msk [vmem:[#allocation3 + $0x38] sm:$0xff] %vm2956, 0.0
      %2965 = vst.msk [vmem:[#allocation3 + $0x40] sm:$0xff] %vm2956, 0.0
      %2966 = vst.msk [vmem:[#allocation3 + $0x48] sm:$0xff] %vm2956, 0.0
      %2967 = vst.msk [vmem:[#allocation3 + $0x50] sm:$0xff] %vm2956, 0.0
      %2968 = vst.msk [vmem:[#allocation3 + $0x58] sm:$0xff] %vm2956, 0.0
      %2969 = vst.msk [vmem:[#allocation3 + $0x60] sm:$0xff] %vm2956, 0.0
      %2970 = vst.msk [vmem:[#allocation3 + $0x68] sm:$0xff] %vm2956, 0.0
      %2971 = vst.msk [vmem:[#allocation3 + $0x70] sm:$0xff] %vm2956, 0.0
      %2972 = vst.msk [vmem:[#allocation3 + $0x78] sm:$0xff] %vm2956, 0.0
      %2973 = vst.msk [vmem:[#allocation3 + $0x80] sm:$0xff] %vm2956, 0.0
      %2974 = vst.msk [vmem:[#allocation3 + $0x88] sm:$0xff] %vm2956, 0.0
      %2975 = vst.msk [vmem:[#allocation3 + $0x90] sm:$0xff] %vm2956, 0.0
      %2976 = vst.msk [vmem:[#allocation3 + $0x98] sm:$0xff] %vm2956, 0.0
      %2977 = vst.msk [vmem:[#allocation3 + $0xa0] sm:$0xff] %vm2956, 0.0
      %2978 = vst.msk [vmem:[#allocation3 + $0xa8] sm:$0xff] %vm2956, 0.0
      %2979 = vst.msk [vmem:[#allocation3 + $0xb0] sm:$0xff] %vm2956, 0.0
      %2980 = vst.msk [vmem:[#allocation3 + $0xb8] sm:$0xff] %vm2956, 0.0
      %2981 = vst.msk [vmem:[#allocation3 + $0xc0] sm:$0xff] %vm2956, 0.0
      %2982 = vst.msk [vmem:[#allocation3 + $0xc8] sm:$0xff] %vm2956, 0.0
      %2983 = vst.msk [vmem:[#allocation3 + $0xd0] sm:$0xff] %vm2956, 0.0
      %2984 = vst.msk [vmem:[#allocation3 + $0xd8] sm:$0xff] %vm2956, 0.0
      %2985 = vst.msk [vmem:[#allocation3 + $0xe0] sm:$0xff] %vm2956, 0.0
      %2986 = vst.msk [vmem:[#allocation3 + $0xe8] sm:$0xff] %vm2956, 0.0
      %2987 = vst.msk [vmem:[#allocation3 + $0xf0] sm:$0xff] %vm2956, 0.0
      %2988 = vst.msk [vmem:[#allocation3 + $0xf8] sm:$0xff] %vm2956, 0.0
      %2989 = vst.msk [vmem:[#allocation3 + $0x100] sm:$0xff] %vm2956, 0.0
      %2990 = vst.msk [vmem:[#allocation3 + $0x108] sm:$0xff] %vm2956, 0.0
      %2991 = vst.msk [vmem:[#allocation3 + $0x110] sm:$0xff] %vm2956, 0.0
      %2992 = vst.msk [vmem:[#allocation3 + $0x118] sm:$0xff] %vm2956, 0.0
      %2993 = vst.msk [vmem:[#allocation3 + $0x120] sm:$0xff] %vm2956, 0.0
      %2994 = vst.msk [vmem:[#allocation3 + $0x128] sm:$0xff] %vm2956, 0.0
      %2995 = vst.msk [vmem:[#allocation3 + $0x130] sm:$0xff] %vm2956, 0.0
      %2996 = vst.msk [vmem:[#allocation3 + $0x138] sm:$0xff] %vm2956, 0.0
      %2997 = vst.msk [vmem:[#allocation3 + $0x140] sm:$0xff] %vm2956, 0.0
      %2998 = vst.msk [vmem:[#allocation3 + $0x148] sm:$0xff] %vm2956, 0.0
      %2999 = vst.msk [vmem:[#allocation3 + $0x150] sm:$0xff] %vm2956, 0.0
      %3000 = vst.msk [vmem:[#allocation3 + $0x158] sm:$0xff] %vm2956, 0.0
      %3001 = vst.msk [vmem:[#allocation3 + $0x160] sm:$0xff] %vm2956, 0.0
      %3002 = vst.msk [vmem:[#allocation3 + $0x168] sm:$0xff] %vm2956, 0.0
      %3003 = vst.msk [vmem:[#allocation3 + $0x170] sm:$0xff] %vm2956, 0.0
      %3004 = vst.msk [vmem:[#allocation3 + $0x178] sm:$0xff] %vm2956, 0.0
      %3005 = vst.msk [vmem:[#allocation3 + $0x180] sm:$0xff] %vm2956, 0.0
      %3006 = vst.msk [vmem:[#allocation3 + $0x188] sm:$0xff] %vm2956, 0.0
      %3007 = vst.msk [vmem:[#allocation3 + $0x190] sm:$0xff] %vm2956, 0.0
      %3008 = vst.msk [vmem:[#allocation3 + $0x198] sm:$0xff] %vm2956, 0.0
      %3009 = vst.msk [vmem:[#allocation3 + $0x1a0] sm:$0xff] %vm2956, 0.0
      %3010 = vst.msk [vmem:[#allocation3 + $0x1a8] sm:$0xff] %vm2956, 0.0
      %3011 = vst.msk [vmem:[#allocation3 + $0x1b0] sm:$0xff] %vm2956, 0.0
      %3012 = vst.msk [vmem:[#allocation3 + $0x1b8] sm:$0xff] %vm2956, 0.0
      %3013 = vst.msk [vmem:[#allocation3 + $0x1c0] sm:$0xff] %vm2956, 0.0
      %3014 = vst.msk [vmem:[#allocation3 + $0x1c8] sm:$0xff] %vm2956, 0.0
      %3015 = vst.msk [vmem:[#allocation3 + $0x1d0] sm:$0xff] %vm2956, 0.0
      %3016 = vst.msk [vmem:[#allocation3 + $0x1d8] sm:$0xff] %vm2956, 0.0
      %3017 = vst.msk [vmem:[#allocation3 + $0x1e0] sm:$0xff] %vm2956, 0.0
      %3018 = vst.msk [vmem:[#allocation3 + $0x1e8] sm:$0xff] %vm2956, 0.0
      %3019 = vst.msk [vmem:[#allocation3 + $0x1f0] sm:$0xff] %vm2956, 0.0
      %3020 = vst.msk [vmem:[#allocation3 + $0x1f8] sm:$0xff] %vm2956, 0.0
      %3021 = vst.msk [vmem:[#allocation3 + $0x200] sm:$0xff] %vm2956, 0.0
      %3022 = vst.msk [vmem:[#allocation3 + $0x208] sm:$0xff] %vm2956, 0.0
      %3023 = vst.msk [vmem:[#allocation3 + $0x210] sm:$0xff] %vm2956, 0.0
      %3024 = vst.msk [vmem:[#allocation3 + $0x218] sm:$0xff] %vm2956, 0.0
      %3025 = vst.msk [vmem:[#allocation3 + $0x220] sm:$0xff] %vm2956, 0.0
      %3026 = vst.msk [vmem:[#allocation3 + $0x228] sm:$0xff] %vm2956, 0.0
      %3027 = vst.msk [vmem:[#allocation3 + $0x230] sm:$0xff] %vm2956, 0.0
      %3028 = vst.msk [vmem:[#allocation3 + $0x238] sm:$0xff] %vm2956, 0.0
      %s3029 = scalar_lea.vmem [#allocation3], 32
      %3030 = vst.msk [vmem:[%s3029 + $0x8] sm:$0xff] %vm2956, %v2924
      %3031 = vst.msk [vmem:[%s3029 + $0x10] sm:$0xff] %vm2956, %v2925
      %3032 = vst.msk [vmem:[%s3029 + $0x28] sm:$0xff] %vm2956, %v2926
      %3033 = vst.msk [vmem:[%s3029 + $0x30] sm:$0xff] %vm2956, %v2927
      %3034 = vst.msk [vmem:[%s3029 + $0x48] sm:$0xff] %vm2956, %v2928
      %3035 = vst.msk [vmem:[%s3029 + $0x50] sm:$0xff] %vm2956, %v2929
      %3036 = vst.msk [vmem:[%s3029 + $0x68] sm:$0xff] %vm2956, %v2930
      %3037 = vst.msk [vmem:[%s3029 + $0x70] sm:$0xff] %vm2956, %v2931
      %3038 = vst.msk [vmem:[%s3029 + $0x88] sm:$0xff] %vm2956, %v2932
      %3039 = vst.msk [vmem:[%s3029 + $0x90] sm:$0xff] %vm2956, %v2933
      %3040 = vst.msk [vmem:[%s3029 + $0xa8] sm:$0xff] %vm2956, %v2934
      %3041 = vst.msk [vmem:[%s3029 + $0xb0] sm:$0xff] %vm2956, %v2935
      %3042 = vst.msk [vmem:[%s3029 + $0xc8] sm:$0xff] %vm2956, %v2936
      %3043 = vst.msk [vmem:[%s3029 + $0xd0] sm:$0xff] %vm2956, %v2937
      %3044 = vst.msk [vmem:[%s3029 + $0xe8] sm:$0xff] %vm2956, %v2938
      %3045 = vst.msk [vmem:[%s3029 + $0xf0] sm:$0xff] %vm2956, %v2939
      %3046 = vst.msk [vmem:[%s3029 + $0x108] sm:$0xff] %vm2956, %v2940
      %3047 = vst.msk [vmem:[%s3029 + $0x110] sm:$0xff] %vm2956, %v2941
      %3048 = vst.msk [vmem:[%s3029 + $0x128] sm:$0xff] %vm2956, %v2942
      %3049 = vst.msk [vmem:[%s3029 + $0x130] sm:$0xff] %vm2956, %v2943
      %3050 = vst.msk [vmem:[%s3029 + $0x148] sm:$0xff] %vm2956, %v2944
      %3051 = vst.msk [vmem:[%s3029 + $0x150] sm:$0xff] %vm2956, %v2945
      %3052 = vst.msk [vmem:[%s3029 + $0x168] sm:$0xff] %vm2956, %v2946
      %3053 = vst.msk [vmem:[%s3029 + $0x170] sm:$0xff] %vm2956, %v2947
      %3054 = vst.msk [vmem:[%s3029 + $0x188] sm:$0xff] %vm2956, %v2948
      %3055 = vst.msk [vmem:[%s3029 + $0x190] sm:$0xff] %vm2956, %v2949
      %3056 = vst.msk [vmem:[%s3029 + $0x1a8] sm:$0xff] %vm2956, %v2950
      %3057 = vst.msk [vmem:[%s3029 + $0x1b0] sm:$0xff] %vm2956, %v2951
      %3058 = vst.msk [vmem:[%s3029 + $0x1c8] sm:$0xff] %vm2956, %v2952
      %3059 = vst.msk [vmem:[%s3029 + $0x1d0] sm:$0xff] %vm2956, %v2953
      %3060 = vst.msk [vmem:[%s3029 + $0x1e8] sm:$0xff] %vm2956, %v2954
      %3061 = vst.msk [vmem:[%s3029 + $0x1f0] sm:$0xff] %vm2956, %v2955
      %v3062 = vld [vmem:[#allocation3 + $0x7] sm:$0xff]
      %v3063 = vld [vmem:[#allocation3 + $0xf] sm:$0xff]
      %v3064 = vld [vmem:[#allocation3 + $0x27] sm:$0xff]
      %v3065 = vld [vmem:[#allocation3 + $0x2f] sm:$0xff]
      %v3066 = vld [vmem:[#allocation3 + $0x47] sm:$0xff]
      %v3067 = vld [vmem:[#allocation3 + $0x4f] sm:$0xff]
      %v3068 = vld [vmem:[#allocation3 + $0x67] sm:$0xff]
      %v3069 = vld [vmem:[#allocation3 + $0x6f] sm:$0xff]
      %v3070 = vld [vmem:[#allocation3 + $0x87] sm:$0xff]
      %v3071 = vld [vmem:[#allocation3 + $0x8f] sm:$0xff]
      %v3072 = vld [vmem:[#allocation3 + $0xa7] sm:$0xff]
      %v3073 = vld [vmem:[#allocation3 + $0xaf] sm:$0xff]
      %v3074 = vld [vmem:[#allocation3 + $0xc7] sm:$0xff]
      %v3075 = vld [vmem:[#allocation3 + $0xcf] sm:$0xff]
      %v3076 = vld [vmem:[#allocation3 + $0xe7] sm:$0xff]
      %v3077 = vld [vmem:[#allocation3 + $0xef] sm:$0xff]
      %v3078 = vld [vmem:[#allocation3 + $0x107] sm:$0xff]
      %v3079 = vld [vmem:[#allocation3 + $0x10f] sm:$0xff]
      %v3080 = vld [vmem:[#allocation3 + $0x127] sm:$0xff]
      %v3081 = vld [vmem:[#allocation3 + $0x12f] sm:$0xff]
      %v3082 = vld [vmem:[#allocation3 + $0x147] sm:$0xff]
      %v3083 = vld [vmem:[#allocation3 + $0x14f] sm:$0xff]
      %v3084 = vld [vmem:[#allocation3 + $0x167] sm:$0xff]
      %v3085 = vld [vmem:[#allocation3 + $0x16f] sm:$0xff]
      %v3086 = vld [vmem:[#allocation3 + $0x187] sm:$0xff]
      %v3087 = vld [vmem:[#allocation3 + $0x18f] sm:$0xff]
      %v3088 = vld [vmem:[#allocation3 + $0x1a7] sm:$0xff]
      %v3089 = vld [vmem:[#allocation3 + $0x1af] sm:$0xff]
      %v3090 = vld [vmem:[#allocation3 + $0x1c7] sm:$0xff]
      %v3091 = vld [vmem:[#allocation3 + $0x1cf] sm:$0xff]
      %v3092 = vld [vmem:[#allocation3 + $0x1e7] sm:$0xff]
      %v3093 = vld [vmem:[#allocation3 + $0x1ef] sm:$0xff]
      %v3094 = vld [vmem:[%s3] sm:$0xff]
      %v3095 = vld [vmem:[#allocation3 + $0x8] sm:$0xff]
      %v3096 = vld [vmem:[#allocation3 + $0x10] sm:$0xff]
      %v3097 = vld [vmem:[#allocation3 + $0x28] sm:$0xff]
      %v3098 = vld [vmem:[#allocation3 + $0x30] sm:$0xff]
      %v3099 = vld [vmem:[#allocation3 + $0x48] sm:$0xff]
      %v3100 = vld [vmem:[#allocation3 + $0x50] sm:$0xff]
      %v3101 = vld [vmem:[#allocation3 + $0x68] sm:$0xff]
      %v3102 = vld [vmem:[#allocation3 + $0x70] sm:$0xff]
      %v3103 = vld [vmem:[#allocation3 + $0x88] sm:$0xff]
      %v3104 = vld [vmem:[#allocation3 + $0x90] sm:$0xff]
      %v3105 = vld [vmem:[#allocation3 + $0xa8] sm:$0xff]
      %v3106 = vld [vmem:[#allocation3 + $0xb0] sm:$0xff]
      %v3107 = vld [vmem:[#allocation3 + $0xc8] sm:$0xff]
      %v3108 = vld [vmem:[#allocation3 + $0xd0] sm:$0xff]
      %v3109 = vld [vmem:[#allocation3 + $0xe8] sm:$0xff]
      %v3110 = vld [vmem:[#allocation3 + $0xf0] sm:$0xff]
      %v3111 = vld [vmem:[#allocation3 + $0x108] sm:$0xff]
      %v3112 = vld [vmem:[#allocation3 + $0x110] sm:$0xff]
      %v3113 = vld [vmem:[#allocation3 + $0x128] sm:$0xff]
      %v3114 = vld [vmem:[#allocation3 + $0x130] sm:$0xff]
      %v3115 = vld [vmem:[#allocation3 + $0x148] sm:$0xff]
      %v3116 = vld [vmem:[#allocation3 + $0x150] sm:$0xff]
      %v3117 = vld [vmem:[#allocation3 + $0x168] sm:$0xff]
      %v3118 = vld [vmem:[#allocation3 + $0x170] sm:$0xff]
      %v3119 = vld [vmem:[#allocation3 + $0x188] sm:$0xff]
      %v3120 = vld [vmem:[#allocation3 + $0x190] sm:$0xff]
      %v3121 = vld [vmem:[#allocation3 + $0x1a8] sm:$0xff]
      %v3122 = vld [vmem:[#allocation3 + $0x1b0] sm:$0xff]
      %v3123 = vld [vmem:[#allocation3 + $0x1c8] sm:$0xff]
      %v3124 = vld [vmem:[#allocation3 + $0x1d0] sm:$0xff]
      %v3125 = vld [vmem:[#allocation3 + $0x1e8] sm:$0xff]
      %v3126 = vld [vmem:[#allocation3 + $0x1f0] sm:$0xff]
      %s3127 = scalar_lea.vmem %s3, 8
      %v3128 = vld [vmem:[%s3127] sm:$0xff]
      %v3130 = vsel %vm2956, %v3095, 0
      %v3133 = vsel %vm2956, %v3096, 0
      %v3136 = vsel %vm2956, %v3097, 0
      %v3139 = vsel %vm2956, %v3098, 0
      %v3142 = vsel %vm2956, %v3099, 0
      %v3145 = vsel %vm2956, %v3100, 0
      %v3148 = vsel %vm2956, %v3101, 0
      %v3151 = vsel %vm2956, %v3102, 0
      %v3154 = vsel %vm2956, %v3103, 0
      %v3157 = vsel %vm2956, %v3104, 0
      %v3160 = vsel %vm2956, %v3105, 0
      %v3163 = vsel %vm2956, %v3106, 0
      %v3166 = vsel %vm2956, %v3107, 0
      %v3169 = vsel %vm2956, %v3108, 0
      %v3172 = vsel %vm2956, %v3109, 0
      %v3175 = vsel %vm2956, %v3110, 0
      %v3178 = vsel %vm2956, %v3111, 0
      %v3181 = vsel %vm2956, %v3112, 0
      %v3184 = vsel %vm2956, %v3113, 0
      %v3187 = vsel %vm2956, %v3114, 0
      %v3190 = vsel %vm2956, %v3115, 0
      %v3193 = vsel %vm2956, %v3116, 0
      %v3196 = vsel %vm2956, %v3117, 0
      %v3199 = vsel %vm2956, %v3118, 0
      %v3202 = vsel %vm2956, %v3119, 0
      %v3205 = vsel %vm2956, %v3120, 0
      %v3208 = vsel %vm2956, %v3121, 0
      %v3211 = vsel %vm2956, %v3122, 0
      %v3214 = vsel %vm2956, %v3123, 0
      %v3217 = vsel %vm2956, %v3124, 0
      %v3220 = vsel %vm2956, %v3125, 0
      %v3223 = vsel %vm2956, %v3126, 0
      %3225 = vmatpush.msra.mxu0 0.0
      %3226 = vmatpush.msra.mxu0 0.0
      %3227 = vmatpush.msra.mxu0 0.0
      %3228 = vmatpush.msra.mxu0 0.0
      %3229 = vmatpush.msra.mxu0 0.0
      %3230 = vmatpush.msra.mxu0 0.0
      %3231 = vmatpush.msra.mxu0 0.0
      %3232 = vmatpush.msra.mxu0 0.0
      %3233 = vmatpush.msra.mxu0 0.0
      %3234 = vmatpush.msra.mxu0 0.0
      %3235 = vmatpush.msra.mxu0 0.0
      %3236 = vmatpush.msra.mxu0 0.0
      %3237 = vmatpush.msra.mxu0 0.0
      %3238 = vmatpush.msra.mxu0 0.0
      %3239 = vmatpush.msra.mxu0 0.0
      %3240 = vmatpush.msra.mxu0 %v3128
      %3241 = vmatmul.f32.gmra.mxu0 %v3130
      %v3242 = vpop.f32.mrf.mxu0
      %v3243 = vadd.f32 0.0, %v3242
      %3244 = vmatmul.f32.gmra.mxu0 %v3133
      %v3245 = vpop.f32.mrf.mxu0
      %v3246 = vadd.f32 0.0, %v3245
      %3247 = vmatmul.f32.gmra.mxu0 %v3136
      %v3248 = vpop.f32.mrf.mxu0
      %v3249 = vadd.f32 0.0, %v3248
      %3250 = vmatmul.f32.gmra.mxu0 %v3139
      %v3251 = vpop.f32.mrf.mxu0
      %v3252 = vadd.f32 0.0, %v3251
      %3253 = vmatmul.f32.gmra.mxu0 %v3142
      %v3254 = vpop.f32.mrf.mxu0
      %v3255 = vadd.f32 0.0, %v3254
      %3256 = vmatmul.f32.gmra.mxu0 %v3145
      %v3257 = vpop.f32.mrf.mxu0
      %v3258 = vadd.f32 0.0, %v3257
      %3259 = vmatmul.f32.gmra.mxu0 %v3148
      %v3260 = vpop.f32.mrf.mxu0
      %v3261 = vadd.f32 0.0, %v3260
      %3262 = vmatmul.f32.gmra.mxu0 %v3151
      %v3263 = vpop.f32.mrf.mxu0
      %v3264 = vadd.f32 0.0, %v3263
      %3265 = vmatmul.f32.gmra.mxu0 %v3154
      %v3266 = vpop.f32.mrf.mxu0
      %v3267 = vadd.f32 0.0, %v3266
      %3268 = vmatmul.f32.gmra.mxu0 %v3157
      %v3269 = vpop.f32.mrf.mxu0
      %v3270 = vadd.f32 0.0, %v3269
      %3271 = vmatmul.f32.gmra.mxu0 %v3160
      %v3272 = vpop.f32.mrf.mxu0
      %v3273 = vadd.f32 0.0, %v3272
      %3274 = vmatmul.f32.gmra.mxu0 %v3163
      %v3275 = vpop.f32.mrf.mxu0
      %v3276 = vadd.f32 0.0, %v3275
      %3277 = vmatmul.f32.gmra.mxu0 %v3166
      %v3278 = vpop.f32.mrf.mxu0
      %v3279 = vadd.f32 0.0, %v3278
      %3280 = vmatmul.f32.gmra.mxu0 %v3169
      %v3281 = vpop.f32.mrf.mxu0
      %v3282 = vadd.f32 0.0, %v3281
      %3283 = vmatmul.f32.gmra.mxu0 %v3172
      %v3284 = vpop.f32.mrf.mxu0
      %v3285 = vadd.f32 0.0, %v3284
      %3286 = vmatmul.f32.gmra.mxu0 %v3175
      %v3287 = vpop.f32.mrf.mxu0
      %v3288 = vadd.f32 0.0, %v3287
      %3289 = vmatmul.f32.gmra.mxu0 %v3178
      %v3290 = vpop.f32.mrf.mxu0
      %v3291 = vadd.f32 0.0, %v3290
      %3292 = vmatmul.f32.gmra.mxu0 %v3181
      %v3293 = vpop.f32.mrf.mxu0
      %v3294 = vadd.f32 0.0, %v3293
      %3295 = vmatmul.f32.gmra.mxu0 %v3184
      %v3296 = vpop.f32.mrf.mxu0
      %v3297 = vadd.f32 0.0, %v3296
      %3298 = vmatmul.f32.gmra.mxu0 %v3187
      %v3299 = vpop.f32.mrf.mxu0
      %v3300 = vadd.f32 0.0, %v3299
      %3301 = vmatmul.f32.gmra.mxu0 %v3190
      %v3302 = vpop.f32.mrf.mxu0
      %v3303 = vadd.f32 0.0, %v3302
      %3304 = vmatmul.f32.gmra.mxu0 %v3193
      %v3305 = vpop.f32.mrf.mxu0
      %v3306 = vadd.f32 0.0, %v3305
      %3307 = vmatmul.f32.gmra.mxu0 %v3196
      %v3308 = vpop.f32.mrf.mxu0
      %v3309 = vadd.f32 0.0, %v3308
      %3310 = vmatmul.f32.gmra.mxu0 %v3199
      %v3311 = vpop.f32.mrf.mxu0
      %v3312 = vadd.f32 0.0, %v3311
      %3313 = vmatmul.f32.gmra.mxu0 %v3202
      %v3314 = vpop.f32.mrf.mxu0
      %v3315 = vadd.f32 0.0, %v3314
      %3316 = vmatmul.f32.gmra.mxu0 %v3205
      %v3317 = vpop.f32.mrf.mxu0
      %v3318 = vadd.f32 0.0, %v3317
      %3319 = vmatmul.f32.gmra.mxu0 %v3208
      %v3320 = vpop.f32.mrf.mxu0
      %v3321 = vadd.f32 0.0, %v3320
      %3322 = vmatmul.f32.gmra.mxu0 %v3211
      %v3323 = vpop.f32.mrf.mxu0
      %v3324 = vadd.f32 0.0, %v3323
      %3325 = vmatmul.f32.gmra.mxu0 %v3214
      %v3326 = vpop.f32.mrf.mxu0
      %v3327 = vadd.f32 0.0, %v3326
      %3328 = vmatmul.f32.gmra.mxu0 %v3217
      %v3329 = vpop.f32.mrf.mxu0
      %v3330 = vadd.f32 0.0, %v3329
      %3331 = vmatmul.f32.gmra.mxu0 %v3220
      %v3332 = vpop.f32.mrf.mxu0
      %v3333 = vadd.f32 0.0, %v3332
      %3334 = vmatmul.f32.gmra.mxu0 %v3223
      %v3335 = vpop.f32.mrf.mxu0
      %v3336 = vadd.f32 0.0, %v3335
      %3337 = vdwg.mxu0
      %v3339 = vsel %vm2956, %v3062, 0
      %v3342 = vsel %vm2956, %v3063, 0
      %v3345 = vsel %vm2956, %v3064, 0
      %v3348 = vsel %vm2956, %v3065, 0
      %v3351 = vsel %vm2956, %v3066, 0
      %v3354 = vsel %vm2956, %v3067, 0
      %v3357 = vsel %vm2956, %v3068, 0
      %v3360 = vsel %vm2956, %v3069, 0
      %v3363 = vsel %vm2956, %v3070, 0
      %v3366 = vsel %vm2956, %v3071, 0
      %v3369 = vsel %vm2956, %v3072, 0
      %v3372 = vsel %vm2956, %v3073, 0
      %v3375 = vsel %vm2956, %v3074, 0
      %v3378 = vsel %vm2956, %v3075, 0
      %v3381 = vsel %vm2956, %v3076, 0
      %v3384 = vsel %vm2956, %v3077, 0
      %v3387 = vsel %vm2956, %v3078, 0
      %v3390 = vsel %vm2956, %v3079, 0
      %v3393 = vsel %vm2956, %v3080, 0
      %v3396 = vsel %vm2956, %v3081, 0
      %v3399 = vsel %vm2956, %v3082, 0
      %v3402 = vsel %vm2956, %v3083, 0
      %v3405 = vsel %vm2956, %v3084, 0
      %v3408 = vsel %vm2956, %v3085, 0
      %v3411 = vsel %vm2956, %v3086, 0
      %v3414 = vsel %vm2956, %v3087, 0
      %v3417 = vsel %vm2956, %v3088, 0
      %v3420 = vsel %vm2956, %v3089, 0
      %v3423 = vsel %vm2956, %v3090, 0
      %v3426 = vsel %vm2956, %v3091, 0
      %v3429 = vsel %vm2956, %v3092, 0
      %v3432 = vsel %vm2956, %v3093, 0
      %3434 = vmatpush.msra.mxu0 0.0
      %3435 = vmatpush.msra.mxu0 0.0
      %3436 = vmatpush.msra.mxu0 0.0
      %3437 = vmatpush.msra.mxu0 0.0
      %3438 = vmatpush.msra.mxu0 0.0
      %3439 = vmatpush.msra.mxu0 0.0
      %3440 = vmatpush.msra.mxu0 0.0
      %3441 = vmatpush.msra.mxu0 0.0
      %3442 = vmatpush.msra.mxu0 0.0
      %3443 = vmatpush.msra.mxu0 0.0
      %3444 = vmatpush.msra.mxu0 0.0
      %3445 = vmatpush.msra.mxu0 0.0
      %3446 = vmatpush.msra.mxu0 0.0
      %3447 = vmatpush.msra.mxu0 0.0
      %3448 = vmatpush.msra.mxu0 0.0
      %3449 = vmatpush.msra.mxu0 %v3094
      %3450 = vmatmul.f32.gmra.mxu0 %v3339
      %v3451 = vpop.f32.mrf.mxu0
      %v3452 = vadd.f32 %v3243, %v3451
      %3453 = vmatmul.f32.gmra.mxu0 %v3342
      %v3454 = vpop.f32.mrf.mxu0
      %v3455 = vadd.f32 %v3246, %v3454
      %3456 = vmatmul.f32.gmra.mxu0 %v3345
      %v3457 = vpop.f32.mrf.mxu0
      %v3458 = vadd.f32 %v3249, %v3457
      %3459 = vmatmul.f32.gmra.mxu0 %v3348
      %v3460 = vpop.f32.mrf.mxu0
      %v3461 = vadd.f32 %v3252, %v3460
      %3462 = vmatmul.f32.gmra.mxu0 %v3351
      %v3463 = vpop.f32.mrf.mxu0
      %v3464 = vadd.f32 %v3255, %v3463
      %3465 = vmatmul.f32.gmra.mxu0 %v3354
      %v3466 = vpop.f32.mrf.mxu0
      %v3467 = vadd.f32 %v3258, %v3466
      %3468 = vmatmul.f32.gmra.mxu0 %v3357
      %v3469 = vpop.f32.mrf.mxu0
      %v3470 = vadd.f32 %v3261, %v3469
      %3471 = vmatmul.f32.gmra.mxu0 %v3360
      %v3472 = vpop.f32.mrf.mxu0
      %v3473 = vadd.f32 %v3264, %v3472
      %3474 = vmatmul.f32.gmra.mxu0 %v3363
      %v3475 = vpop.f32.mrf.mxu0
      %v3476 = vadd.f32 %v3267, %v3475
      %3477 = vmatmul.f32.gmra.mxu0 %v3366
      %v3478 = vpop.f32.mrf.mxu0
      %v3479 = vadd.f32 %v3270, %v3478
      %3480 = vmatmul.f32.gmra.mxu0 %v3369
      %v3481 = vpop.f32.mrf.mxu0
      %v3482 = vadd.f32 %v3273, %v3481
      %3483 = vmatmul.f32.gmra.mxu0 %v3372
      %v3484 = vpop.f32.mrf.mxu0
      %v3485 = vadd.f32 %v3276, %v3484
      %3486 = vmatmul.f32.gmra.mxu0 %v3375
      %v3487 = vpop.f32.mrf.mxu0
      %v3488 = vadd.f32 %v3279, %v3487
      %3489 = vmatmul.f32.gmra.mxu0 %v3378
      %v3490 = vpop.f32.mrf.mxu0
      %v3491 = vadd.f32 %v3282, %v3490
      %3492 = vmatmul.f32.gmra.mxu0 %v3381
      %v3493 = vpop.f32.mrf.mxu0
      %v3494 = vadd.f32 %v3285, %v3493
      %3495 = vmatmul.f32.gmra.mxu0 %v3384
      %v3496 = vpop.f32.mrf.mxu0
      %v3497 = vadd.f32 %v3288, %v3496
      %3498 = vmatmul.f32.gmra.mxu0 %v3387
      %v3499 = vpop.f32.mrf.mxu0
      %v3500 = vadd.f32 %v3291, %v3499
      %3501 = vmatmul.f32.gmra.mxu0 %v3390
      %v3502 = vpop.f32.mrf.mxu0
      %v3503 = vadd.f32 %v3294, %v3502
      %3504 = vmatmul.f32.gmra.mxu0 %v3393
      %v3505 = vpop.f32.mrf.mxu0
      %v3506 = vadd.f32 %v3297, %v3505
      %3507 = vmatmul.f32.gmra.mxu0 %v3396
      %v3508 = vpop.f32.mrf.mxu0
      %v3509 = vadd.f32 %v3300, %v3508
      %3510 = vmatmul.f32.gmra.mxu0 %v3399
      %v3511 = vpop.f32.mrf.mxu0
      %v3512 = vadd.f32 %v3303, %v3511
      %3513 = vmatmul.f32.gmra.mxu0 %v3402
      %v3514 = vpop.f32.mrf.mxu0
      %v3515 = vadd.f32 %v3306, %v3514
      %3516 = vmatmul.f32.gmra.mxu0 %v3405
      %v3517 = vpop.f32.mrf.mxu0
      %v3518 = vadd.f32 %v3309, %v3517
      %3519 = vmatmul.f32.gmra.mxu0 %v3408
      %v3520 = vpop.f32.mrf.mxu0
      %v3521 = vadd.f32 %v3312, %v3520
      %3522 = vmatmul.f32.gmra.mxu0 %v3411
      %v3523 = vpop.f32.mrf.mxu0
      %v3524 = vadd.f32 %v3315, %v3523
      %3525 = vmatmul.f32.gmra.mxu0 %v3414
      %v3526 = vpop.f32.mrf.mxu0
      %v3527 = vadd.f32 %v3318, %v3526
      %3528 = vmatmul.f32.gmra.mxu0 %v3417
      %v3529 = vpop.f32.mrf.mxu0
      %v3530 = vadd.f32 %v3321, %v3529
      %3531 = vmatmul.f32.gmra.mxu0 %v3420
      %v3532 = vpop.f32.mrf.mxu0
      %v3533 = vadd.f32 %v3324, %v3532
      %3534 = vmatmul.f32.gmra.mxu0 %v3423
      %v3535 = vpop.f32.mrf.mxu0
      %v3536 = vadd.f32 %v3327, %v3535
      %3537 = vmatmul.f32.gmra.mxu0 %v3426
      %v3538 = vpop.f32.mrf.mxu0
      %v3539 = vadd.f32 %v3330, %v3538
      %3540 = vmatmul.f32.gmra.mxu0 %v3429
      %v3541 = vpop.f32.mrf.mxu0
      %v3542 = vadd.f32 %v3333, %v3541
      %3543 = vmatmul.f32.gmra.mxu0 %v3432
      %v3544 = vpop.f32.mrf.mxu0
      %v3545 = vadd.f32 %v3336, %v3544
      %3546 = vdwg.mxu0
      %v3547 = vld [vmem:[#allocation3 + $0x9] sm:$0xff]
      %v3548 = vld [vmem:[#allocation3 + $0x11] sm:$0xff]
      %v3549 = vld [vmem:[#allocation3 + $0x29] sm:$0xff]
      %v3550 = vld [vmem:[#allocation3 + $0x31] sm:$0xff]
      %v3551 = vld [vmem:[#allocation3 + $0x49] sm:$0xff]
      %v3552 = vld [vmem:[#allocation3 + $0x51] sm:$0xff]
      %v3553 = vld [vmem:[#allocation3 + $0x69] sm:$0xff]
      %v3554 = vld [vmem:[#allocation3 + $0x71] sm:$0xff]
      %v3555 = vld [vmem:[#allocation3 + $0x89] sm:$0xff]
      %v3556 = vld [vmem:[#allocation3 + $0x91] sm:$0xff]
      %v3557 = vld [vmem:[#allocation3 + $0xa9] sm:$0xff]
      %v3558 = vld [vmem:[#allocation3 + $0xb1] sm:$0xff]
      %v3559 = vld [vmem:[#allocation3 + $0xc9] sm:$0xff]
      %v3560 = vld [vmem:[#allocation3 + $0xd1] sm:$0xff]
      %v3561 = vld [vmem:[#allocation3 + $0xe9] sm:$0xff]
      %v3562 = vld [vmem:[#allocation3 + $0xf1] sm:$0xff]
      %v3563 = vld [vmem:[#allocation3 + $0x109] sm:$0xff]
      %v3564 = vld [vmem:[#allocation3 + $0x111] sm:$0xff]
      %v3565 = vld [vmem:[#allocation3 + $0x129] sm:$0xff]
      %v3566 = vld [vmem:[#allocation3 + $0x131] sm:$0xff]
      %v3567 = vld [vmem:[#allocation3 + $0x149] sm:$0xff]
      %v3568 = vld [vmem:[#allocation3 + $0x151] sm:$0xff]
      %v3569 = vld [vmem:[#allocation3 + $0x169] sm:$0xff]
      %v3570 = vld [vmem:[#allocation3 + $0x171] sm:$0xff]
      %v3571 = vld [vmem:[#allocation3 + $0x189] sm:$0xff]
      %v3572 = vld [vmem:[#allocation3 + $0x191] sm:$0xff]
      %v3573 = vld [vmem:[#allocation3 + $0x1a9] sm:$0xff]
      %v3574 = vld [vmem:[#allocation3 + $0x1b1] sm:$0xff]
      %v3575 = vld [vmem:[#allocation3 + $0x1c9] sm:$0xff]
      %v3576 = vld [vmem:[#allocation3 + $0x1d1] sm:$0xff]
      %v3577 = vld [vmem:[#allocation3 + $0x1e9] sm:$0xff]
      %v3578 = vld [vmem:[#allocation3 + $0x1f1] sm:$0xff]
      %s3579 = scalar_lea.vmem %s3, 16
      %v3580 = vld [vmem:[%s3579] sm:$0xff]
      %v3582 = vsel %vm2956, %v3547, 0
      %v3585 = vsel %vm2956, %v3548, 0
      %v3588 = vsel %vm2956, %v3549, 0
      %v3591 = vsel %vm2956, %v3550, 0
      %v3594 = vsel %vm2956, %v3551, 0
      %v3597 = vsel %vm2956, %v3552, 0
      %v3600 = vsel %vm2956, %v3553, 0
      %v3603 = vsel %vm2956, %v3554, 0
      %v3606 = vsel %vm2956, %v3555, 0
      %v3609 = vsel %vm2956, %v3556, 0
      %v3612 = vsel %vm2956, %v3557, 0
      %v3615 = vsel %vm2956, %v3558, 0
      %v3618 = vsel %vm2956, %v3559, 0
      %v3621 = vsel %vm2956, %v3560, 0
      %v3624 = vsel %vm2956, %v3561, 0
      %v3627 = vsel %vm2956, %v3562, 0
      %v3630 = vsel %vm2956, %v3563, 0
      %v3633 = vsel %vm2956, %v3564, 0
      %v3636 = vsel %vm2956, %v3565, 0
      %v3639 = vsel %vm2956, %v3566, 0
      %v3642 = vsel %vm2956, %v3567, 0
      %v3645 = vsel %vm2956, %v3568, 0
      %v3648 = vsel %vm2956, %v3569, 0
      %v3651 = vsel %vm2956, %v3570, 0
      %v3654 = vsel %vm2956, %v3571, 0
      %v3657 = vsel %vm2956, %v3572, 0
      %v3660 = vsel %vm2956, %v3573, 0
      %v3663 = vsel %vm2956, %v3574, 0
      %v3666 = vsel %vm2956, %v3575, 0
      %v3669 = vsel %vm2956, %v3576, 0
      %v3672 = vsel %vm2956, %v3577, 0
      %v3675 = vsel %vm2956, %v3578, 0
      %3677 = vmatpush.msra.mxu0 0.0
      %3678 = vmatpush.msra.mxu0 0.0
      %3679 = vmatpush.msra.mxu0 0.0
      %3680 = vmatpush.msra.mxu0 0.0
      %3681 = vmatpush.msra.mxu0 0.0
      %3682 = vmatpush.msra.mxu0 0.0
      %3683 = vmatpush.msra.mxu0 0.0
      %3684 = vmatpush.msra.mxu0 0.0
      %3685 = vmatpush.msra.mxu0 0.0
      %3686 = vmatpush.msra.mxu0 0.0
      %3687 = vmatpush.msra.mxu0 0.0
      %3688 = vmatpush.msra.mxu0 0.0
      %3689 = vmatpush.msra.mxu0 0.0
      %3690 = vmatpush.msra.mxu0 0.0
      %3691 = vmatpush.msra.mxu0 0.0
      %3692 = vmatpush.msra.mxu0 %v3580
      %3693 = vmatmul.f32.gmra.mxu0 %v3582
      %v3694 = vpop.f32.mrf.mxu0
      %v3695 = vadd.f32 0.0, %v3694
      %3696 = vmatmul.f32.gmra.mxu0 %v3585
      %v3697 = vpop.f32.mrf.mxu0
      %v3698 = vadd.f32 0.0, %v3697
      %3699 = vmatmul.f32.gmra.mxu0 %v3588
      %v3700 = vpop.f32.mrf.mxu0
      %v3701 = vadd.f32 0.0, %v3700
      %3702 = vmatmul.f32.gmra.mxu0 %v3591
      %v3703 = vpop.f32.mrf.mxu0
      %v3704 = vadd.f32 0.0, %v3703
      %3705 = vmatmul.f32.gmra.mxu0 %v3594
      %v3706 = vpop.f32.mrf.mxu0
      %v3707 = vadd.f32 0.0, %v3706
      %3708 = vmatmul.f32.gmra.mxu0 %v3597
      %v3709 = vpop.f32.mrf.mxu0
      %v3710 = vadd.f32 0.0, %v3709
      %3711 = vmatmul.f32.gmra.mxu0 %v3600
      %v3712 = vpop.f32.mrf.mxu0
      %v3713 = vadd.f32 0.0, %v3712
      %3714 = vmatmul.f32.gmra.mxu0 %v3603
      %v3715 = vpop.f32.mrf.mxu0
      %v3716 = vadd.f32 0.0, %v3715
      %3717 = vmatmul.f32.gmra.mxu0 %v3606
      %v3718 = vpop.f32.mrf.mxu0
      %v3719 = vadd.f32 0.0, %v3718
      %3720 = vmatmul.f32.gmra.mxu0 %v3609
      %v3721 = vpop.f32.mrf.mxu0
      %v3722 = vadd.f32 0.0, %v3721
      %3723 = vmatmul.f32.gmra.mxu0 %v3612
      %v3724 = vpop.f32.mrf.mxu0
      %v3725 = vadd.f32 0.0, %v3724
      %3726 = vmatmul.f32.gmra.mxu0 %v3615
      %v3727 = vpop.f32.mrf.mxu0
      %v3728 = vadd.f32 0.0, %v3727
      %3729 = vmatmul.f32.gmra.mxu0 %v3618
      %v3730 = vpop.f32.mrf.mxu0
      %v3731 = vadd.f32 0.0, %v3730
      %3732 = vmatmul.f32.gmra.mxu0 %v3621
      %v3733 = vpop.f32.mrf.mxu0
      %v3734 = vadd.f32 0.0, %v3733
      %3735 = vmatmul.f32.gmra.mxu0 %v3624
      %v3736 = vpop.f32.mrf.mxu0
      %v3737 = vadd.f32 0.0, %v3736
      %3738 = vmatmul.f32.gmra.mxu0 %v3627
      %v3739 = vpop.f32.mrf.mxu0
      %v3740 = vadd.f32 0.0, %v3739
      %3741 = vmatmul.f32.gmra.mxu0 %v3630
      %v3742 = vpop.f32.mrf.mxu0
      %v3743 = vadd.f32 0.0, %v3742
      %3744 = vmatmul.f32.gmra.mxu0 %v3633
      %v3745 = vpop.f32.mrf.mxu0
      %v3746 = vadd.f32 0.0, %v3745
      %3747 = vmatmul.f32.gmra.mxu0 %v3636
      %v3748 = vpop.f32.mrf.mxu0
      %v3749 = vadd.f32 0.0, %v3748
      %3750 = vmatmul.f32.gmra.mxu0 %v3639
      %v3751 = vpop.f32.mrf.mxu0
      %v3752 = vadd.f32 0.0, %v3751
      %3753 = vmatmul.f32.gmra.mxu0 %v3642
      %v3754 = vpop.f32.mrf.mxu0
      %v3755 = vadd.f32 0.0, %v3754
      %3756 = vmatmul.f32.gmra.mxu0 %v3645
      %v3757 = vpop.f32.mrf.mxu0
      %v3758 = vadd.f32 0.0, %v3757
      %3759 = vmatmul.f32.gmra.mxu0 %v3648
      %v3760 = vpop.f32.mrf.mxu0
      %v3761 = vadd.f32 0.0, %v3760
      %3762 = vmatmul.f32.gmra.mxu0 %v3651
      %v3763 = vpop.f32.mrf.mxu0
      %v3764 = vadd.f32 0.0, %v3763
      %3765 = vmatmul.f32.gmra.mxu0 %v3654
      %v3766 = vpop.f32.mrf.mxu0
      %v3767 = vadd.f32 0.0, %v3766
      %3768 = vmatmul.f32.gmra.mxu0 %v3657
      %v3769 = vpop.f32.mrf.mxu0
      %v3770 = vadd.f32 0.0, %v3769
      %3771 = vmatmul.f32.gmra.mxu0 %v3660
      %v3772 = vpop.f32.mrf.mxu0
      %v3773 = vadd.f32 0.0, %v3772
      %3774 = vmatmul.f32.gmra.mxu0 %v3663
      %v3775 = vpop.f32.mrf.mxu0
      %v3776 = vadd.f32 0.0, %v3775
      %3777 = vmatmul.f32.gmra.mxu0 %v3666
      %v3778 = vpop.f32.mrf.mxu0
      %v3779 = vadd.f32 0.0, %v3778
      %3780 = vmatmul.f32.gmra.mxu0 %v3669
      %v3781 = vpop.f32.mrf.mxu0
      %v3782 = vadd.f32 0.0, %v3781
      %3783 = vmatmul.f32.gmra.mxu0 %v3672
      %v3784 = vpop.f32.mrf.mxu0
      %v3785 = vadd.f32 0.0, %v3784
      %3786 = vmatmul.f32.gmra.mxu0 %v3675
      %v3787 = vpop.f32.mrf.mxu0
      %v3788 = vadd.f32 0.0, %v3787
      %3789 = vdwg.mxu0
      %v3790 = vadd.f32 %v3452, %v3695
      %v3791 = vadd.f32 %v3455, %v3698
      %v3792 = vadd.f32 %v3458, %v3701
      %v3793 = vadd.f32 %v3461, %v3704
      %v3794 = vadd.f32 %v3464, %v3707
      %v3795 = vadd.f32 %v3467, %v3710
      %v3796 = vadd.f32 %v3470, %v3713
      %v3797 = vadd.f32 %v3473, %v3716
      %v3798 = vadd.f32 %v3476, %v3719
      %v3799 = vadd.f32 %v3479, %v3722
      %v3800 = vadd.f32 %v3482, %v3725
      %v3801 = vadd.f32 %v3485, %v3728
      %v3802 = vadd.f32 %v3488, %v3731
      %v3803 = vadd.f32 %v3491, %v3734
      %v3804 = vadd.f32 %v3494, %v3737
      %v3805 = vadd.f32 %v3497, %v3740
      %v3806 = vadd.f32 %v3500, %v3743
      %v3807 = vadd.f32 %v3503, %v3746
      %v3808 = vadd.f32 %v3506, %v3749
      %v3809 = vadd.f32 %v3509, %v3752
      %v3810 = vadd.f32 %v3512, %v3755
      %v3811 = vadd.f32 %v3515, %v3758
      %v3812 = vadd.f32 %v3518, %v3761
      %v3813 = vadd.f32 %v3521, %v3764
      %v3814 = vadd.f32 %v3524, %v3767
      %v3815 = vadd.f32 %v3527, %v3770
      %v3816 = vadd.f32 %v3530, %v3773
      %v3817 = vadd.f32 %v3533, %v3776
      %v3818 = vadd.f32 %v3536, %v3779
      %v3819 = vadd.f32 %v3539, %v3782
      %v3820 = vadd.f32 %v3542, %v3785
      %v3821 = vadd.f32 %v3545, %v3788
      %v3822 = vld [vmem:[%s3029 + $0x7] sm:$0xff]
      %v3823 = vld [vmem:[%s3029 + $0xf] sm:$0xff]
      %v3824 = vld [vmem:[%s3029 + $0x27] sm:$0xff]
      %v3825 = vld [vmem:[%s3029 + $0x2f] sm:$0xff]
      %v3826 = vld [vmem:[%s3029 + $0x47] sm:$0xff]
      %v3827 = vld [vmem:[%s3029 + $0x4f] sm:$0xff]
      %v3828 = vld [vmem:[%s3029 + $0x67] sm:$0xff]
      %v3829 = vld [vmem:[%s3029 + $0x6f] sm:$0xff]
      %v3830 = vld [vmem:[%s3029 + $0x87] sm:$0xff]
      %v3831 = vld [vmem:[%s3029 + $0x8f] sm:$0xff]
      %v3832 = vld [vmem:[%s3029 + $0xa7] sm:$0xff]
      %v3833 = vld [vmem:[%s3029 + $0xaf] sm:$0xff]
      %v3834 = vld [vmem:[%s3029 + $0xc7] sm:$0xff]
      %v3835 = vld [vmem:[%s3029 + $0xcf] sm:$0xff]
      %v3836 = vld [vmem:[%s3029 + $0xe7] sm:$0xff]
      %v3837 = vld [vmem:[%s3029 + $0xef] sm:$0xff]
      %v3838 = vld [vmem:[%s3029 + $0x107] sm:$0xff]
      %v3839 = vld [vmem:[%s3029 + $0x10f] sm:$0xff]
      %v3840 = vld [vmem:[%s3029 + $0x127] sm:$0xff]
      %v3841 = vld [vmem:[%s3029 + $0x12f] sm:$0xff]
      %v3842 = vld [vmem:[%s3029 + $0x147] sm:$0xff]
      %v3843 = vld [vmem:[%s3029 + $0x14f] sm:$0xff]
      %v3844 = vld [vmem:[%s3029 + $0x167] sm:$0xff]
      %v3845 = vld [vmem:[%s3029 + $0x16f] sm:$0xff]
      %v3846 = vld [vmem:[%s3029 + $0x187] sm:$0xff]
      %v3847 = vld [vmem:[%s3029 + $0x18f] sm:$0xff]
      %v3848 = vld [vmem:[%s3029 + $0x1a7] sm:$0xff]
      %v3849 = vld [vmem:[%s3029 + $0x1af] sm:$0xff]
      %v3850 = vld [vmem:[%s3029 + $0x1c7] sm:$0xff]
      %v3851 = vld [vmem:[%s3029 + $0x1cf] sm:$0xff]
      %v3852 = vld [vmem:[%s3029 + $0x1e7] sm:$0xff]
      %v3853 = vld [vmem:[%s3029 + $0x1ef] sm:$0xff]
      %s3854 = scalar_lea.vmem %s3, 24
      %v3855 = vld [vmem:[%s3854] sm:$0xff]
      %v3857 = vsel %vm2956, %v3822, 0
      %v3860 = vsel %vm2956, %v3823, 0
      %v3863 = vsel %vm2956, %v3824, 0
      %v3866 = vsel %vm2956, %v3825, 0
      %v3869 = vsel %vm2956, %v3826, 0
      %v3872 = vsel %vm2956, %v3827, 0
      %v3875 = vsel %vm2956, %v3828, 0
      %v3878 = vsel %vm2956, %v3829, 0
      %v3881 = vsel %vm2956, %v3830, 0
      %v3884 = vsel %vm2956, %v3831, 0
      %v3887 = vsel %vm2956, %v3832, 0
      %v3890 = vsel %vm2956, %v3833, 0
      %v3893 = vsel %vm2956, %v3834, 0
      %v3896 = vsel %vm2956, %v3835, 0
      %v3899 = vsel %vm2956, %v3836, 0
      %v3902 = vsel %vm2956, %v3837, 0
      %v3905 = vsel %vm2956, %v3838, 0
      %v3908 = vsel %vm2956, %v3839, 0
      %v3911 = vsel %vm2956, %v3840, 0
      %v3914 = vsel %vm2956, %v3841, 0
      %v3917 = vsel %vm2956, %v3842, 0
      %v3920 = vsel %vm2956, %v3843, 0
      %v3923 = vsel %vm2956, %v3844, 0
      %v3926 = vsel %vm2956, %v3845, 0
      %v3929 = vsel %vm2956, %v3846, 0
      %v3932 = vsel %vm2956, %v3847, 0
      %v3935 = vsel %vm2956, %v3848, 0
      %v3938 = vsel %vm2956, %v3849, 0
      %v3941 = vsel %vm2956, %v3850, 0
      %v3944 = vsel %vm2956, %v3851, 0
      %v3947 = vsel %vm2956, %v3852, 0
      %v3950 = vsel %vm2956, %v3853, 0
      %3952 = vmatpush.msra.mxu0 0.0
      %3953 = vmatpush.msra.mxu0 0.0
      %3954 = vmatpush.msra.mxu0 0.0
      %3955 = vmatpush.msra.mxu0 0.0
      %3956 = vmatpush.msra.mxu0 0.0
      %3957 = vmatpush.msra.mxu0 0.0
      %3958 = vmatpush.msra.mxu0 0.0
      %3959 = vmatpush.msra.mxu0 0.0
      %3960 = vmatpush.msra.mxu0 0.0
      %3961 = vmatpush.msra.mxu0 0.0
      %3962 = vmatpush.msra.mxu0 0.0
      %3963 = vmatpush.msra.mxu0 0.0
      %3964 = vmatpush.msra.mxu0 0.0
      %3965 = vmatpush.msra.mxu0 0.0
      %3966 = vmatpush.msra.mxu0 0.0
      %3967 = vmatpush.msra.mxu0 %v3855
      %3968 = vmatmul.f32.gmra.mxu0 %v3857
      %v3969 = vpop.f32.mrf.mxu0
      %v3970 = vadd.f32 0.0, %v3969
      %3971 = vmatmul.f32.gmra.mxu0 %v3860
      %v3972 = vpop.f32.mrf.mxu0
      %v3973 = vadd.f32 0.0, %v3972
      %3974 = vmatmul.f32.gmra.mxu0 %v3863
      %v3975 = vpop.f32.mrf.mxu0
      %v3976 = vadd.f32 0.0, %v3975
      %3977 = vmatmul.f32.gmra.mxu0 %v3866
      %v3978 = vpop.f32.mrf.mxu0
      %v3979 = vadd.f32 0.0, %v3978
      %3980 = vmatmul.f32.gmra.mxu0 %v3869
      %v3981 = vpop.f32.mrf.mxu0
      %v3982 = vadd.f32 0.0, %v3981
      %3983 = vmatmul.f32.gmra.mxu0 %v3872
      %v3984 = vpop.f32.mrf.mxu0
      %v3985 = vadd.f32 0.0, %v3984
      %3986 = vmatmul.f32.gmra.mxu0 %v3875
      %v3987 = vpop.f32.mrf.mxu0
      %v3988 = vadd.f32 0.0, %v3987
      %3989 = vmatmul.f32.gmra.mxu0 %v3878
      %v3990 = vpop.f32.mrf.mxu0
      %v3991 = vadd.f32 0.0, %v3990
      %3992 = vmatmul.f32.gmra.mxu0 %v3881
      %v3993 = vpop.f32.mrf.mxu0
      %v3994 = vadd.f32 0.0, %v3993
      %3995 = vmatmul.f32.gmra.mxu0 %v3884
      %v3996 = vpop.f32.mrf.mxu0
      %v3997 = vadd.f32 0.0, %v3996
      %3998 = vmatmul.f32.gmra.mxu0 %v3887
      %v3999 = vpop.f32.mrf.mxu0
      %v4000 = vadd.f32 0.0, %v3999
      %4001 = vmatmul.f32.gmra.mxu0 %v3890
      %v4002 = vpop.f32.mrf.mxu0
      %v4003 = vadd.f32 0.0, %v4002
      %4004 = vmatmul.f32.gmra.mxu0 %v3893
      %v4005 = vpop.f32.mrf.mxu0
      %v4006 = vadd.f32 0.0, %v4005
      %4007 = vmatmul.f32.gmra.mxu0 %v3896
      %v4008 = vpop.f32.mrf.mxu0
      %v4009 = vadd.f32 0.0, %v4008
      %4010 = vmatmul.f32.gmra.mxu0 %v3899
      %v4011 = vpop.f32.mrf.mxu0
      %v4012 = vadd.f32 0.0, %v4011
      %4013 = vmatmul.f32.gmra.mxu0 %v3902
      %v4014 = vpop.f32.mrf.mxu0
      %v4015 = vadd.f32 0.0, %v4014
      %4016 = vmatmul.f32.gmra.mxu0 %v3905
      %v4017 = vpop.f32.mrf.mxu0
      %v4018 = vadd.f32 0.0, %v4017
      %4019 = vmatmul.f32.gmra.mxu0 %v3908
      %v4020 = vpop.f32.mrf.mxu0
      %v4021 = vadd.f32 0.0, %v4020
      %4022 = vmatmul.f32.gmra.mxu0 %v3911
      %v4023 = vpop.f32.mrf.mxu0
      %v4024 = vadd.f32 0.0, %v4023
      %4025 = vmatmul.f32.gmra.mxu0 %v3914
      %v4026 = vpop.f32.mrf.mxu0
      %v4027 = vadd.f32 0.0, %v4026
      %4028 = vmatmul.f32.gmra.mxu0 %v3917
      %v4029 = vpop.f32.mrf.mxu0
      %v4030 = vadd.f32 0.0, %v4029
      %4031 = vmatmul.f32.gmra.mxu0 %v3920
      %v4032 = vpop.f32.mrf.mxu0
      %v4033 = vadd.f32 0.0, %v4032
      %4034 = vmatmul.f32.gmra.mxu0 %v3923
      %v4035 = vpop.f32.mrf.mxu0
      %v4036 = vadd.f32 0.0, %v4035
      %4037 = vmatmul.f32.gmra.mxu0 %v3926
      %v4038 = vpop.f32.mrf.mxu0
      %v4039 = vadd.f32 0.0, %v4038
      %4040 = vmatmul.f32.gmra.mxu0 %v3929
      %v4041 = vpop.f32.mrf.mxu0
      %v4042 = vadd.f32 0.0, %v4041
      %4043 = vmatmul.f32.gmra.mxu0 %v3932
      %v4044 = vpop.f32.mrf.mxu0
      %v4045 = vadd.f32 0.0, %v4044
      %4046 = vmatmul.f32.gmra.mxu0 %v3935
      %v4047 = vpop.f32.mrf.mxu0
      %v4048 = vadd.f32 0.0, %v4047
      %4049 = vmatmul.f32.gmra.mxu0 %v3938
      %v4050 = vpop.f32.mrf.mxu0
      %v4051 = vadd.f32 0.0, %v4050
      %4052 = vmatmul.f32.gmra.mxu0 %v3941
      %v4053 = vpop.f32.mrf.mxu0
      %v4054 = vadd.f32 0.0, %v4053
      %4055 = vmatmul.f32.gmra.mxu0 %v3944
      %v4056 = vpop.f32.mrf.mxu0
      %v4057 = vadd.f32 0.0, %v4056
      %4058 = vmatmul.f32.gmra.mxu0 %v3947
      %v4059 = vpop.f32.mrf.mxu0
      %v4060 = vadd.f32 0.0, %v4059
      %4061 = vmatmul.f32.gmra.mxu0 %v3950
      %v4062 = vpop.f32.mrf.mxu0
      %v4063 = vadd.f32 0.0, %v4062
      %4064 = vdwg.mxu0
      %v4065 = vadd.f32 %v3790, %v3970
      %v4066 = vadd.f32 %v3791, %v3973
      %v4067 = vadd.f32 %v3792, %v3976
      %v4068 = vadd.f32 %v3793, %v3979
      %v4069 = vadd.f32 %v3794, %v3982
      %v4070 = vadd.f32 %v3795, %v3985
      %v4071 = vadd.f32 %v3796, %v3988
      %v4072 = vadd.f32 %v3797, %v3991
      %v4073 = vadd.f32 %v3798, %v3994
      %v4074 = vadd.f32 %v3799, %v3997
      %v4075 = vadd.f32 %v3800, %v4000
      %v4076 = vadd.f32 %v3801, %v4003
      %v4077 = vadd.f32 %v3802, %v4006
      %v4078 = vadd.f32 %v3803, %v4009
      %v4079 = vadd.f32 %v3804, %v4012
      %v4080 = vadd.f32 %v3805, %v4015
      %v4081 = vadd.f32 %v3806, %v4018
      %v4082 = vadd.f32 %v3807, %v4021
      %v4083 = vadd.f32 %v3808, %v4024
      %v4084 = vadd.f32 %v3809, %v4027
      %v4085 = vadd.f32 %v3810, %v4030
      %v4086 = vadd.f32 %v3811, %v4033
      %v4087 = vadd.f32 %v3812, %v4036
      %v4088 = vadd.f32 %v3813, %v4039
      %v4089 = vadd.f32 %v3814, %v4042
      %v4090 = vadd.f32 %v3815, %v4045
      %v4091 = vadd.f32 %v3816, %v4048
      %v4092 = vadd.f32 %v3817, %v4051
      %v4093 = vadd.f32 %v3818, %v4054
      %v4094 = vadd.f32 %v3819, %v4057
      %v4095 = vadd.f32 %v3820, %v4060
      %v4096 = vadd.f32 %v3821, %v4063
      %v4097 = vld [vmem:[%s3029 + $0x8] sm:$0xff]
      %v4098 = vld [vmem:[%s3029 + $0x10] sm:$0xff]
      %v4099 = vld [vmem:[%s3029 + $0x28] sm:$0xff]
      %v4100 = vld [vmem:[%s3029 + $0x30] sm:$0xff]
      %v4101 = vld [vmem:[%s3029 + $0x48] sm:$0xff]
      %v4102 = vld [vmem:[%s3029 + $0x50] sm:$0xff]
      %v4103 = vld [vmem:[%s3029 + $0x68] sm:$0xff]
      %v4104 = vld [vmem:[%s3029 + $0x70] sm:$0xff]
      %v4105 = vld [vmem:[%s3029 + $0x88] sm:$0xff]
      %v4106 = vld [vmem:[%s3029 + $0x90] sm:$0xff]
      %v4107 = vld [vmem:[%s3029 + $0xa8] sm:$0xff]
      %v4108 = vld [vmem:[%s3029 + $0xb0] sm:$0xff]
      %v4109 = vld [vmem:[%s3029 + $0xc8] sm:$0xff]
      %v4110 = vld [vmem:[%s3029 + $0xd0] sm:$0xff]
      %v4111 = vld [vmem:[%s3029 + $0xe8] sm:$0xff]
      %v4112 = vld [vmem:[%s3029 + $0xf0] sm:$0xff]
      %v4113 = vld [vmem:[%s3029 + $0x108] sm:$0xff]
      %v4114 = vld [vmem:[%s3029 + $0x110] sm:$0xff]
      %v4115 = vld [vmem:[%s3029 + $0x128] sm:$0xff]
      %v4116 = vld [vmem:[%s3029 + $0x130] sm:$0xff]
      %v4117 = vld [vmem:[%s3029 + $0x148] sm:$0xff]
      %v4118 = vld [vmem:[%s3029 + $0x150] sm:$0xff]
      %v4119 = vld [vmem:[%s3029 + $0x168] sm:$0xff]
      %v4120 = vld [vmem:[%s3029 + $0x170] sm:$0xff]
      %v4121 = vld [vmem:[%s3029 + $0x188] sm:$0xff]
      %v4122 = vld [vmem:[%s3029 + $0x190] sm:$0xff]
      %v4123 = vld [vmem:[%s3029 + $0x1a8] sm:$0xff]
      %v4124 = vld [vmem:[%s3029 + $0x1b0] sm:$0xff]
      %v4125 = vld [vmem:[%s3029 + $0x1c8] sm:$0xff]
      %v4126 = vld [vmem:[%s3029 + $0x1d0] sm:$0xff]
      %v4127 = vld [vmem:[%s3029 + $0x1e8] sm:$0xff]
      %v4128 = vld [vmem:[%s3029 + $0x1f0] sm:$0xff]
      %s4129 = scalar_lea.vmem %s3, 32
      %v4130 = vld [vmem:[%s4129] sm:$0xff]
      %v4132 = vsel %vm2956, %v4097, 0
      %v4135 = vsel %vm2956, %v4098, 0
      %v4138 = vsel %vm2956, %v4099, 0
      %v4141 = vsel %vm2956, %v4100, 0
      %v4144 = vsel %vm2956, %v4101, 0
      %v4147 = vsel %vm2956, %v4102, 0
      %v4150 = vsel %vm2956, %v4103, 0
      %v4153 = vsel %vm2956, %v4104, 0
      %v4156 = vsel %vm2956, %v4105, 0
      %v4159 = vsel %vm2956, %v4106, 0
      %v4162 = vsel %vm2956, %v4107, 0
      %v4165 = vsel %vm2956, %v4108, 0
      %v4168 = vsel %vm2956, %v4109, 0
      %v4171 = vsel %vm2956, %v4110, 0
      %v4174 = vsel %vm2956, %v4111, 0
      %v4177 = vsel %vm2956, %v4112, 0
      %v4180 = vsel %vm2956, %v4113, 0
      %v4183 = vsel %vm2956, %v4114, 0
      %v4186 = vsel %vm2956, %v4115, 0
      %v4189 = vsel %vm2956, %v4116, 0
      %v4192 = vsel %vm2956, %v4117, 0
      %v4195 = vsel %vm2956, %v4118, 0
      %v4198 = vsel %vm2956, %v4119, 0
      %v4201 = vsel %vm2956, %v4120, 0
      %v4204 = vsel %vm2956, %v4121, 0
      %v4207 = vsel %vm2956, %v4122, 0
      %v4210 = vsel %vm2956, %v4123, 0
      %v4213 = vsel %vm2956, %v4124, 0
      %v4216 = vsel %vm2956, %v4125, 0
      %v4219 = vsel %vm2956, %v4126, 0
      %v4222 = vsel %vm2956, %v4127, 0
      %v4225 = vsel %vm2956, %v4128, 0
      %4227 = vmatpush.msra.mxu0 0.0
      %4228 = vmatpush.msra.mxu0 0.0
      %4229 = vmatpush.msra.mxu0 0.0
      %4230 = vmatpush.msra.mxu0 0.0
      %4231 = vmatpush.msra.mxu0 0.0
      %4232 = vmatpush.msra.mxu0 0.0
      %4233 = vmatpush.msra.mxu0 0.0
      %4234 = vmatpush.msra.mxu0 0.0
      %4235 = vmatpush.msra.mxu0 0.0
      %4236 = vmatpush.msra.mxu0 0.0
      %4237 = vmatpush.msra.mxu0 0.0
      %4238 = vmatpush.msra.mxu0 0.0
      %4239 = vmatpush.msra.mxu0 0.0
      %4240 = vmatpush.msra.mxu0 0.0
      %4241 = vmatpush.msra.mxu0 0.0
      %4242 = vmatpush.msra.mxu0 %v4130
      %4243 = vmatmul.f32.gmra.mxu0 %v4132
      %v4244 = vpop.f32.mrf.mxu0
      %v4245 = vadd.f32 0.0, %v4244
      %4246 = vmatmul.f32.gmra.mxu0 %v4135
      %v4247 = vpop.f32.mrf.mxu0
      %v4248 = vadd.f32 0.0, %v4247
      %4249 = vmatmul.f32.gmra.mxu0 %v4138
      %v4250 = vpop.f32.mrf.mxu0
      %v4251 = vadd.f32 0.0, %v4250
      %4252 = vmatmul.f32.gmra.mxu0 %v4141
      %v4253 = vpop.f32.mrf.mxu0
      %v4254 = vadd.f32 0.0, %v4253
      %4255 = vmatmul.f32.gmra.mxu0 %v4144
      %v4256 = vpop.f32.mrf.mxu0
      %v4257 = vadd.f32 0.0, %v4256
      %4258 = vmatmul.f32.gmra.mxu0 %v4147
      %v4259 = vpop.f32.mrf.mxu0
      %v4260 = vadd.f32 0.0, %v4259
      %4261 = vmatmul.f32.gmra.mxu0 %v4150
      %v4262 = vpop.f32.mrf.mxu0
      %v4263 = vadd.f32 0.0, %v4262
      %4264 = vmatmul.f32.gmra.mxu0 %v4153
      %v4265 = vpop.f32.mrf.mxu0
      %v4266 = vadd.f32 0.0, %v4265
      %4267 = vmatmul.f32.gmra.mxu0 %v4156
      %v4268 = vpop.f32.mrf.mxu0
      %v4269 = vadd.f32 0.0, %v4268
      %4270 = vmatmul.f32.gmra.mxu0 %v4159
      %v4271 = vpop.f32.mrf.mxu0
      %v4272 = vadd.f32 0.0, %v4271
      %4273 = vmatmul.f32.gmra.mxu0 %v4162
      %v4274 = vpop.f32.mrf.mxu0
      %v4275 = vadd.f32 0.0, %v4274
      %4276 = vmatmul.f32.gmra.mxu0 %v4165
      %v4277 = vpop.f32.mrf.mxu0
      %v4278 = vadd.f32 0.0, %v4277
      %4279 = vmatmul.f32.gmra.mxu0 %v4168
      %v4280 = vpop.f32.mrf.mxu0
      %v4281 = vadd.f32 0.0, %v4280
      %4282 = vmatmul.f32.gmra.mxu0 %v4171
      %v4283 = vpop.f32.mrf.mxu0
      %v4284 = vadd.f32 0.0, %v4283
      %4285 = vmatmul.f32.gmra.mxu0 %v4174
      %v4286 = vpop.f32.mrf.mxu0
      %v4287 = vadd.f32 0.0, %v4286
      %4288 = vmatmul.f32.gmra.mxu0 %v4177
      %v4289 = vpop.f32.mrf.mxu0
      %v4290 = vadd.f32 0.0, %v4289
      %4291 = vmatmul.f32.gmra.mxu0 %v4180
      %v4292 = vpop.f32.mrf.mxu0
      %v4293 = vadd.f32 0.0, %v4292
      %4294 = vmatmul.f32.gmra.mxu0 %v4183
      %v4295 = vpop.f32.mrf.mxu0
      %v4296 = vadd.f32 0.0, %v4295
      %4297 = vmatmul.f32.gmra.mxu0 %v4186
      %v4298 = vpop.f32.mrf.mxu0
      %v4299 = vadd.f32 0.0, %v4298
      %4300 = vmatmul.f32.gmra.mxu0 %v4189
      %v4301 = vpop.f32.mrf.mxu0
      %v4302 = vadd.f32 0.0, %v4301
      %4303 = vmatmul.f32.gmra.mxu0 %v4192
      %v4304 = vpop.f32.mrf.mxu0
      %v4305 = vadd.f32 0.0, %v4304
      %4306 = vmatmul.f32.gmra.mxu0 %v4195
      %v4307 = vpop.f32.mrf.mxu0
      %v4308 = vadd.f32 0.0, %v4307
      %4309 = vmatmul.f32.gmra.mxu0 %v4198
      %v4310 = vpop.f32.mrf.mxu0
      %v4311 = vadd.f32 0.0, %v4310
      %4312 = vmatmul.f32.gmra.mxu0 %v4201
      %v4313 = vpop.f32.mrf.mxu0
      %v4314 = vadd.f32 0.0, %v4313
      %4315 = vmatmul.f32.gmra.mxu0 %v4204
      %v4316 = vpop.f32.mrf.mxu0
      %v4317 = vadd.f32 0.0, %v4316
      %4318 = vmatmul.f32.gmra.mxu0 %v4207
      %v4319 = vpop.f32.mrf.mxu0
      %v4320 = vadd.f32 0.0, %v4319
      %4321 = vmatmul.f32.gmra.mxu0 %v4210
      %v4322 = vpop.f32.mrf.mxu0
      %v4323 = vadd.f32 0.0, %v4322
      %4324 = vmatmul.f32.gmra.mxu0 %v4213
      %v4325 = vpop.f32.mrf.mxu0
      %v4326 = vadd.f32 0.0, %v4325
      %4327 = vmatmul.f32.gmra.mxu0 %v4216
      %v4328 = vpop.f32.mrf.mxu0
      %v4329 = vadd.f32 0.0, %v4328
      %4330 = vmatmul.f32.gmra.mxu0 %v4219
      %v4331 = vpop.f32.mrf.mxu0
      %v4332 = vadd.f32 0.0, %v4331
      %4333 = vmatmul.f32.gmra.mxu0 %v4222
      %v4334 = vpop.f32.mrf.mxu0
      %v4335 = vadd.f32 0.0, %v4334
      %4336 = vmatmul.f32.gmra.mxu0 %v4225
      %v4337 = vpop.f32.mrf.mxu0
      %v4338 = vadd.f32 0.0, %v4337
      %4339 = vdwg.mxu0
      %v4340 = vadd.f32 %v4065, %v4245
      %v4341 = vadd.f32 %v4066, %v4248
      %v4342 = vadd.f32 %v4067, %v4251
      %v4343 = vadd.f32 %v4068, %v4254
      %v4344 = vadd.f32 %v4069, %v4257
      %v4345 = vadd.f32 %v4070, %v4260
      %v4346 = vadd.f32 %v4071, %v4263
      %v4347 = vadd.f32 %v4072, %v4266
      %v4348 = vadd.f32 %v4073, %v4269
      %v4349 = vadd.f32 %v4074, %v4272
      %v4350 = vadd.f32 %v4075, %v4275
      %v4351 = vadd.f32 %v4076, %v4278
      %v4352 = vadd.f32 %v4077, %v4281
      %v4353 = vadd.f32 %v4078, %v4284
      %v4354 = vadd.f32 %v4079, %v4287
      %v4355 = vadd.f32 %v4080, %v4290
      %v4356 = vadd.f32 %v4081, %v4293
      %v4357 = vadd.f32 %v4082, %v4296
      %v4358 = vadd.f32 %v4083, %v4299
      %v4359 = vadd.f32 %v4084, %v4302
      %v4360 = vadd.f32 %v4085, %v4305
      %v4361 = vadd.f32 %v4086, %v4308
      %v4362 = vadd.f32 %v4087, %v4311
      %v4363 = vadd.f32 %v4088, %v4314
      %v4364 = vadd.f32 %v4089, %v4317
      %v4365 = vadd.f32 %v4090, %v4320
      %v4366 = vadd.f32 %v4091, %v4323
      %v4367 = vadd.f32 %v4092, %v4326
      %v4368 = vadd.f32 %v4093, %v4329
      %v4369 = vadd.f32 %v4094, %v4332
      %v4370 = vadd.f32 %v4095, %v4335
      %v4371 = vadd.f32 %v4096, %v4338
      %v4372 = vld [vmem:[%s3029 + $0x9] sm:$0xff]
      %v4373 = vld [vmem:[%s3029 + $0x11] sm:$0xff]
      %v4374 = vld [vmem:[%s3029 + $0x29] sm:$0xff]
      %v4375 = vld [vmem:[%s3029 + $0x31] sm:$0xff]
      %v4376 = vld [vmem:[%s3029 + $0x49] sm:$0xff]
      %v4377 = vld [vmem:[%s3029 + $0x51] sm:$0xff]
      %v4378 = vld [vmem:[%s3029 + $0x69] sm:$0xff]
      %v4379 = vld [vmem:[%s3029 + $0x71] sm:$0xff]
      %v4380 = vld [vmem:[%s3029 + $0x89] sm:$0xff]
      %v4381 = vld [vmem:[%s3029 + $0x91] sm:$0xff]
      %v4382 = vld [vmem:[%s3029 + $0xa9] sm:$0xff]
      %v4383 = vld [vmem:[%s3029 + $0xb1] sm:$0xff]
      %v4384 = vld [vmem:[%s3029 + $0xc9] sm:$0xff]
      %v4385 = vld [vmem:[%s3029 + $0xd1] sm:$0xff]
      %v4386 = vld [vmem:[%s3029 + $0xe9] sm:$0xff]
      %v4387 = vld [vmem:[%s3029 + $0xf1] sm:$0xff]
      %v4388 = vld [vmem:[%s3029 + $0x109] sm:$0xff]
      %v4389 = vld [vmem:[%s3029 + $0x111] sm:$0xff]
      %v4390 = vld [vmem:[%s3029 + $0x129] sm:$0xff]
      %v4391 = vld [vmem:[%s3029 + $0x131] sm:$0xff]
      %v4392 = vld [vmem:[%s3029 + $0x149] sm:$0xff]
      %v4393 = vld [vmem:[%s3029 + $0x151] sm:$0xff]
      %v4394 = vld [vmem:[%s3029 + $0x169] sm:$0xff]
      %v4395 = vld [vmem:[%s3029 + $0x171] sm:$0xff]
      %v4396 = vld [vmem:[%s3029 + $0x189] sm:$0xff]
      %v4397 = vld [vmem:[%s3029 + $0x191] sm:$0xff]
      %v4398 = vld [vmem:[%s3029 + $0x1a9] sm:$0xff]
      %v4399 = vld [vmem:[%s3029 + $0x1b1] sm:$0xff]
      %v4400 = vld [vmem:[%s3029 + $0x1c9] sm:$0xff]
      %v4401 = vld [vmem:[%s3029 + $0x1d1] sm:$0xff]
      %v4402 = vld [vmem:[%s3029 + $0x1e9] sm:$0xff]
      %v4403 = vld [vmem:[%s3029 + $0x1f1] sm:$0xff]
      %s4404 = scalar_lea.vmem %s3, 40
      %v4405 = vld [vmem:[%s4404] sm:$0xff]
      %v4407 = vsel %vm2956, %v4372, 0
      %v4410 = vsel %vm2956, %v4373, 0
      %v4413 = vsel %vm2956, %v4374, 0
      %v4416 = vsel %vm2956, %v4375, 0
      %v4419 = vsel %vm2956, %v4376, 0
      %v4422 = vsel %vm2956, %v4377, 0
      %v4425 = vsel %vm2956, %v4378, 0
      %v4428 = vsel %vm2956, %v4379, 0
      %v4431 = vsel %vm2956, %v4380, 0
      %v4434 = vsel %vm2956, %v4381, 0
      %v4437 = vsel %vm2956, %v4382, 0
      %v4440 = vsel %vm2956, %v4383, 0
      %v4443 = vsel %vm2956, %v4384, 0
      %v4446 = vsel %vm2956, %v4385, 0
      %v4449 = vsel %vm2956, %v4386, 0
      %v4452 = vsel %vm2956, %v4387, 0
      %v4455 = vsel %vm2956, %v4388, 0
      %v4458 = vsel %vm2956, %v4389, 0
      %v4461 = vsel %vm2956, %v4390, 0
      %v4464 = vsel %vm2956, %v4391, 0
      %v4467 = vsel %vm2956, %v4392, 0
      %v4470 = vsel %vm2956, %v4393, 0
      %v4473 = vsel %vm2956, %v4394, 0
      %v4476 = vsel %vm2956, %v4395, 0
      %v4479 = vsel %vm2956, %v4396, 0
      %v4482 = vsel %vm2956, %v4397, 0
      %v4485 = vsel %vm2956, %v4398, 0
      %v4488 = vsel %vm2956, %v4399, 0
      %v4491 = vsel %vm2956, %v4400, 0
      %v4494 = vsel %vm2956, %v4401, 0
      %v4497 = vsel %vm2956, %v4402, 0
      %v4500 = vsel %vm2956, %v4403, 0
      %4502 = vmatpush.msra.mxu0 0.0
      %4503 = vmatpush.msra.mxu0 0.0
      %4504 = vmatpush.msra.mxu0 0.0
      %4505 = vmatpush.msra.mxu0 0.0
      %4506 = vmatpush.msra.mxu0 0.0
      %4507 = vmatpush.msra.mxu0 0.0
      %4508 = vmatpush.msra.mxu0 0.0
      %4509 = vmatpush.msra.mxu0 0.0
      %4510 = vmatpush.msra.mxu0 0.0
      %4511 = vmatpush.msra.mxu0 0.0
      %4512 = vmatpush.msra.mxu0 0.0
      %4513 = vmatpush.msra.mxu0 0.0
      %4514 = vmatpush.msra.mxu0 0.0
      %4515 = vmatpush.msra.mxu0 0.0
      %4516 = vmatpush.msra.mxu0 0.0
      %4517 = vmatpush.msra.mxu0 %v4405
      %4518 = vmatmul.f32.gmra.mxu0 %v4407
      %v4519 = vpop.f32.mrf.mxu0
      %v4520 = vadd.f32 0.0, %v4519
      %4521 = vmatmul.f32.gmra.mxu0 %v4410
      %v4522 = vpop.f32.mrf.mxu0
      %v4523 = vadd.f32 0.0, %v4522
      %4524 = vmatmul.f32.gmra.mxu0 %v4413
      %v4525 = vpop.f32.mrf.mxu0
      %v4526 = vadd.f32 0.0, %v4525
      %4527 = vmatmul.f32.gmra.mxu0 %v4416
      %v4528 = vpop.f32.mrf.mxu0
      %v4529 = vadd.f32 0.0, %v4528
      %4530 = vmatmul.f32.gmra.mxu0 %v4419
      %v4531 = vpop.f32.mrf.mxu0
      %v4532 = vadd.f32 0.0, %v4531
      %4533 = vmatmul.f32.gmra.mxu0 %v4422
      %v4534 = vpop.f32.mrf.mxu0
      %v4535 = vadd.f32 0.0, %v4534
      %4536 = vmatmul.f32.gmra.mxu0 %v4425
      %v4537 = vpop.f32.mrf.mxu0
      %v4538 = vadd.f32 0.0, %v4537
      %4539 = vmatmul.f32.gmra.mxu0 %v4428
      %v4540 = vpop.f32.mrf.mxu0
      %v4541 = vadd.f32 0.0, %v4540
      %4542 = vmatmul.f32.gmra.mxu0 %v4431
      %v4543 = vpop.f32.mrf.mxu0
      %v4544 = vadd.f32 0.0, %v4543
      %4545 = vmatmul.f32.gmra.mxu0 %v4434
      %v4546 = vpop.f32.mrf.mxu0
      %v4547 = vadd.f32 0.0, %v4546
      %4548 = vmatmul.f32.gmra.mxu0 %v4437
      %v4549 = vpop.f32.mrf.mxu0
      %v4550 = vadd.f32 0.0, %v4549
      %4551 = vmatmul.f32.gmra.mxu0 %v4440
      %v4552 = vpop.f32.mrf.mxu0
      %v4553 = vadd.f32 0.0, %v4552
      %4554 = vmatmul.f32.gmra.mxu0 %v4443
      %v4555 = vpop.f32.mrf.mxu0
      %v4556 = vadd.f32 0.0, %v4555
      %4557 = vmatmul.f32.gmra.mxu0 %v4446
      %v4558 = vpop.f32.mrf.mxu0
      %v4559 = vadd.f32 0.0, %v4558
      %4560 = vmatmul.f32.gmra.mxu0 %v4449
      %v4561 = vpop.f32.mrf.mxu0
      %v4562 = vadd.f32 0.0, %v4561
      %4563 = vmatmul.f32.gmra.mxu0 %v4452
      %v4564 = vpop.f32.mrf.mxu0
      %v4565 = vadd.f32 0.0, %v4564
      %4566 = vmatmul.f32.gmra.mxu0 %v4455
      %v4567 = vpop.f32.mrf.mxu0
      %v4568 = vadd.f32 0.0, %v4567
      %4569 = vmatmul.f32.gmra.mxu0 %v4458
      %v4570 = vpop.f32.mrf.mxu0
      %v4571 = vadd.f32 0.0, %v4570
      %4572 = vmatmul.f32.gmra.mxu0 %v4461
      %v4573 = vpop.f32.mrf.mxu0
      %v4574 = vadd.f32 0.0, %v4573
      %4575 = vmatmul.f32.gmra.mxu0 %v4464
      %v4576 = vpop.f32.mrf.mxu0
      %v4577 = vadd.f32 0.0, %v4576
      %4578 = vmatmul.f32.gmra.mxu0 %v4467
      %v4579 = vpop.f32.mrf.mxu0
      %v4580 = vadd.f32 0.0, %v4579
      %4581 = vmatmul.f32.gmra.mxu0 %v4470
      %v4582 = vpop.f32.mrf.mxu0
      %v4583 = vadd.f32 0.0, %v4582
      %4584 = vmatmul.f32.gmra.mxu0 %v4473
      %v4585 = vpop.f32.mrf.mxu0
      %v4586 = vadd.f32 0.0, %v4585
      %4587 = vmatmul.f32.gmra.mxu0 %v4476
      %v4588 = vpop.f32.mrf.mxu0
      %v4589 = vadd.f32 0.0, %v4588
      %4590 = vmatmul.f32.gmra.mxu0 %v4479
      %v4591 = vpop.f32.mrf.mxu0
      %v4592 = vadd.f32 0.0, %v4591
      %4593 = vmatmul.f32.gmra.mxu0 %v4482
      %v4594 = vpop.f32.mrf.mxu0
      %v4595 = vadd.f32 0.0, %v4594
      %4596 = vmatmul.f32.gmra.mxu0 %v4485
      %v4597 = vpop.f32.mrf.mxu0
      %v4598 = vadd.f32 0.0, %v4597
      %4599 = vmatmul.f32.gmra.mxu0 %v4488
      %v4600 = vpop.f32.mrf.mxu0
      %v4601 = vadd.f32 0.0, %v4600
      %4602 = vmatmul.f32.gmra.mxu0 %v4491
      %v4603 = vpop.f32.mrf.mxu0
      %v4604 = vadd.f32 0.0, %v4603
      %4605 = vmatmul.f32.gmra.mxu0 %v4494
      %v4606 = vpop.f32.mrf.mxu0
      %v4607 = vadd.f32 0.0, %v4606
      %4608 = vmatmul.f32.gmra.mxu0 %v4497
      %v4609 = vpop.f32.mrf.mxu0
      %v4610 = vadd.f32 0.0, %v4609
      %4611 = vmatmul.f32.gmra.mxu0 %v4500
      %v4612 = vpop.f32.mrf.mxu0
      %v4613 = vadd.f32 0.0, %v4612
      %4614 = vdwg.mxu0
      %v4615 = vadd.f32 %v4340, %v4520
      %v4616 = vadd.f32 %v4341, %v4523
      %v4617 = vadd.f32 %v4342, %v4526
      %v4618 = vadd.f32 %v4343, %v4529
      %v4619 = vadd.f32 %v4344, %v4532
      %v4620 = vadd.f32 %v4345, %v4535
      %v4621 = vadd.f32 %v4346, %v4538
      %v4622 = vadd.f32 %v4347, %v4541
      %v4623 = vadd.f32 %v4348, %v4544
      %v4624 = vadd.f32 %v4349, %v4547
      %v4625 = vadd.f32 %v4350, %v4550
      %v4626 = vadd.f32 %v4351, %v4553
      %v4627 = vadd.f32 %v4352, %v4556
      %v4628 = vadd.f32 %v4353, %v4559
      %v4629 = vadd.f32 %v4354, %v4562
      %v4630 = vadd.f32 %v4355, %v4565
      %v4631 = vadd.f32 %v4356, %v4568
      %v4632 = vadd.f32 %v4357, %v4571
      %v4633 = vadd.f32 %v4358, %v4574
      %v4634 = vadd.f32 %v4359, %v4577
      %v4635 = vadd.f32 %v4360, %v4580
      %v4636 = vadd.f32 %v4361, %v4583
      %v4637 = vadd.f32 %v4362, %v4586
      %v4638 = vadd.f32 %v4363, %v4589
      %v4639 = vadd.f32 %v4364, %v4592
      %v4640 = vadd.f32 %v4365, %v4595
      %v4641 = vadd.f32 %v4366, %v4598
      %v4642 = vadd.f32 %v4367, %v4601
      %v4643 = vadd.f32 %v4368, %v4604
      %v4644 = vadd.f32 %v4369, %v4607
      %v4645 = vadd.f32 %v4370, %v4610
      %v4646 = vadd.f32 %v4371, %v4613
      %s4647 = scalar_lea.vmem [#allocation3], 64
      %v4648 = vld [vmem:[%s4647 + $0x7] sm:$0xff]
      %v4649 = vld [vmem:[%s4647 + $0xf] sm:$0xff]
      %v4650 = vld [vmem:[%s4647 + $0x27] sm:$0xff]
      %v4651 = vld [vmem:[%s4647 + $0x2f] sm:$0xff]
      %v4652 = vld [vmem:[%s4647 + $0x47] sm:$0xff]
      %v4653 = vld [vmem:[%s4647 + $0x4f] sm:$0xff]
      %v4654 = vld [vmem:[%s4647 + $0x67] sm:$0xff]
      %v4655 = vld [vmem:[%s4647 + $0x6f] sm:$0xff]
      %v4656 = vld [vmem:[%s4647 + $0x87] sm:$0xff]
      %v4657 = vld [vmem:[%s4647 + $0x8f] sm:$0xff]
      %v4658 = vld [vmem:[%s4647 + $0xa7] sm:$0xff]
      %v4659 = vld [vmem:[%s4647 + $0xaf] sm:$0xff]
      %v4660 = vld [vmem:[%s4647 + $0xc7] sm:$0xff]
      %v4661 = vld [vmem:[%s4647 + $0xcf] sm:$0xff]
      %v4662 = vld [vmem:[%s4647 + $0xe7] sm:$0xff]
      %v4663 = vld [vmem:[%s4647 + $0xef] sm:$0xff]
      %v4664 = vld [vmem:[%s4647 + $0x107] sm:$0xff]
      %v4665 = vld [vmem:[%s4647 + $0x10f] sm:$0xff]
      %v4666 = vld [vmem:[%s4647 + $0x127] sm:$0xff]
      %v4667 = vld [vmem:[%s4647 + $0x12f] sm:$0xff]
      %v4668 = vld [vmem:[%s4647 + $0x147] sm:$0xff]
      %v4669 = vld [vmem:[%s4647 + $0x14f] sm:$0xff]
      %v4670 = vld [vmem:[%s4647 + $0x167] sm:$0xff]
      %v4671 = vld [vmem:[%s4647 + $0x16f] sm:$0xff]
      %v4672 = vld [vmem:[%s4647 + $0x187] sm:$0xff]
      %v4673 = vld [vmem:[%s4647 + $0x18f] sm:$0xff]
      %v4674 = vld [vmem:[%s4647 + $0x1a7] sm:$0xff]
      %v4675 = vld [vmem:[%s4647 + $0x1af] sm:$0xff]
      %v4676 = vld [vmem:[%s4647 + $0x1c7] sm:$0xff]
      %v4677 = vld [vmem:[%s4647 + $0x1cf] sm:$0xff]
      %v4678 = vld [vmem:[%s4647 + $0x1e7] sm:$0xff]
      %v4679 = vld [vmem:[%s4647 + $0x1ef] sm:$0xff]
      %s4680 = scalar_lea.vmem %s3, 48
      %v4681 = vld [vmem:[%s4680] sm:$0xff]
      %v4683 = vsel %vm2956, %v4648, 0
      %v4686 = vsel %vm2956, %v4649, 0
      %v4689 = vsel %vm2956, %v4650, 0
      %v4692 = vsel %vm2956, %v4651, 0
      %v4695 = vsel %vm2956, %v4652, 0
      %v4698 = vsel %vm2956, %v4653, 0
      %v4701 = vsel %vm2956, %v4654, 0
      %v4704 = vsel %vm2956, %v4655, 0
      %v4707 = vsel %vm2956, %v4656, 0
      %v4710 = vsel %vm2956, %v4657, 0
      %v4713 = vsel %vm2956, %v4658, 0
      %v4716 = vsel %vm2956, %v4659, 0
      %v4719 = vsel %vm2956, %v4660, 0
      %v4722 = vsel %vm2956, %v4661, 0
      %v4725 = vsel %vm2956, %v4662, 0
      %v4728 = vsel %vm2956, %v4663, 0
      %v4731 = vsel %vm2956, %v4664, 0
      %v4734 = vsel %vm2956, %v4665, 0
      %v4737 = vsel %vm2956, %v4666, 0
      %v4740 = vsel %vm2956, %v4667, 0
      %v4743 = vsel %vm2956, %v4668, 0
      %v4746 = vsel %vm2956, %v4669, 0
      %v4749 = vsel %vm2956, %v4670, 0
      %v4752 = vsel %vm2956, %v4671, 0
      %v4755 = vsel %vm2956, %v4672, 0
      %v4758 = vsel %vm2956, %v4673, 0
      %v4761 = vsel %vm2956, %v4674, 0
      %v4764 = vsel %vm2956, %v4675, 0
      %v4767 = vsel %vm2956, %v4676, 0
      %v4770 = vsel %vm2956, %v4677, 0
      %v4773 = vsel %vm2956, %v4678, 0
      %v4776 = vsel %vm2956, %v4679, 0
      %4778 = vmatpush.msra.mxu0 0.0
      %4779 = vmatpush.msra.mxu0 0.0
      %4780 = vmatpush.msra.mxu0 0.0
      %4781 = vmatpush.msra.mxu0 0.0
      %4782 = vmatpush.msra.mxu0 0.0
      %4783 = vmatpush.msra.mxu0 0.0
      %4784 = vmatpush.msra.mxu0 0.0
      %4785 = vmatpush.msra.mxu0 0.0
      %4786 = vmatpush.msra.mxu0 0.0
      %4787 = vmatpush.msra.mxu0 0.0
      %4788 = vmatpush.msra.mxu0 0.0
      %4789 = vmatpush.msra.mxu0 0.0
      %4790 = vmatpush.msra.mxu0 0.0
      %4791 = vmatpush.msra.mxu0 0.0
      %4792 = vmatpush.msra.mxu0 0.0
      %4793 = vmatpush.msra.mxu0 %v4681
      %4794 = vmatmul.f32.gmra.mxu0 %v4683
      %v4795 = vpop.f32.mrf.mxu0
      %v4796 = vadd.f32 0.0, %v4795
      %4797 = vmatmul.f32.gmra.mxu0 %v4686
      %v4798 = vpop.f32.mrf.mxu0
      %v4799 = vadd.f32 0.0, %v4798
      %4800 = vmatmul.f32.gmra.mxu0 %v4689
      %v4801 = vpop.f32.mrf.mxu0
      %v4802 = vadd.f32 0.0, %v4801
      %4803 = vmatmul.f32.gmra.mxu0 %v4692
      %v4804 = vpop.f32.mrf.mxu0
      %v4805 = vadd.f32 0.0, %v4804
      %4806 = vmatmul.f32.gmra.mxu0 %v4695
      %v4807 = vpop.f32.mrf.mxu0
      %v4808 = vadd.f32 0.0, %v4807
      %4809 = vmatmul.f32.gmra.mxu0 %v4698
      %v4810 = vpop.f32.mrf.mxu0
      %v4811 = vadd.f32 0.0, %v4810
      %4812 = vmatmul.f32.gmra.mxu0 %v4701
      %v4813 = vpop.f32.mrf.mxu0
      %v4814 = vadd.f32 0.0, %v4813
      %4815 = vmatmul.f32.gmra.mxu0 %v4704
      %v4816 = vpop.f32.mrf.mxu0
      %v4817 = vadd.f32 0.0, %v4816
      %4818 = vmatmul.f32.gmra.mxu0 %v4707
      %v4819 = vpop.f32.mrf.mxu0
      %v4820 = vadd.f32 0.0, %v4819
      %4821 = vmatmul.f32.gmra.mxu0 %v4710
      %v4822 = vpop.f32.mrf.mxu0
      %v4823 = vadd.f32 0.0, %v4822
      %4824 = vmatmul.f32.gmra.mxu0 %v4713
      %v4825 = vpop.f32.mrf.mxu0
      %v4826 = vadd.f32 0.0, %v4825
      %4827 = vmatmul.f32.gmra.mxu0 %v4716
      %v4828 = vpop.f32.mrf.mxu0
      %v4829 = vadd.f32 0.0, %v4828
      %4830 = vmatmul.f32.gmra.mxu0 %v4719
      %v4831 = vpop.f32.mrf.mxu0
      %v4832 = vadd.f32 0.0, %v4831
      %4833 = vmatmul.f32.gmra.mxu0 %v4722
      %v4834 = vpop.f32.mrf.mxu0
      %v4835 = vadd.f32 0.0, %v4834
      %4836 = vmatmul.f32.gmra.mxu0 %v4725
      %v4837 = vpop.f32.mrf.mxu0
      %v4838 = vadd.f32 0.0, %v4837
      %4839 = vmatmul.f32.gmra.mxu0 %v4728
      %v4840 = vpop.f32.mrf.mxu0
      %v4841 = vadd.f32 0.0, %v4840
      %4842 = vmatmul.f32.gmra.mxu0 %v4731
      %v4843 = vpop.f32.mrf.mxu0
      %v4844 = vadd.f32 0.0, %v4843
      %4845 = vmatmul.f32.gmra.mxu0 %v4734
      %v4846 = vpop.f32.mrf.mxu0
      %v4847 = vadd.f32 0.0, %v4846
      %4848 = vmatmul.f32.gmra.mxu0 %v4737
      %v4849 = vpop.f32.mrf.mxu0
      %v4850 = vadd.f32 0.0, %v4849
      %4851 = vmatmul.f32.gmra.mxu0 %v4740
      %v4852 = vpop.f32.mrf.mxu0
      %v4853 = vadd.f32 0.0, %v4852
      %4854 = vmatmul.f32.gmra.mxu0 %v4743
      %v4855 = vpop.f32.mrf.mxu0
      %v4856 = vadd.f32 0.0, %v4855
      %4857 = vmatmul.f32.gmra.mxu0 %v4746
      %v4858 = vpop.f32.mrf.mxu0
      %v4859 = vadd.f32 0.0, %v4858
      %4860 = vmatmul.f32.gmra.mxu0 %v4749
      %v4861 = vpop.f32.mrf.mxu0
      %v4862 = vadd.f32 0.0, %v4861
      %4863 = vmatmul.f32.gmra.mxu0 %v4752
      %v4864 = vpop.f32.mrf.mxu0
      %v4865 = vadd.f32 0.0, %v4864
      %4866 = vmatmul.f32.gmra.mxu0 %v4755
      %v4867 = vpop.f32.mrf.mxu0
      %v4868 = vadd.f32 0.0, %v4867
      %4869 = vmatmul.f32.gmra.mxu0 %v4758
      %v4870 = vpop.f32.mrf.mxu0
      %v4871 = vadd.f32 0.0, %v4870
      %4872 = vmatmul.f32.gmra.mxu0 %v4761
      %v4873 = vpop.f32.mrf.mxu0
      %v4874 = vadd.f32 0.0, %v4873
      %4875 = vmatmul.f32.gmra.mxu0 %v4764
      %v4876 = vpop.f32.mrf.mxu0
      %v4877 = vadd.f32 0.0, %v4876
      %4878 = vmatmul.f32.gmra.mxu0 %v4767
      %v4879 = vpop.f32.mrf.mxu0
      %v4880 = vadd.f32 0.0, %v4879
      %4881 = vmatmul.f32.gmra.mxu0 %v4770
      %v4882 = vpop.f32.mrf.mxu0
      %v4883 = vadd.f32 0.0, %v4882
      %4884 = vmatmul.f32.gmra.mxu0 %v4773
      %v4885 = vpop.f32.mrf.mxu0
      %v4886 = vadd.f32 0.0, %v4885
      %4887 = vmatmul.f32.gmra.mxu0 %v4776
      %v4888 = vpop.f32.mrf.mxu0
      %v4889 = vadd.f32 0.0, %v4888
      %4890 = vdwg.mxu0
      %v4891 = vadd.f32 %v4615, %v4796
      %v4892 = vadd.f32 %v4616, %v4799
      %v4893 = vadd.f32 %v4617, %v4802
      %v4894 = vadd.f32 %v4618, %v4805
      %v4895 = vadd.f32 %v4619, %v4808
      %v4896 = vadd.f32 %v4620, %v4811
      %v4897 = vadd.f32 %v4621, %v4814
      %v4898 = vadd.f32 %v4622, %v4817
      %v4899 = vadd.f32 %v4623, %v4820
      %v4900 = vadd.f32 %v4624, %v4823
      %v4901 = vadd.f32 %v4625, %v4826
      %v4902 = vadd.f32 %v4626, %v4829
      %v4903 = vadd.f32 %v4627, %v4832
      %v4904 = vadd.f32 %v4628, %v4835
      %v4905 = vadd.f32 %v4629, %v4838
      %v4906 = vadd.f32 %v4630, %v4841
      %v4907 = vadd.f32 %v4631, %v4844
      %v4908 = vadd.f32 %v4632, %v4847
      %v4909 = vadd.f32 %v4633, %v4850
      %v4910 = vadd.f32 %v4634, %v4853
      %v4911 = vadd.f32 %v4635, %v4856
      %v4912 = vadd.f32 %v4636, %v4859
      %v4913 = vadd.f32 %v4637, %v4862
      %v4914 = vadd.f32 %v4638, %v4865
      %v4915 = vadd.f32 %v4639, %v4868
      %v4916 = vadd.f32 %v4640, %v4871
      %v4917 = vadd.f32 %v4641, %v4874
      %v4918 = vadd.f32 %v4642, %v4877
      %v4919 = vadd.f32 %v4643, %v4880
      %v4920 = vadd.f32 %v4644, %v4883
      %v4921 = vadd.f32 %v4645, %v4886
      %v4922 = vadd.f32 %v4646, %v4889
      %v4923 = vld [vmem:[%s4647 + $0x8] sm:$0xff]
      %v4924 = vld [vmem:[%s4647 + $0x10] sm:$0xff]
      %v4925 = vld [vmem:[%s4647 + $0x28] sm:$0xff]
      %v4926 = vld [vmem:[%s4647 + $0x30] sm:$0xff]
      %v4927 = vld [vmem:[%s4647 + $0x48] sm:$0xff]
      %v4928 = vld [vmem:[%s4647 + $0x50] sm:$0xff]
      %v4929 = vld [vmem:[%s4647 + $0x68] sm:$0xff]
      %v4930 = vld [vmem:[%s4647 + $0x70] sm:$0xff]
      %v4931 = vld [vmem:[%s4647 + $0x88] sm:$0xff]
      %v4932 = vld [vmem:[%s4647 + $0x90] sm:$0xff]
      %v4933 = vld [vmem:[%s4647 + $0xa8] sm:$0xff]
      %v4934 = vld [vmem:[%s4647 + $0xb0] sm:$0xff]
      %v4935 = vld [vmem:[%s4647 + $0xc8] sm:$0xff]
      %v4936 = vld [vmem:[%s4647 + $0xd0] sm:$0xff]
      %v4937 = vld [vmem:[%s4647 + $0xe8] sm:$0xff]
      %v4938 = vld [vmem:[%s4647 + $0xf0] sm:$0xff]
      %v4939 = vld [vmem:[%s4647 + $0x108] sm:$0xff]
      %v4940 = vld [vmem:[%s4647 + $0x110] sm:$0xff]
      %v4941 = vld [vmem:[%s4647 + $0x128] sm:$0xff]
      %v4942 = vld [vmem:[%s4647 + $0x130] sm:$0xff]
      %v4943 = vld [vmem:[%s4647 + $0x148] sm:$0xff]
      %v4944 = vld [vmem:[%s4647 + $0x150] sm:$0xff]
      %v4945 = vld [vmem:[%s4647 + $0x168] sm:$0xff]
      %v4946 = vld [vmem:[%s4647 + $0x170] sm:$0xff]
      %v4947 = vld [vmem:[%s4647 + $0x188] sm:$0xff]
      %v4948 = vld [vmem:[%s4647 + $0x190] sm:$0xff]
      %v4949 = vld [vmem:[%s4647 + $0x1a8] sm:$0xff]
      %v4950 = vld [vmem:[%s4647 + $0x1b0] sm:$0xff]
      %v4951 = vld [vmem:[%s4647 + $0x1c8] sm:$0xff]
      %v4952 = vld [vmem:[%s4647 + $0x1d0] sm:$0xff]
      %v4953 = vld [vmem:[%s4647 + $0x1e8] sm:$0xff]
      %v4954 = vld [vmem:[%s4647 + $0x1f0] sm:$0xff]
      %s4955 = scalar_lea.vmem %s3, 56
      %v4956 = vld [vmem:[%s4955] sm:$0xff]
      %v4958 = vsel %vm2956, %v4923, 0
      %v4961 = vsel %vm2956, %v4924, 0
      %v4964 = vsel %vm2956, %v4925, 0
      %v4967 = vsel %vm2956, %v4926, 0
      %v4970 = vsel %vm2956, %v4927, 0
      %v4973 = vsel %vm2956, %v4928, 0
      %v4976 = vsel %vm2956, %v4929, 0
      %v4979 = vsel %vm2956, %v4930, 0
      %v4982 = vsel %vm2956, %v4931, 0
      %v4985 = vsel %vm2956, %v4932, 0
      %v4988 = vsel %vm2956, %v4933, 0
      %v4991 = vsel %vm2956, %v4934, 0
      %v4994 = vsel %vm2956, %v4935, 0
      %v4997 = vsel %vm2956, %v4936, 0
      %v5000 = vsel %vm2956, %v4937, 0
      %v5003 = vsel %vm2956, %v4938, 0
      %v5006 = vsel %vm2956, %v4939, 0
      %v5009 = vsel %vm2956, %v4940, 0
      %v5012 = vsel %vm2956, %v4941, 0
      %v5015 = vsel %vm2956, %v4942, 0
      %v5018 = vsel %vm2956, %v4943, 0
      %v5021 = vsel %vm2956, %v4944, 0
      %v5024 = vsel %vm2956, %v4945, 0
      %v5027 = vsel %vm2956, %v4946, 0
      %v5030 = vsel %vm2956, %v4947, 0
      %v5033 = vsel %vm2956, %v4948, 0
      %v5036 = vsel %vm2956, %v4949, 0
      %v5039 = vsel %vm2956, %v4950, 0
      %v5042 = vsel %vm2956, %v4951, 0
      %v5045 = vsel %vm2956, %v4952, 0
      %v5048 = vsel %vm2956, %v4953, 0
      %v5051 = vsel %vm2956, %v4954, 0
      %5053 = vmatpush.msra.mxu0 0.0
      %5054 = vmatpush.msra.mxu0 0.0
      %5055 = vmatpush.msra.mxu0 0.0
      %5056 = vmatpush.msra.mxu0 0.0
      %5057 = vmatpush.msra.mxu0 0.0
      %5058 = vmatpush.msra.mxu0 0.0
      %5059 = vmatpush.msra.mxu0 0.0
      %5060 = vmatpush.msra.mxu0 0.0
      %5061 = vmatpush.msra.mxu0 0.0
      %5062 = vmatpush.msra.mxu0 0.0
      %5063 = vmatpush.msra.mxu0 0.0
      %5064 = vmatpush.msra.mxu0 0.0
      %5065 = vmatpush.msra.mxu0 0.0
      %5066 = vmatpush.msra.mxu0 0.0
      %5067 = vmatpush.msra.mxu0 0.0
      %5068 = vmatpush.msra.mxu0 %v4956
      %5069 = vmatmul.f32.gmra.mxu0 %v4958
      %v5070 = vpop.f32.mrf.mxu0
      %v5071 = vadd.f32 0.0, %v5070
      %5072 = vmatmul.f32.gmra.mxu0 %v4961
      %v5073 = vpop.f32.mrf.mxu0
      %v5074 = vadd.f32 0.0, %v5073
      %5075 = vmatmul.f32.gmra.mxu0 %v4964
      %v5076 = vpop.f32.mrf.mxu0
      %v5077 = vadd.f32 0.0, %v5076
      %5078 = vmatmul.f32.gmra.mxu0 %v4967
      %v5079 = vpop.f32.mrf.mxu0
      %v5080 = vadd.f32 0.0, %v5079
      %5081 = vmatmul.f32.gmra.mxu0 %v4970
      %v5082 = vpop.f32.mrf.mxu0
      %v5083 = vadd.f32 0.0, %v5082
      %5084 = vmatmul.f32.gmra.mxu0 %v4973
      %v5085 = vpop.f32.mrf.mxu0
      %v5086 = vadd.f32 0.0, %v5085
      %5087 = vmatmul.f32.gmra.mxu0 %v4976
      %v5088 = vpop.f32.mrf.mxu0
      %v5089 = vadd.f32 0.0, %v5088
      %5090 = vmatmul.f32.gmra.mxu0 %v4979
      %v5091 = vpop.f32.mrf.mxu0
      %v5092 = vadd.f32 0.0, %v5091
      %5093 = vmatmul.f32.gmra.mxu0 %v4982
      %v5094 = vpop.f32.mrf.mxu0
      %v5095 = vadd.f32 0.0, %v5094
      %5096 = vmatmul.f32.gmra.mxu0 %v4985
      %v5097 = vpop.f32.mrf.mxu0
      %v5098 = vadd.f32 0.0, %v5097
      %5099 = vmatmul.f32.gmra.mxu0 %v4988
      %v5100 = vpop.f32.mrf.mxu0
      %v5101 = vadd.f32 0.0, %v5100
      %5102 = vmatmul.f32.gmra.mxu0 %v4991
      %v5103 = vpop.f32.mrf.mxu0
      %v5104 = vadd.f32 0.0, %v5103
      %5105 = vmatmul.f32.gmra.mxu0 %v4994
      %v5106 = vpop.f32.mrf.mxu0
      %v5107 = vadd.f32 0.0, %v5106
      %5108 = vmatmul.f32.gmra.mxu0 %v4997
      %v5109 = vpop.f32.mrf.mxu0
      %v5110 = vadd.f32 0.0, %v5109
      %5111 = vmatmul.f32.gmra.mxu0 %v5000
      %v5112 = vpop.f32.mrf.mxu0
      %v5113 = vadd.f32 0.0, %v5112
      %5114 = vmatmul.f32.gmra.mxu0 %v5003
      %v5115 = vpop.f32.mrf.mxu0
      %v5116 = vadd.f32 0.0, %v5115
      %5117 = vmatmul.f32.gmra.mxu0 %v5006
      %v5118 = vpop.f32.mrf.mxu0
      %v5119 = vadd.f32 0.0, %v5118
      %5120 = vmatmul.f32.gmra.mxu0 %v5009
      %v5121 = vpop.f32.mrf.mxu0
      %v5122 = vadd.f32 0.0, %v5121
      %5123 = vmatmul.f32.gmra.mxu0 %v5012
      %v5124 = vpop.f32.mrf.mxu0
      %v5125 = vadd.f32 0.0, %v5124
      %5126 = vmatmul.f32.gmra.mxu0 %v5015
      %v5127 = vpop.f32.mrf.mxu0
      %v5128 = vadd.f32 0.0, %v5127
      %5129 = vmatmul.f32.gmra.mxu0 %v5018
      %v5130 = vpop.f32.mrf.mxu0
      %v5131 = vadd.f32 0.0, %v5130
      %5132 = vmatmul.f32.gmra.mxu0 %v5021
      %v5133 = vpop.f32.mrf.mxu0
      %v5134 = vadd.f32 0.0, %v5133
      %5135 = vmatmul.f32.gmra.mxu0 %v5024
      %v5136 = vpop.f32.mrf.mxu0
      %v5137 = vadd.f32 0.0, %v5136
      %5138 = vmatmul.f32.gmra.mxu0 %v5027
      %v5139 = vpop.f32.mrf.mxu0
      %v5140 = vadd.f32 0.0, %v5139
      %5141 = vmatmul.f32.gmra.mxu0 %v5030
      %v5142 = vpop.f32.mrf.mxu0
      %v5143 = vadd.f32 0.0, %v5142
      %5144 = vmatmul.f32.gmra.mxu0 %v5033
      %v5145 = vpop.f32.mrf.mxu0
      %v5146 = vadd.f32 0.0, %v5145
      %5147 = vmatmul.f32.gmra.mxu0 %v5036
      %v5148 = vpop.f32.mrf.mxu0
      %v5149 = vadd.f32 0.0, %v5148
      %5150 = vmatmul.f32.gmra.mxu0 %v5039
      %v5151 = vpop.f32.mrf.mxu0
      %v5152 = vadd.f32 0.0, %v5151
      %5153 = vmatmul.f32.gmra.mxu0 %v5042
      %v5154 = vpop.f32.mrf.mxu0
      %v5155 = vadd.f32 0.0, %v5154
      %5156 = vmatmul.f32.gmra.mxu0 %v5045
      %v5157 = vpop.f32.mrf.mxu0
      %v5158 = vadd.f32 0.0, %v5157
      %5159 = vmatmul.f32.gmra.mxu0 %v5048
      %v5160 = vpop.f32.mrf.mxu0
      %v5161 = vadd.f32 0.0, %v5160
      %5162 = vmatmul.f32.gmra.mxu0 %v5051
      %v5163 = vpop.f32.mrf.mxu0
      %v5164 = vadd.f32 0.0, %v5163
      %5165 = vdwg.mxu0
      %v5166 = vadd.f32 %v4891, %v5071
      %v5167 = vadd.f32 %v4892, %v5074
      %v5168 = vadd.f32 %v4893, %v5077
      %v5169 = vadd.f32 %v4894, %v5080
      %v5170 = vadd.f32 %v4895, %v5083
      %v5171 = vadd.f32 %v4896, %v5086
      %v5172 = vadd.f32 %v4897, %v5089
      %v5173 = vadd.f32 %v4898, %v5092
      %v5174 = vadd.f32 %v4899, %v5095
      %v5175 = vadd.f32 %v4900, %v5098
      %v5176 = vadd.f32 %v4901, %v5101
      %v5177 = vadd.f32 %v4902, %v5104
      %v5178 = vadd.f32 %v4903, %v5107
      %v5179 = vadd.f32 %v4904, %v5110
      %v5180 = vadd.f32 %v4905, %v5113
      %v5181 = vadd.f32 %v4906, %v5116
      %v5182 = vadd.f32 %v4907, %v5119
      %v5183 = vadd.f32 %v4908, %v5122
      %v5184 = vadd.f32 %v4909, %v5125
      %v5185 = vadd.f32 %v4910, %v5128
      %v5186 = vadd.f32 %v4911, %v5131
      %v5187 = vadd.f32 %v4912, %v5134
      %v5188 = vadd.f32 %v4913, %v5137
      %v5189 = vadd.f32 %v4914, %v5140
      %v5190 = vadd.f32 %v4915, %v5143
      %v5191 = vadd.f32 %v4916, %v5146
      %v5192 = vadd.f32 %v4917, %v5149
      %v5193 = vadd.f32 %v4918, %v5152
      %v5194 = vadd.f32 %v4919, %v5155
      %v5195 = vadd.f32 %v4920, %v5158
      %v5196 = vadd.f32 %v4921, %v5161
      %v5197 = vadd.f32 %v4922, %v5164
      %v5198 = vld [vmem:[%s4647 + $0x9] sm:$0xff]
      %v5199 = vld [vmem:[%s4647 + $0x11] sm:$0xff]
      %v5200 = vld [vmem:[%s4647 + $0x29] sm:$0xff]
      %v5201 = vld [vmem:[%s4647 + $0x31] sm:$0xff]
      %v5202 = vld [vmem:[%s4647 + $0x49] sm:$0xff]
      %v5203 = vld [vmem:[%s4647 + $0x51] sm:$0xff]
      %v5204 = vld [vmem:[%s4647 + $0x69] sm:$0xff]
      %v5205 = vld [vmem:[%s4647 + $0x71] sm:$0xff]
      %v5206 = vld [vmem:[%s4647 + $0x89] sm:$0xff]
      %v5207 = vld [vmem:[%s4647 + $0x91] sm:$0xff]
      %v5208 = vld [vmem:[%s4647 + $0xa9] sm:$0xff]
      %v5209 = vld [vmem:[%s4647 + $0xb1] sm:$0xff]
      %v5210 = vld [vmem:[%s4647 + $0xc9] sm:$0xff]
      %v5211 = vld [vmem:[%s4647 + $0xd1] sm:$0xff]
      %v5212 = vld [vmem:[%s4647 + $0xe9] sm:$0xff]
      %v5213 = vld [vmem:[%s4647 + $0xf1] sm:$0xff]
      %v5214 = vld [vmem:[%s4647 + $0x109] sm:$0xff]
      %v5215 = vld [vmem:[%s4647 + $0x111] sm:$0xff]
      %v5216 = vld [vmem:[%s4647 + $0x129] sm:$0xff]
      %v5217 = vld [vmem:[%s4647 + $0x131] sm:$0xff]
      %v5218 = vld [vmem:[%s4647 + $0x149] sm:$0xff]
      %v5219 = vld [vmem:[%s4647 + $0x151] sm:$0xff]
      %v5220 = vld [vmem:[%s4647 + $0x169] sm:$0xff]
      %v5221 = vld [vmem:[%s4647 + $0x171] sm:$0xff]
      %v5222 = vld [vmem:[%s4647 + $0x189] sm:$0xff]
      %v5223 = vld [vmem:[%s4647 + $0x191] sm:$0xff]
      %v5224 = vld [vmem:[%s4647 + $0x1a9] sm:$0xff]
      %v5225 = vld [vmem:[%s4647 + $0x1b1] sm:$0xff]
      %v5226 = vld [vmem:[%s4647 + $0x1c9] sm:$0xff]
      %v5227 = vld [vmem:[%s4647 + $0x1d1] sm:$0xff]
      %v5228 = vld [vmem:[%s4647 + $0x1e9] sm:$0xff]
      %v5229 = vld [vmem:[%s4647 + $0x1f1] sm:$0xff]
      %s5230 = scalar_lea.vmem %s3, 64
      %v5231 = vld [vmem:[%s5230] sm:$0xff]
      %v5233 = vsel %vm2956, %v5198, 0
      %v5236 = vsel %vm2956, %v5199, 0
      %v5239 = vsel %vm2956, %v5200, 0
      %v5242 = vsel %vm2956, %v5201, 0
      %v5245 = vsel %vm2956, %v5202, 0
      %v5248 = vsel %vm2956, %v5203, 0
      %v5251 = vsel %vm2956, %v5204, 0
      %v5254 = vsel %vm2956, %v5205, 0
      %v5257 = vsel %vm2956, %v5206, 0
      %v5260 = vsel %vm2956, %v5207, 0
      %v5263 = vsel %vm2956, %v5208, 0
      %v5266 = vsel %vm2956, %v5209, 0
      %v5269 = vsel %vm2956, %v5210, 0
      %v5272 = vsel %vm2956, %v5211, 0
      %v5275 = vsel %vm2956, %v5212, 0
      %v5278 = vsel %vm2956, %v5213, 0
      %v5281 = vsel %vm2956, %v5214, 0
      %v5284 = vsel %vm2956, %v5215, 0
      %v5287 = vsel %vm2956, %v5216, 0
      %v5290 = vsel %vm2956, %v5217, 0
      %v5293 = vsel %vm2956, %v5218, 0
      %v5296 = vsel %vm2956, %v5219, 0
      %v5299 = vsel %vm2956, %v5220, 0
      %v5302 = vsel %vm2956, %v5221, 0
      %v5305 = vsel %vm2956, %v5222, 0
      %v5308 = vsel %vm2956, %v5223, 0
      %v5311 = vsel %vm2956, %v5224, 0
      %v5314 = vsel %vm2956, %v5225, 0
      %v5317 = vsel %vm2956, %v5226, 0
      %v5320 = vsel %vm2956, %v5227, 0
      %v5323 = vsel %vm2956, %v5228, 0
      %v5326 = vsel %vm2956, %v5229, 0
      %5328 = vmatpush.msra.mxu0 0.0
      %5329 = vmatpush.msra.mxu0 0.0
      %5330 = vmatpush.msra.mxu0 0.0
      %5331 = vmatpush.msra.mxu0 0.0
      %5332 = vmatpush.msra.mxu0 0.0
      %5333 = vmatpush.msra.mxu0 0.0
      %5334 = vmatpush.msra.mxu0 0.0
      %5335 = vmatpush.msra.mxu0 0.0
      %5336 = vmatpush.msra.mxu0 0.0
      %5337 = vmatpush.msra.mxu0 0.0
      %5338 = vmatpush.msra.mxu0 0.0
      %5339 = vmatpush.msra.mxu0 0.0
      %5340 = vmatpush.msra.mxu0 0.0
      %5341 = vmatpush.msra.mxu0 0.0
      %5342 = vmatpush.msra.mxu0 0.0
      %5343 = vmatpush.msra.mxu0 %v5231
      %5344 = vmatmul.f32.gmra.mxu0 %v5233
      %v5345 = vpop.f32.mrf.mxu0
      %v5346 = vadd.f32 0.0, %v5345
      %5347 = vmatmul.f32.gmra.mxu0 %v5236
      %v5348 = vpop.f32.mrf.mxu0
      %v5349 = vadd.f32 0.0, %v5348
      %5350 = vmatmul.f32.gmra.mxu0 %v5239
      %v5351 = vpop.f32.mrf.mxu0
      %v5352 = vadd.f32 0.0, %v5351
      %5353 = vmatmul.f32.gmra.mxu0 %v5242
      %v5354 = vpop.f32.mrf.mxu0
      %v5355 = vadd.f32 0.0, %v5354
      %5356 = vmatmul.f32.gmra.mxu0 %v5245
      %v5357 = vpop.f32.mrf.mxu0
      %v5358 = vadd.f32 0.0, %v5357
      %5359 = vmatmul.f32.gmra.mxu0 %v5248
      %v5360 = vpop.f32.mrf.mxu0
      %v5361 = vadd.f32 0.0, %v5360
      %5362 = vmatmul.f32.gmra.mxu0 %v5251
      %v5363 = vpop.f32.mrf.mxu0
      %v5364 = vadd.f32 0.0, %v5363
      %5365 = vmatmul.f32.gmra.mxu0 %v5254
      %v5366 = vpop.f32.mrf.mxu0
      %v5367 = vadd.f32 0.0, %v5366
      %5368 = vmatmul.f32.gmra.mxu0 %v5257
      %v5369 = vpop.f32.mrf.mxu0
      %v5370 = vadd.f32 0.0, %v5369
      %5371 = vmatmul.f32.gmra.mxu0 %v5260
      %v5372 = vpop.f32.mrf.mxu0
      %v5373 = vadd.f32 0.0, %v5372
      %5374 = vmatmul.f32.gmra.mxu0 %v5263
      %v5375 = vpop.f32.mrf.mxu0
      %v5376 = vadd.f32 0.0, %v5375
      %5377 = vmatmul.f32.gmra.mxu0 %v5266
      %v5378 = vpop.f32.mrf.mxu0
      %v5379 = vadd.f32 0.0, %v5378
      %5380 = vmatmul.f32.gmra.mxu0 %v5269
      %v5381 = vpop.f32.mrf.mxu0
      %v5382 = vadd.f32 0.0, %v5381
      %5383 = vmatmul.f32.gmra.mxu0 %v5272
      %v5384 = vpop.f32.mrf.mxu0
      %v5385 = vadd.f32 0.0, %v5384
      %5386 = vmatmul.f32.gmra.mxu0 %v5275
      %v5387 = vpop.f32.mrf.mxu0
      %v5388 = vadd.f32 0.0, %v5387
      %5389 = vmatmul.f32.gmra.mxu0 %v5278
      %v5390 = vpop.f32.mrf.mxu0
      %v5391 = vadd.f32 0.0, %v5390
      %5392 = vmatmul.f32.gmra.mxu0 %v5281
      %v5393 = vpop.f32.mrf.mxu0
      %v5394 = vadd.f32 0.0, %v5393
      %5395 = vmatmul.f32.gmra.mxu0 %v5284
      %v5396 = vpop.f32.mrf.mxu0
      %v5397 = vadd.f32 0.0, %v5396
      %5398 = vmatmul.f32.gmra.mxu0 %v5287
      %v5399 = vpop.f32.mrf.mxu0
      %v5400 = vadd.f32 0.0, %v5399
      %5401 = vmatmul.f32.gmra.mxu0 %v5290
      %v5402 = vpop.f32.mrf.mxu0
      %v5403 = vadd.f32 0.0, %v5402
      %5404 = vmatmul.f32.gmra.mxu0 %v5293
      %v5405 = vpop.f32.mrf.mxu0
      %v5406 = vadd.f32 0.0, %v5405
      %5407 = vmatmul.f32.gmra.mxu0 %v5296
      %v5408 = vpop.f32.mrf.mxu0
      %v5409 = vadd.f32 0.0, %v5408
      %5410 = vmatmul.f32.gmra.mxu0 %v5299
      %v5411 = vpop.f32.mrf.mxu0
      %v5412 = vadd.f32 0.0, %v5411
      %5413 = vmatmul.f32.gmra.mxu0 %v5302
      %v5414 = vpop.f32.mrf.mxu0
      %v5415 = vadd.f32 0.0, %v5414
      %5416 = vmatmul.f32.gmra.mxu0 %v5305
      %v5417 = vpop.f32.mrf.mxu0
      %v5418 = vadd.f32 0.0, %v5417
      %5419 = vmatmul.f32.gmra.mxu0 %v5308
      %v5420 = vpop.f32.mrf.mxu0
      %v5421 = vadd.f32 0.0, %v5420
      %5422 = vmatmul.f32.gmra.mxu0 %v5311
      %v5423 = vpop.f32.mrf.mxu0
      %v5424 = vadd.f32 0.0, %v5423
      %5425 = vmatmul.f32.gmra.mxu0 %v5314
      %v5426 = vpop.f32.mrf.mxu0
      %v5427 = vadd.f32 0.0, %v5426
      %5428 = vmatmul.f32.gmra.mxu0 %v5317
      %v5429 = vpop.f32.mrf.mxu0
      %v5430 = vadd.f32 0.0, %v5429
      %5431 = vmatmul.f32.gmra.mxu0 %v5320
      %v5432 = vpop.f32.mrf.mxu0
      %v5433 = vadd.f32 0.0, %v5432
      %5434 = vmatmul.f32.gmra.mxu0 %v5323
      %v5435 = vpop.f32.mrf.mxu0
      %v5436 = vadd.f32 0.0, %v5435
      %5437 = vmatmul.f32.gmra.mxu0 %v5326
      %v5438 = vpop.f32.mrf.mxu0
      %v5439 = vadd.f32 0.0, %v5438
      %5440 = vdwg.mxu0
      %v5441 = vadd.f32 %v5166, %v5346
      %v5442 = vadd.f32 %v5167, %v5349
      %v5443 = vadd.f32 %v5168, %v5352
      %v5444 = vadd.f32 %v5169, %v5355
      %v5445 = vadd.f32 %v5170, %v5358
      %v5446 = vadd.f32 %v5171, %v5361
      %v5447 = vadd.f32 %v5172, %v5364
      %v5448 = vadd.f32 %v5173, %v5367
      %v5449 = vadd.f32 %v5174, %v5370
      %v5450 = vadd.f32 %v5175, %v5373
      %v5451 = vadd.f32 %v5176, %v5376
      %v5452 = vadd.f32 %v5177, %v5379
      %v5453 = vadd.f32 %v5178, %v5382
      %v5454 = vadd.f32 %v5179, %v5385
      %v5455 = vadd.f32 %v5180, %v5388
      %v5456 = vadd.f32 %v5181, %v5391
      %v5457 = vadd.f32 %v5182, %v5394
      %v5458 = vadd.f32 %v5183, %v5397
      %v5459 = vadd.f32 %v5184, %v5400
      %v5460 = vadd.f32 %v5185, %v5403
      %v5461 = vadd.f32 %v5186, %v5406
      %v5462 = vadd.f32 %v5187, %v5409
      %v5463 = vadd.f32 %v5188, %v5412
      %v5464 = vadd.f32 %v5189, %v5415
      %v5465 = vadd.f32 %v5190, %v5418
      %v5466 = vadd.f32 %v5191, %v5421
      %v5467 = vadd.f32 %v5192, %v5424
      %v5468 = vadd.f32 %v5193, %v5427
      %v5469 = vadd.f32 %v5194, %v5430
      %v5470 = vadd.f32 %v5195, %v5433
      %v5471 = vadd.f32 %v5196, %v5436
      %v5472 = vadd.f32 %v5197, %v5439
      %v5473 = vld [vmem:[%s4] sm:$0x1]
      %v5475 = vperm.slane %v5473, 0
      %v5477 = vadd.f32 %v5441, %v5475
      %v5478 = vadd.f32 %v5442, %v5475
      %v5479 = vadd.f32 %v5443, %v5475
      %v5480 = vadd.f32 %v5444, %v5475
      %v5481 = vadd.f32 %v5445, %v5475
      %v5482 = vadd.f32 %v5446, %v5475
      %v5483 = vadd.f32 %v5447, %v5475
      %v5484 = vadd.f32 %v5448, %v5475
      %v5485 = vadd.f32 %v5449, %v5475
      %v5486 = vadd.f32 %v5450, %v5475
      %v5487 = vadd.f32 %v5451, %v5475
      %v5488 = vadd.f32 %v5452, %v5475
      %v5489 = vadd.f32 %v5453, %v5475
      %v5490 = vadd.f32 %v5454, %v5475
      %v5491 = vadd.f32 %v5455, %v5475
      %v5492 = vadd.f32 %v5456, %v5475
      %v5493 = vadd.f32 %v5457, %v5475
      %v5494 = vadd.f32 %v5458, %v5475
      %v5495 = vadd.f32 %v5459, %v5475
      %v5496 = vadd.f32 %v5460, %v5475
      %v5497 = vadd.f32 %v5461, %v5475
      %v5498 = vadd.f32 %v5462, %v5475
      %v5499 = vadd.f32 %v5463, %v5475
      %v5500 = vadd.f32 %v5464, %v5475
      %v5501 = vadd.f32 %v5465, %v5475
      %v5502 = vadd.f32 %v5466, %v5475
      %v5503 = vadd.f32 %v5467, %v5475
      %v5504 = vadd.f32 %v5468, %v5475
      %v5505 = vadd.f32 %v5469, %v5475
      %v5506 = vadd.f32 %v5470, %v5475
      %v5507 = vadd.f32 %v5471, %v5475
      %v5508 = vadd.f32 %v5472, %v5475
      %v5509 = vld [vmem:[%s5] sm:$0xf]
      %v5510 = vld [vmem:[%s6] sm:$0x1]
      %v5512 = vperm.slane %v5510, 0
      %v5515 = vsel %vm343, %v311, 0
      %v5518 = vsel %vm343, %v312, 0
      %v5521 = vsel %vm343, %v313, 0
      %v5524 = vsel %vm343, %v314, 0
      %v5527 = vsel %vm343, %v315, 0
      %v5530 = vsel %vm343, %v316, 0
      %v5533 = vsel %vm343, %v317, 0
      %v5536 = vsel %vm343, %v318, 0
      %v5539 = vsel %vm343, %v319, 0
      %v5542 = vsel %vm343, %v320, 0
      %v5545 = vsel %vm343, %v321, 0
      %v5548 = vsel %vm343, %v322, 0
      %v5551 = vsel %vm343, %v323, 0
      %v5554 = vsel %vm343, %v324, 0
      %v5557 = vsel %vm343, %v325, 0
      %v5560 = vsel %vm343, %v326, 0
      %v5563 = vsel %vm343, %v327, 0
      %v5566 = vsel %vm343, %v328, 0
      %v5569 = vsel %vm343, %v329, 0
      %v5572 = vsel %vm343, %v330, 0
      %v5575 = vsel %vm343, %v331, 0
      %v5578 = vsel %vm343, %v332, 0
      %v5581 = vsel %vm343, %v333, 0
      %v5584 = vsel %vm343, %v334, 0
      %v5587 = vsel %vm343, %v335, 0
      %v5590 = vsel %vm343, %v336, 0
      %v5593 = vsel %vm343, %v337, 0
      %v5596 = vsel %vm343, %v338, 0
      %v5599 = vsel %vm343, %v339, 0
      %v5602 = vsel %vm343, %v340, 0
      %v5605 = vsel %vm343, %v341, 0
      %v5608 = vsel %vm343, %v342, 0
      %v5611 = vsel %vm612, %v5509, 0
      %5613 = vmatpush.msra.mxu0 0.0
      %5614 = vmatpush.msra.mxu0 0.0
      %5615 = vmatpush.msra.mxu0 0.0
      %5616 = vmatpush.msra.mxu0 0.0
      %5617 = vmatpush.msra.mxu0 0.0
      %5618 = vmatpush.msra.mxu0 0.0
      %5619 = vmatpush.msra.mxu0 0.0
      %5620 = vmatpush.msra.mxu0 0.0
      %5621 = vmatpush.msra.mxu0 0.0
      %5622 = vmatpush.msra.mxu0 0.0
      %5623 = vmatpush.msra.mxu0 0.0
      %5624 = vmatpush.msra.mxu0 0.0
      %5625 = vmatpush.msra.mxu0 0.0
      %5626 = vmatpush.msra.mxu0 0.0
      %5627 = vmatpush.msra.mxu0 0.0
      %5628 = vmatpush.msra.mxu0 %v5611
      %5629 = vmatmul.f32.gmra.mxu0 %v5515
      %v5630 = vpop.f32.mrf.mxu0
      %v5631 = vadd.f32 %v5512, %v5630
      %5632 = vmatmul.f32.gmra.mxu0 %v5518
      %v5633 = vpop.f32.mrf.mxu0
      %v5634 = vadd.f32 %v5512, %v5633
      %5635 = vmatmul.f32.gmra.mxu0 %v5521
      %v5636 = vpop.f32.mrf.mxu0
      %v5637 = vadd.f32 %v5512, %v5636
      %5638 = vmatmul.f32.gmra.mxu0 %v5524
      %v5639 = vpop.f32.mrf.mxu0
      %v5640 = vadd.f32 %v5512, %v5639
      %5641 = vmatmul.f32.gmra.mxu0 %v5527
      %v5642 = vpop.f32.mrf.mxu0
      %v5643 = vadd.f32 %v5512, %v5642
      %5644 = vmatmul.f32.gmra.mxu0 %v5530
      %v5645 = vpop.f32.mrf.mxu0
      %v5646 = vadd.f32 %v5512, %v5645
      %5647 = vmatmul.f32.gmra.mxu0 %v5533
      %v5648 = vpop.f32.mrf.mxu0
      %v5649 = vadd.f32 %v5512, %v5648
      %5650 = vmatmul.f32.gmra.mxu0 %v5536
      %v5651 = vpop.f32.mrf.mxu0
      %v5652 = vadd.f32 %v5512, %v5651
      %5653 = vmatmul.f32.gmra.mxu0 %v5539
      %v5654 = vpop.f32.mrf.mxu0
      %v5655 = vadd.f32 %v5512, %v5654
      %5656 = vmatmul.f32.gmra.mxu0 %v5542
      %v5657 = vpop.f32.mrf.mxu0
      %v5658 = vadd.f32 %v5512, %v5657
      %5659 = vmatmul.f32.gmra.mxu0 %v5545
      %v5660 = vpop.f32.mrf.mxu0
      %v5661 = vadd.f32 %v5512, %v5660
      %5662 = vmatmul.f32.gmra.mxu0 %v5548
      %v5663 = vpop.f32.mrf.mxu0
      %v5664 = vadd.f32 %v5512, %v5663
      %5665 = vmatmul.f32.gmra.mxu0 %v5551
      %v5666 = vpop.f32.mrf.mxu0
      %v5667 = vadd.f32 %v5512, %v5666
      %5668 = vmatmul.f32.gmra.mxu0 %v5554
      %v5669 = vpop.f32.mrf.mxu0
      %v5670 = vadd.f32 %v5512, %v5669
      %5671 = vmatmul.f32.gmra.mxu0 %v5557
      %v5672 = vpop.f32.mrf.mxu0
      %v5673 = vadd.f32 %v5512, %v5672
      %5674 = vmatmul.f32.gmra.mxu0 %v5560
      %v5675 = vpop.f32.mrf.mxu0
      %v5676 = vadd.f32 %v5512, %v5675
      %5677 = vmatmul.f32.gmra.mxu0 %v5563
      %v5678 = vpop.f32.mrf.mxu0
      %v5679 = vadd.f32 %v5512, %v5678
      %5680 = vmatmul.f32.gmra.mxu0 %v5566
      %v5681 = vpop.f32.mrf.mxu0
      %v5682 = vadd.f32 %v5512, %v5681
      %5683 = vmatmul.f32.gmra.mxu0 %v5569
      %v5684 = vpop.f32.mrf.mxu0
      %v5685 = vadd.f32 %v5512, %v5684
      %5686 = vmatmul.f32.gmra.mxu0 %v5572
      %v5687 = vpop.f32.mrf.mxu0
      %v5688 = vadd.f32 %v5512, %v5687
      %5689 = vmatmul.f32.gmra.mxu0 %v5575
      %v5690 = vpop.f32.mrf.mxu0
      %v5691 = vadd.f32 %v5512, %v5690
      %5692 = vmatmul.f32.gmra.mxu0 %v5578
      %v5693 = vpop.f32.mrf.mxu0
      %v5694 = vadd.f32 %v5512, %v5693
      %5695 = vmatmul.f32.gmra.mxu0 %v5581
      %v5696 = vpop.f32.mrf.mxu0
      %v5697 = vadd.f32 %v5512, %v5696
      %5698 = vmatmul.f32.gmra.mxu0 %v5584
      %v5699 = vpop.f32.mrf.mxu0
      %v5700 = vadd.f32 %v5512, %v5699
      %5701 = vmatmul.f32.gmra.mxu0 %v5587
      %v5702 = vpop.f32.mrf.mxu0
      %v5703 = vadd.f32 %v5512, %v5702
      %5704 = vmatmul.f32.gmra.mxu0 %v5590
      %v5705 = vpop.f32.mrf.mxu0
      %v5706 = vadd.f32 %v5512, %v5705
      %5707 = vmatmul.f32.gmra.mxu0 %v5593
      %v5708 = vpop.f32.mrf.mxu0
      %v5709 = vadd.f32 %v5512, %v5708
      %5710 = vmatmul.f32.gmra.mxu0 %v5596
      %v5711 = vpop.f32.mrf.mxu0
      %v5712 = vadd.f32 %v5512, %v5711
      %5713 = vmatmul.f32.gmra.mxu0 %v5599
      %v5714 = vpop.f32.mrf.mxu0
      %v5715 = vadd.f32 %v5512, %v5714
      %5716 = vmatmul.f32.gmra.mxu0 %v5602
      %v5717 = vpop.f32.mrf.mxu0
      %v5718 = vadd.f32 %v5512, %v5717
      %5719 = vmatmul.f32.gmra.mxu0 %v5605
      %v5720 = vpop.f32.mrf.mxu0
      %v5721 = vadd.f32 %v5512, %v5720
      %5722 = vmatmul.f32.gmra.mxu0 %v5608
      %v5723 = vpop.f32.mrf.mxu0
      %v5724 = vadd.f32 %v5512, %v5723
      %5725 = vdwg.mxu0
      %v5726 = vadd.f32 %v5477, %v5631
      %v5727 = vadd.f32 %v5478, %v5634
      %v5728 = vadd.f32 %v5479, %v5637
      %v5729 = vadd.f32 %v5480, %v5640
      %v5730 = vadd.f32 %v5481, %v5643
      %v5731 = vadd.f32 %v5482, %v5646
      %v5732 = vadd.f32 %v5483, %v5649
      %v5733 = vadd.f32 %v5484, %v5652
      %v5734 = vadd.f32 %v5485, %v5655
      %v5735 = vadd.f32 %v5486, %v5658
      %v5736 = vadd.f32 %v5487, %v5661
      %v5737 = vadd.f32 %v5488, %v5664
      %v5738 = vadd.f32 %v5489, %v5667
      %v5739 = vadd.f32 %v5490, %v5670
      %v5740 = vadd.f32 %v5491, %v5673
      %v5741 = vadd.f32 %v5492, %v5676
      %v5742 = vadd.f32 %v5493, %v5679
      %v5743 = vadd.f32 %v5494, %v5682
      %v5744 = vadd.f32 %v5495, %v5685
      %v5745 = vadd.f32 %v5496, %v5688
      %v5746 = vadd.f32 %v5497, %v5691
      %v5747 = vadd.f32 %v5498, %v5694
      %v5748 = vadd.f32 %v5499, %v5697
      %v5749 = vadd.f32 %v5500, %v5700
      %v5750 = vadd.f32 %v5501, %v5703
      %v5751 = vadd.f32 %v5502, %v5706
      %v5752 = vadd.f32 %v5503, %v5709
      %v5753 = vadd.f32 %v5504, %v5712
      %v5754 = vadd.f32 %v5505, %v5715
      %v5755 = vadd.f32 %v5506, %v5718
      %v5756 = vadd.f32 %v5507, %v5721
      %v5757 = vadd.f32 %v5508, %v5724
      %5758 = vst.msk [vmem:[#allocation4] sm:$0xff] %vm2956, %v5726
      %5759 = vst.msk [vmem:[#allocation4 + $0x8] sm:$0xff] %vm2956, %v5727
      %5760 = vst.msk [vmem:[#allocation4 + $0x10] sm:$0xff] %vm2956, %v5728
      %5761 = vst.msk [vmem:[#allocation4 + $0x18] sm:$0xff] %vm2956, %v5729
      %5762 = vst.msk [vmem:[#allocation4 + $0x20] sm:$0xff] %vm2956, %v5730
      %5763 = vst.msk [vmem:[#allocation4 + $0x28] sm:$0xff] %vm2956, %v5731
      %5764 = vst.msk [vmem:[#allocation4 + $0x30] sm:$0xff] %vm2956, %v5732
      %5765 = vst.msk [vmem:[#allocation4 + $0x38] sm:$0xff] %vm2956, %v5733
      %5766 = vst.msk [vmem:[#allocation4 + $0x40] sm:$0xff] %vm2956, %v5734
      %5767 = vst.msk [vmem:[#allocation4 + $0x48] sm:$0xff] %vm2956, %v5735
      %5768 = vst.msk [vmem:[#allocation4 + $0x50] sm:$0xff] %vm2956, %v5736
      %5769 = vst.msk [vmem:[#allocation4 + $0x58] sm:$0xff] %vm2956, %v5737
      %5770 = vst.msk [vmem:[#allocation4 + $0x60] sm:$0xff] %vm2956, %v5738
      %5771 = vst.msk [vmem:[#allocation4 + $0x68] sm:$0xff] %vm2956, %v5739
      %5772 = vst.msk [vmem:[#allocation4 + $0x70] sm:$0xff] %vm2956, %v5740
      %5773 = vst.msk [vmem:[#allocation4 + $0x78] sm:$0xff] %vm2956, %v5741
      %5774 = vst.msk [vmem:[#allocation4 + $0x80] sm:$0xff] %vm2956, %v5742
      %5775 = vst.msk [vmem:[#allocation4 + $0x88] sm:$0xff] %vm2956, %v5743
      %5776 = vst.msk [vmem:[#allocation4 + $0x90] sm:$0xff] %vm2956, %v5744
      %5777 = vst.msk [vmem:[#allocation4 + $0x98] sm:$0xff] %vm2956, %v5745
      %5778 = vst.msk [vmem:[#allocation4 + $0xa0] sm:$0xff] %vm2956, %v5746
      %5779 = vst.msk [vmem:[#allocation4 + $0xa8] sm:$0xff] %vm2956, %v5747
      %5780 = vst.msk [vmem:[#allocation4 + $0xb0] sm:$0xff] %vm2956, %v5748
      %5781 = vst.msk [vmem:[#allocation4 + $0xb8] sm:$0xff] %vm2956, %v5749
      %5782 = vst.msk [vmem:[#allocation4 + $0xc0] sm:$0xff] %vm2956, %v5750
      %5783 = vst.msk [vmem:[#allocation4 + $0xc8] sm:$0xff] %vm2956, %v5751
      %5784 = vst.msk [vmem:[#allocation4 + $0xd0] sm:$0xff] %vm2956, %v5752
      %5785 = vst.msk [vmem:[#allocation4 + $0xd8] sm:$0xff] %vm2956, %v5753
      %5786 = vst.msk [vmem:[#allocation4 + $0xe0] sm:$0xff] %vm2956, %v5754
      %5787 = vst.msk [vmem:[#allocation4 + $0xe8] sm:$0xff] %vm2956, %v5755
      %5788 = vst.msk [vmem:[#allocation4 + $0xf0] sm:$0xff] %vm2956, %v5756
      %5789 = vst.msk [vmem:[#allocation4 + $0xf8] sm:$0xff] %vm2956, %v5757
      %v5790 = vld [vmem:[#allocation4] sm:$0xff]
      %v5791 = vld [vmem:[#allocation4 + $0x8] sm:$0xff]
      %v5792 = vld [vmem:[#allocation4 + $0x20] sm:$0xff]
      %v5793 = vld [vmem:[#allocation4 + $0x28] sm:$0xff]
      %v5794 = vld [vmem:[#allocation4 + $0x40] sm:$0xff]
      %v5795 = vld [vmem:[#allocation4 + $0x48] sm:$0xff]
      %v5796 = vld [vmem:[#allocation4 + $0x60] sm:$0xff]
      %v5797 = vld [vmem:[#allocation4 + $0x68] sm:$0xff]
      %v5798 = vld [vmem:[#allocation4 + $0x80] sm:$0xff]
      %v5799 = vld [vmem:[#allocation4 + $0x88] sm:$0xff]
      %v5800 = vld [vmem:[#allocation4 + $0xa0] sm:$0xff]
      %v5801 = vld [vmem:[#allocation4 + $0xa8] sm:$0xff]
      %v5802 = vld [vmem:[#allocation4 + $0xc0] sm:$0xff]
      %v5803 = vld [vmem:[#allocation4 + $0xc8] sm:$0xff]
      %v5804 = vld [vmem:[#allocation4 + $0xe0] sm:$0xff]
      %v5805 = vld [vmem:[#allocation4 + $0xe8] sm:$0xff]
      %v5806 = vld [vmem:[#allocation4 + $0x10] sm:$0xff]
      %v5807 = vld [vmem:[#allocation4 + $0x18] sm:$0xff]
      %v5808 = vld [vmem:[#allocation4 + $0x30] sm:$0xff]
      %v5809 = vld [vmem:[#allocation4 + $0x38] sm:$0xff]
      %v5810 = vld [vmem:[#allocation4 + $0x50] sm:$0xff]
      %v5811 = vld [vmem:[#allocation4 + $0x58] sm:$0xff]
      %v5812 = vld [vmem:[#allocation4 + $0x70] sm:$0xff]
      %v5813 = vld [vmem:[#allocation4 + $0x78] sm:$0xff]
      %v5814 = vld [vmem:[#allocation4 + $0x90] sm:$0xff]
      %v5815 = vld [vmem:[#allocation4 + $0x98] sm:$0xff]
      %v5816 = vld [vmem:[#allocation4 + $0xb0] sm:$0xff]
      %v5817 = vld [vmem:[#allocation4 + $0xb8] sm:$0xff]
      %v5818 = vld [vmem:[#allocation4 + $0xd0] sm:$0xff]
      %v5819 = vld [vmem:[#allocation4 + $0xd8] sm:$0xff]
      %v5820 = vld [vmem:[#allocation4 + $0xf0] sm:$0xff]
      %v5821 = vld [vmem:[#allocation4 + $0xf8] sm:$0xff]
      %v5822 = vadd.f32 %v5790, %v5806
      %v5823 = vadd.f32 %v5791, %v5807
      %v5824 = vadd.f32 %v5792, %v5808
      %v5825 = vadd.f32 %v5793, %v5809
      %v5826 = vadd.f32 %v5794, %v5810
      %v5827 = vadd.f32 %v5795, %v5811
      %v5828 = vadd.f32 %v5796, %v5812
      %v5829 = vadd.f32 %v5797, %v5813
      %v5830 = vadd.f32 %v5798, %v5814
      %v5831 = vadd.f32 %v5799, %v5815
      %v5832 = vadd.f32 %v5800, %v5816
      %v5833 = vadd.f32 %v5801, %v5817
      %v5834 = vadd.f32 %v5802, %v5818
      %v5835 = vadd.f32 %v5803, %v5819
      %v5836 = vadd.f32 %v5804, %v5820
      %v5837 = vadd.f32 %v5805, %v5821
      %5838 = vst.msk [vmem:[#allocation5] sm:$0xff] %vm2956, %v5822
      %5839 = vst.msk [vmem:[#allocation5 + $0x8] sm:$0xff] %vm2956, %v5823
      %5840 = vst.msk [vmem:[#allocation5 + $0x10] sm:$0xff] %vm2956, %v5824
      %5841 = vst.msk [vmem:[#allocation5 + $0x18] sm:$0xff] %vm2956, %v5825
      %5842 = vst.msk [vmem:[#allocation5 + $0x20] sm:$0xff] %vm2956, %v5826
      %5843 = vst.msk [vmem:[#allocation5 + $0x28] sm:$0xff] %vm2956, %v5827
      %5844 = vst.msk [vmem:[#allocation5 + $0x30] sm:$0xff] %vm2956, %v5828
      %5845 = vst.msk [vmem:[#allocation5 + $0x38] sm:$0xff] %vm2956, %v5829
      %5846 = vst.msk [vmem:[#allocation5 + $0x40] sm:$0xff] %vm2956, %v5830
      %5847 = vst.msk [vmem:[#allocation5 + $0x48] sm:$0xff] %vm2956, %v5831
      %5848 = vst.msk [vmem:[#allocation5 + $0x50] sm:$0xff] %vm2956, %v5832
      %5849 = vst.msk [vmem:[#allocation5 + $0x58] sm:$0xff] %vm2956, %v5833
      %5850 = vst.msk [vmem:[#allocation5 + $0x60] sm:$0xff] %vm2956, %v5834
      %5851 = vst.msk [vmem:[#allocation5 + $0x68] sm:$0xff] %vm2956, %v5835
      %5852 = vst.msk [vmem:[#allocation5 + $0x70] sm:$0xff] %vm2956, %v5836
      %5853 = vst.msk [vmem:[#allocation5 + $0x78] sm:$0xff] %vm2956, %v5837
      %v5854 = vld [vmem:[#allocation5] ss:$2 sm:$0xff]
      %s5855 = scalar_lea.vmem [#allocation5], 16
      %v5856 = vld [vmem:[%s5855] ss:$2 sm:$0xff]
      %s5857 = scalar_lea.vmem [#allocation5], 32
      %v5858 = vld [vmem:[%s5857] ss:$2 sm:$0xff]
      %s5859 = scalar_lea.vmem [#allocation5], 48
      %v5860 = vld [vmem:[%s5859] ss:$2 sm:$0xff]
      %s5861 = scalar_lea.vmem [#allocation5], 64
      %v5862 = vld [vmem:[%s5861] ss:$2 sm:$0xff]
      %s5863 = scalar_lea.vmem [#allocation5], 80
      %v5864 = vld [vmem:[%s5863] ss:$2 sm:$0xff]
      %s5865 = scalar_lea.vmem [#allocation5], 96
      %v5866 = vld [vmem:[%s5865] ss:$2 sm:$0xff]
      %s5867 = scalar_lea.vmem [#allocation5], 112
      %v5868 = vld [vmem:[%s5867] ss:$2 sm:$0xff]
      %s5869 = scalar_lea.vmem [#allocation5], 1
      %v5870 = vld [vmem:[%s5869] ss:$2 sm:$0xff]
      %s5871 = scalar_lea.vmem [#allocation5], 17
      %v5872 = vld [vmem:[%s5871] ss:$2 sm:$0xff]
      %s5873 = scalar_lea.vmem [#allocation5], 33
      %v5874 = vld [vmem:[%s5873] ss:$2 sm:$0xff]
      %s5875 = scalar_lea.vmem [#allocation5], 49
      %v5876 = vld [vmem:[%s5875] ss:$2 sm:$0xff]
      %s5877 = scalar_lea.vmem [#allocation5], 65
      %v5878 = vld [vmem:[%s5877] ss:$2 sm:$0xff]
      %s5879 = scalar_lea.vmem [#allocation5], 81
      %v5880 = vld [vmem:[%s5879] ss:$2 sm:$0xff]
      %s5881 = scalar_lea.vmem [#allocation5], 97
      %v5882 = vld [vmem:[%s5881] ss:$2 sm:$0xff]
      %s5883 = scalar_lea.vmem [#allocation5], 113
      %v5884 = vld [vmem:[%s5883] ss:$2 sm:$0xff]
      %v5885 = vadd.f32 %v5854, %v5870
      %v5886 = vadd.f32 %v5856, %v5872
      %v5887 = vadd.f32 %v5858, %v5874
      %v5888 = vadd.f32 %v5860, %v5876
      %v5889 = vadd.f32 %v5862, %v5878
      %v5890 = vadd.f32 %v5864, %v5880
      %v5891 = vadd.f32 %v5866, %v5882
      %v5892 = vadd.f32 %v5868, %v5884
      %v5893 = vmul.f32 %v5885, 0.25
      %v5894 = vmul.f32 %v5886, 0.25
      %v5895 = vmul.f32 %v5887, 0.25
      %v5896 = vmul.f32 %v5888, 0.25
      %v5897 = vmul.f32 %v5889, 0.25
      %v5898 = vmul.f32 %v5890, 0.25
      %v5899 = vmul.f32 %v5891, 0.25
      %v5900 = vmul.f32 %v5892, 0.25
      %5901 = vst.msk [vmem:[%s278] sm:$0xff] %vm2956, %v5893
      %5902 = vst.msk [vmem:[%s278 + $0x8] sm:$0xff] %vm2956, %v5894
      %5903 = vst.msk [vmem:[%s278 + $0x10] sm:$0xff] %vm2956, %v5895
      %5904 = vst.msk [vmem:[%s278 + $0x18] sm:$0xff] %vm2956, %v5896
      %5905 = vst.msk [vmem:[%s278 + $0x20] sm:$0xff] %vm2956, %v5897
      %5906 = vst.msk [vmem:[%s278 + $0x28] sm:$0xff] %vm2956, %v5898
      %5907 = vst.msk [vmem:[%s278 + $0x30] sm:$0xff] %vm2956, %v5899
      %5908 = vst.msk [vmem:[%s278 + $0x38] sm:$0xff] %vm2956, %v5900
      %p5909 = scmp.lt.s32.totalorder %s18, 1
      %s5910 = scalar_select %p5909, %s18, 1
      %s5911 = smul.addr %s5910, 8
      %s5912 = smul.addr %s5911, 8
      %s5913 = scalar_lea.vmem %s7, %s5912
      // Predicated region
      $region49: #{tpu_custom_call.1} parent=47 // pred_check
        %p5914 = pneg %p188
      $region50: #{tpu_custom_call.1} parent=47 // pred_check_branch
        %5916 = sbr.rel (%p5914) target = $region52
      $region51: #{tpu_custom_call.1} parent=47 // pred_region
        _
      $region52: #{tpu_custom_call.1} parent=47 // pred_fallthru
        _
    $region48: #{tpu_custom_call.1} parent=5 // pred_fallthru
      _
    %p5917 = scmp.le.s32.totalorder 2, %s13
    // Predicated region
    $region53: #{tpu_custom_call.1} parent=5 // pred_check
      %p5918 = pneg %p5917
    $region54: #{tpu_custom_call.1} parent=5 // pred_check_branch
      %5920 = sbr.rel (%p5918) target = $region56
    $region55: #{tpu_custom_call.1} parent=5 // pred_region
      %s5921 = ssub.s32 %s13, 2
      // Predicated region
      $region57: #{tpu_custom_call.1} parent=55 // pred_check
        %p5922 = pneg %p194
      $region58: #{tpu_custom_call.1} parent=55 // pred_check_branch
        %5924 = sbr.rel (%p5922) target = $region60
      $region59: #{tpu_custom_call.1} parent=55 // pred_region
        %p5925 = scmp.lt.s32.totalorder %s19, 1
        %s5926 = scalar_select %p5925, %s19, 1
        %s5927 = smul.addr %s5926, 8
        %s5928 = smul.addr %s5927, 8
        %s5929 = scalar_lea.vmem %s7, %s5928
      $region60: #{tpu_custom_call.1} parent=55 // pred_fallthru
        _
    $region56: #{tpu_custom_call.1} parent=5 // pred_fallthru
      _
  $region6: #{tpu_custom_call.1} parent=0 // loop_footer
    %s17 = sadd.s32 1, %s13
  $region7: #{tpu_custom_call.1} parent=0 // loop_footer_branch
    %12 = sbr.rel target = $region3
  $region8: #{tpu_custom_call.1} parent=0 // loop_exit
    _

</llo_original>
